<compile_context>
chip_gen: v7x
topology: tpu7x:2x2x1
jax: 0.10.0
libtpu: 0.0.40
codegen_flags: <defaults>
</compile_context>

<pallas_src>
import functools
import math

import jax
import jax.numpy as jnp
from jax import lax
from jax.experimental import pallas as pl
from jax.experimental.pallas import tpu as pltpu


def _round_up(x, m):
    return (x + m - 1) // m * m


def _tensorcores_per_chip():
    # Only v7x has 2 TensorCores per chip; splitting the grid purely for
    # megacore on 1-TC parts just shrinks the slab.
    try:
        kind = jax.devices()[0].device_kind.lower()
    except Exception:
        return 1
    return 2 if ("v7" in kind or "7x" in kind) else 1


def _vmem_capacity_bytes():
    try:
        return int(pltpu.get_tpu_info().vmem_capacity_bytes)
    except Exception:
        return 64 << 20  # conservative (v7x physical VMEM)


# ---------------------------------------------------------------------------
# Kernel: one batch-block per grid step. MLPs run on the flattened slab,
# attention runs as batched dot_generals, output is a lane-dense 2D slab.
# ---------------------------------------------------------------------------
def mha_kernel(key_ref, val_ref, qry_ref, w_ref, b_ref, out_ref, *,
               num_heads, d_head, p_in, p_hid, p_out):
    Bb, Sk, _ = key_ref.shape
    Sq = qry_ref.shape[1]
    cd = w_ref.dtype                        # MXU input dtype (f32 or bf16)

    def mlp3(x2, base):                     # x2: (rows, p_in), 3 Linear layers
        h = x2
        widths = (p_in, p_hid, p_hid)
        for li in range(3):
            w = w_ref[base + li, :widths[li], :p_hid]          # static slice
            bia = b_ref[base + li:base + li + 1, :p_hid]       # (1, p_hid) f32
            h = jnp.dot(h.astype(cd), w,
                        preferred_element_type=jnp.float32) + bia
            if li < 2:
                h = jnp.maximum(h, 0.0)
        return h

    k2 = key_ref[...].reshape(Bb * Sk, p_in)
    v2 = val_ref[...].reshape(Bb * Sk, p_in)
    q2 = qry_ref[...].reshape(Bb * Sq, p_in)

    Wk = mlp3(k2, 0).reshape(Bb, Sk, p_hid)    # padded lanes are exactly zero
    Wq = mlp3(q2, 3).reshape(Bb, Sq, p_hid)
    Wv = mlp3(v2, 6).reshape(Bb, Sk, p_hid)

    if num_heads > 1:                          # hoisted out of the head loop
        lane = lax.broadcasted_iota(jnp.int32, (1, 1, p_hid), 2)

    ctx = None
    for h in range(num_heads):                 # static unroll; num_heads==1 typical
        if num_heads == 1:
            Wk_h, Wv_h = Wk, Wv
        else:
            # heads are contiguous lane slices after the init-time column regroup;
            # masking ONE operand per contraction is sufficient (product zeroes
            # the other heads' lanes), so Wq is left unmasked.
            msk = ((lane >= h * d_head) &
                   (lane < (h + 1) * d_head)).astype(jnp.float32)
            Wk_h, Wv_h = Wk * msk, Wv * msk

        # score[b,i,k] = sum_d Wk[b,i,d] * Wq[b,k,d]   (1/sqrt(d) folded into Wq)
        score = jnp.einsum('bid,bkd->bik', Wk_h.astype(cd), Wq.astype(cd),
                           preferred_element_type=jnp.float32)
        m = jnp.max(score, axis=-1, keepdims=True)
        e = jnp.exp(score - m)                               # f32 softmax
        denom = jnp.sum(e, axis=-1, keepdims=True)
        wts = e * pl.reciprocal(denom, approx=True)

        # ctx[b,k,d] = sum_i wts[b,i,k] * Wv[b,i,d]
        c_h = jnp.einsum('bik,bid->bkd', wts.astype(cd), Wv_h.astype(cd),
                         preferred_element_type=jnp.float32)
        ctx = c_h if ctx is None else ctx + c_h

    ctx2 = ctx.reshape(Bb * Sq, p_hid)
    out = jnp.dot(ctx2.astype(cd), w_ref[9, :p_hid, :p_out],
                  preferred_element_type=jnp.float32) + b_ref[9:10, :p_out]
    out_ref[...] = out.astype(out_ref.dtype)


# ---------------------------------------------------------------------------
# Param packing: pad to 128-lane multiples, regroup heads to contiguous lanes,
# fold the softmax scale into the last Wq layer, stack into (10,Pmax,Pmax)+(10,Pmax).
# ---------------------------------------------------------------------------
def prepare_params(params, hidden_size, num_heads, p_max, compute_dtype):
    (wk1, bk1, wk2, bk2, wk3, bk3,
     wq1, bq1, wq2, bq2, wq3, bq3,
     wv1, bv1, wv2, bv2, wv3, bv3,
     wo, bo) = params
    d = hidden_size // num_heads
    # torch: reshape(.., d, H)+permute => head h owns hidden cols {h, H+h, ...};
    # the final recombination is head-major (m = h*d + j). Regroup last-layer
    # output columns once so heads are contiguous lane slices (identity for H=1).
    perm = jnp.asarray([(m % d) * num_heads + (m // d)
                        for m in range(hidden_size)], dtype=jnp.int32)
    scale = 1.0 / math.sqrt(d)
    wk3, bk3 = wk3[:, perm], bk3[perm]
    wv3, bv3 = wv3[:, perm], bv3[perm]
    wq3, bq3 = wq3[:, perm] * scale, bq3[perm] * scale   # fold 1/sqrt(d_head)

    def padw(w):
        return jnp.zeros((p_max, p_max), jnp.float32).at[:w.shape[0], :w.shape[1]].set(w)

    def padb(b):
        return jnp.zeros((p_max,), jnp.float32).at[:b.shape[-1]].set(b.reshape(-1))

    ws = [wk1, wk2, wk3, wq1, wq2, wq3, wv1, wv2, wv3, wo]
    bs = [bk1, bk2, bk3, bq1, bq2, bq3, bv1, bv2, bv3, bo]
    wstack = jnp.stack([padw(w) for w in ws]).astype(compute_dtype)
    bstack = jnp.stack([padb(b) for b in bs])            # biases stay f32
    return wstack, bstack


# ---------------------------------------------------------------------------
# Wrapper
# ---------------------------------------------------------------------------
def mha_forward(KEY, VALUE, QUERY, params, *, hidden_size, num_heads=1,
                compute_dtype=jnp.float32, out_dtype=jnp.float32, block_b=None):
    B, Sk, Dk = KEY.shape
    Bv, Sv, Dv = VALUE.shape
    Bq, Sq, Dq = QUERY.shape
    assert B == Bv == Bq and Sv == Sk
    assert hidden_size % num_heads == 0
    d_head = hidden_size // num_heads

    # Decoupled lane paddings: inputs / hidden / output.
    p_in = _round_up(max(Dk, Dq, Dv, 1), 128)
    p_hid = _round_up(max(hidden_size, 1), 128)
    p_out = _round_up(max(Dv, 1), 128)
    p_max = max(p_in, p_hid, p_out)

    wstack, bstack = prepare_params(params, hidden_size, num_heads, p_max,
                                    compute_dtype)

    def pad_feat(x):                      # DMA inputs in compute_dtype (bf16 prod)
        return jnp.pad(x, ((0, 0), (0, 0),
                           (0, p_in - x.shape[-1]))).astype(compute_dtype)

    Kp, Vp, Qp = pad_feat(KEY), pad_feat(VALUE), pad_feat(QUERY)

    in_bytes = jnp.dtype(compute_dtype).itemsize
    w_bytes = jnp.dtype(compute_dtype).itemsize
    out_bytes = jnp.dtype(out_dtype).itemsize
    vmem_cap = _vmem_capacity_bytes()
    tc_per_chip = _tensorcores_per_chip()

    def vmem_need(bb, weight_bufs):
        wb = weight_bufs * (10 * p_max * p_max * w_bytes + 10 * p_max * 4)
        act = 2 * bb * (2 * Sk + Sq) * p_in * in_bytes       # double-buffered K/V/Q
        ob = 2 * bb * Sq * p_out * out_bytes                 # double-buffered out
        work = bb * ((2 * Sk + Sq) * p_hid + 2 * Sk * Sq
                     + Sq * p_hid + Sq * p_out) * 4          # f32 intermediates
        return wb + act + ob + 2 * work

    if block_b is None:
        max_s = max(Sk, Sq, 1)
        budget = int(0.6 * vmem_cap)
        block_b = max(1, min(B, 1024 // max_s))              # ~512-1024 row slabs
        while block_b > 1 and vmem_need(block_b, 1) > budget:
            block_b -= 1
        if tc_per_chip >= 2 and block_b == B and B > 1:
            block_b = max(1, B // 2)                         # megacore only on v7x
    block_b = max(1, min(block_b, B))
    while B % block_b:                    # must divide B (pathological for prime B)
        block_b -= 1
    # (8,128) sublane rule on the 2D output block when the grid has >1 step.
    if B // block_b > 1 and (block_b * Sq) % 8 != 0:
        cand = [bb for bb in range(block_b, 0, -1)
                if B % bb == 0 and (bb * Sq) % 8 == 0]
        block_b = cand[0] if cand else B
    grid = (B // block_b,)

    kern = functools.partial(mha_kernel, num_heads=num_heads, d_head=d_head,
                             p_in=p_in, p_hid=p_hid, p_out=p_out)

    def build_in_specs(single_buffer_consts):
        specs = [
            pl.BlockSpec((block_b, Sk, p_in), lambda b: (b, 0, 0)),   # KEY
            pl.BlockSpec((block_b, Sk, p_in), lambda b: (b, 0, 0)),   # VALUE
            pl.BlockSpec((block_b, Sq, p_in), lambda b: (b, 0, 0)),   # QUERY
        ]
        if single_buffer_consts:
            specs += [
                pl.BlockSpec(wstack.shape, lambda b: (0, 0, 0),
                             pipeline_mode=pl.Buffered(1)),           # weights
                pl.BlockSpec(bstack.shape, lambda b: (0, 0),
                             pipeline_mode=pl.Buffered(1)),           # biases
            ]
        else:
            specs += [
                pl.BlockSpec(wstack.shape, lambda b: (0, 0, 0)),
                pl.BlockSpec(bstack.shape, lambda b: (0, 0)),
            ]
        return specs

    def run(single_buffer_consts):
        need = vmem_need(block_b, 1 if single_buffer_consts else 2)
        vmem_limit = int(min(vmem_cap, max(2 * need, 32 << 20)))
        return pl.pallas_call(
            kern,
            out_shape=jax.ShapeDtypeStruct((B * Sq, p_out), out_dtype),
            grid_spec=pltpu.PrefetchScalarGridSpec(
                num_scalar_prefetch=0,
                grid=grid,
                in_specs=build_in_specs(single_buffer_consts),
                out_specs=pl.BlockSpec((block_b * Sq, p_out), lambda b: (b, 0)),
            ),
            compiler_params=pltpu.CompilerParams(
                dimension_semantics=("parallel",),
                vmem_limit_bytes=vmem_limit,
            ),
        )(Kp, Vp, Qp, wstack, bstack)

    try:
        out = run(True)          # single-buffer the constant weight/bias stacks
    except Exception:
        out = run(False)         # fallback: default double buffering

    return out.reshape(B, Sq, p_out)[:, :, :Dv]


# ---------------------------------------------------------------------------
# Deterministic parameter init (nn.Linear-style, weights stored as (in, out))
# ---------------------------------------------------------------------------
def init_params(key, input_k, input_q, input_v, hidden_size):
    def linear(k, fan_in, fan_out):
        kw, kb = jax.random.split(k)
        bound = 1.0 / math.sqrt(fan_in)
        w = jax.random.uniform(kw, (fan_in, fan_out), jnp.float32, -bound, bound)
        b = jax.random.uniform(kb, (fan_out,), jnp.float32, -bound, bound)
        return w, b

    dims = [(input_k, hidden_size), (hidden_size, hidden_size), (hidden_size, hidden_size),
            (input_q, hidden_size), (hidden_size, hidden_size), (hidden_size, hidden_size),
            (input_v, hidden_size), (hidden_size, hidden_size), (hidden_size, hidden_size),
            (hidden_size, input_v)]
    keys = jax.random.split(key, len(dims))
    params = []
    for k, (fi, fo) in zip(keys, dims):
        params.extend(linear(k, fi, fo))
    return params


# ---------------------------------------------------------------------------
# Plain-JAX reference (faithful transcription of the torch forward, eval mode)
# ---------------------------------------------------------------------------
def mha_ref(KEY, VALUE, QUERY, params, hidden_size, num_heads=1):
    (wk1, bk1, wk2, bk2, wk3, bk3,
     wq1, bq1, wq2, bq2, wq3, bq3,
     wv1, bv1, wv2, bv2, wv3, bv3,
     wo, bo) = params

    def mlp(x, w1, b1, w2, b2, w3, b3):
        h = jax.nn.relu(x @ w1 + b1)
        h = jax.nn.relu(h @ w2 + b2)
        return h @ w3 + b3

    Wk = mlp(KEY, wk1, bk1, wk2, bk2, wk3, bk3)
    Wq = mlp(QUERY, wq1, bq1, wq2, bq2, wq3, bq3)
    Wv = mlp(VALUE, wv1, bv1, wv2, bv2, wv3, bv3)

    B, Sk, _ = Wk.shape
    Sq = Wq.shape[1]
    H = num_heads
    d = hidden_size // H
    Wk = Wk.reshape(B, Sk, d, H).transpose(0, 3, 1, 2)
    Wq = Wq.reshape(B, Sq, d, H).transpose(0, 3, 1, 2)
    Wv = Wv.reshape(B, Sk, d, H).transpose(0, 3, 1, 2)
    score = jnp.einsum('bhij,bhkj->bhik', Wk, Wq) / math.sqrt(d)
    weights = jax.nn.softmax(score, axis=3)   # softmax over the query axis (faithful)
    context = jnp.einsum('bhik,bhij->bhkj', weights, Wv)
    context = context.transpose(0, 2, 1, 3).reshape(B, Sq, H * d)
    return context @ wo + bo


if __name__ == "__main__":
    # Small shapes consistent with the module:
    #   KEY: (B, Sk, input_k), VALUE: (B, Sk, input_v), QUERY: (B, Sq, input_q)
    B, Sk, Sq = 2, 8, 8
    input_k, input_q, input_v = 16, 16, 16
    hidden_size = 32
    num_heads = 1                 # module default

    root = jax.random.PRNGKey(0)
    k_key, k_val, k_qry, k_par = jax.random.split(root, 4)

    KEY = jax.random.normal(k_key, (B, Sk, input_k), jnp.float32)
    VALUE = jax.random.normal(k_val, (B, Sk, input_v), jnp.float32)
    QUERY = jax.random.normal(k_qry, (B, Sq, input_q), jnp.float32)

    params = init_params(k_par, input_k, input_q, input_v, hidden_size)

    out = mha_forward(KEY, VALUE, QUERY, params,
                      hidden_size=hidden_size, num_heads=num_heads,
                      compute_dtype=jnp.float32,   # jnp.bfloat16 on v6e/v7x prod
                      out_dtype=jnp.float32)
    out = jax.block_until_ready(out)

    ref = mha_ref(KEY, VALUE, QUERY, params, hidden_size, num_heads)
    assert out.shape == (B, Sq, input_v)
    assert jnp.allclose(out, ref, atol=1e-2, rtol=1e-2), "mismatch vs reference"

    print("KERNEL_OK")
</pallas_src>

<mosaic_0001>
module attributes {stable_mosaic.version = 11 : i64} {
  func.func @mha_kernel(%arg0: i32, %arg1: memref<2x8x128xf32, #tpu.memory_space<vmem>>, %arg2: memref<2x8x128xf32, #tpu.memory_space<vmem>>, %arg3: memref<2x8x128xf32, #tpu.memory_space<vmem>>, %arg4: memref<10x128x128xf32, #tpu.memory_space<vmem>>, %arg5: memref<10x128xf32, #tpu.memory_space<vmem>>, %arg6: memref<16x128xf32, #tpu.memory_space<vmem>>) attributes {dimension_semantics = [#tpu.dimension_semantics<parallel>], iteration_bounds = array<i64: 1>, scalar_prefetch = 0 : i64, scratch_operands = 0 : i64, tpu.core_type = #tpu.core_type<tc>, window_params = [{transform_indices = @transform_0, window_bounds = array<i64: 2, 8, 128>}, {transform_indices = @transform_1, window_bounds = array<i64: 2, 8, 128>}, {transform_indices = @transform_2, window_bounds = array<i64: 2, 8, 128>}, {pipeline_mode = #tpu.pipeline_mode<synchronous>, transform_indices = @transform_3, window_bounds = array<i64: 10, 128, 128>}, {pipeline_mode = #tpu.pipeline_mode<synchronous>, transform_indices = @transform_4, window_bounds = array<i64: 10, 128>}, {transform_indices = @transform_5, window_bounds = array<i64: 16, 128>}]} {
    %c0 = arith.constant 0 : index
    %c0_0 = arith.constant 0 : index
    %c0_1 = arith.constant 0 : index
    %0 = vector.load %arg1[%c0, %c0_0, %c0_1] : memref<2x8x128xf32, #tpu.memory_space<vmem>>, vector<2x8x128xf32>
    %1 = vector.shape_cast %0 : vector<2x8x128xf32> to vector<16x128xf32>
    %c0_2 = arith.constant 0 : index
    %c0_3 = arith.constant 0 : index
    %c0_4 = arith.constant 0 : index
    %2 = vector.load %arg2[%c0_2, %c0_3, %c0_4] : memref<2x8x128xf32, #tpu.memory_space<vmem>>, vector<2x8x128xf32>
    %3 = vector.shape_cast %2 : vector<2x8x128xf32> to vector<16x128xf32>
    %c0_5 = arith.constant 0 : index
    %c0_6 = arith.constant 0 : index
    %c0_7 = arith.constant 0 : index
    %4 = vector.load %arg3[%c0_5, %c0_6, %c0_7] : memref<2x8x128xf32, #tpu.memory_space<vmem>>, vector<2x8x128xf32>
    %5 = vector.shape_cast %4 : vector<2x8x128xf32> to vector<16x128xf32>
    %c0_8 = arith.constant 0 : index
    %c0_9 = arith.constant 0 : index
    %c0_10 = arith.constant 0 : index
    %6 = vector.load %arg4[%c0_8, %c0_9, %c0_10] : memref<10x128x128xf32, #tpu.memory_space<vmem>>, vector<1x128x128xf32>
    %7 = vector.shape_cast %6 : vector<1x128x128xf32> to vector<128x128xf32>
    %c0_11 = arith.constant 0 : index
    %c0_12 = arith.constant 0 : index
    %8 = vector.load %arg5[%c0_11, %c0_12] : memref<10x128xf32, #tpu.memory_space<vmem>>, vector<1x128xf32>
    %cst = arith.constant dense<0.000000e+00> : vector<16x128xf32>
    %9 = tpu.matmul %1, %7, %cst {dimension_numbers = #tpu.dot_dimension_numbers<[1], [0], [0], [1], [0, 0, 1, 1], [], []>} : vector<16x128xf32>, vector<128x128xf32>, vector<16x128xf32> -> vector<16x128xf32>
    %10 = vector.broadcast %8 : vector<1x128xf32> to vector<16x128xf32>
    %11 = arith.addf %9, %10 : vector<16x128xf32>
    %cst_13 = arith.constant 0.000000e+00 : f32
    %12 = vector.broadcast %cst_13 : f32 to vector<16x128xf32>
    %13 = arith.maximumf %11, %12 : vector<16x128xf32>
    %c1 = arith.constant 1 : index
    %c0_14 = arith.constant 0 : index
    %c0_15 = arith.constant 0 : index
    %14 = vector.load %arg4[%c1, %c0_14, %c0_15] : memref<10x128x128xf32, #tpu.memory_space<vmem>>, vector<1x128x128xf32>
    %15 = vector.shape_cast %14 : vector<1x128x128xf32> to vector<128x128xf32>
    %c1_16 = arith.constant 1 : index
    %c0_17 = arith.constant 0 : index
    %16 = vector.load %arg5[%c1_16, %c0_17] : memref<10x128xf32, #tpu.memory_space<vmem>>, vector<1x128xf32>
    %cst_18 = arith.constant dense<0.000000e+00> : vector<16x128xf32>
    %17 = tpu.matmul %13, %15, %cst_18 {dimension_numbers = #tpu.dot_dimension_numbers<[1], [0], [0], [1], [0, 0, 1, 1], [], []>} : vector<16x128xf32>, vector<128x128xf32>, vector<16x128xf32> -> vector<16x128xf32>
    %18 = vector.broadcast %16 : vector<1x128xf32> to vector<16x128xf32>
    %19 = arith.addf %17, %18 : vector<16x128xf32>
    %cst_19 = arith.constant 0.000000e+00 : f32
    %20 = vector.broadcast %cst_19 : f32 to vector<16x128xf32>
    %21 = arith.maximumf %19, %20 : vector<16x128xf32>
    %c2 = arith.constant 2 : index
    %c0_20 = arith.constant 0 : index
    %c0_21 = arith.constant 0 : index
    %22 = vector.load %arg4[%c2, %c0_20, %c0_21] : memref<10x128x128xf32, #tpu.memory_space<vmem>>, vector<1x128x128xf32>
    %23 = vector.shape_cast %22 : vector<1x128x128xf32> to vector<128x128xf32>
    %c2_22 = arith.constant 2 : index
    %c0_23 = arith.constant 0 : index
    %24 = vector.load %arg5[%c2_22, %c0_23] : memref<10x128xf32, #tpu.memory_space<vmem>>, vector<1x128xf32>
    %cst_24 = arith.constant dense<0.000000e+00> : vector<16x128xf32>
    %25 = tpu.matmul %21, %23, %cst_24 {dimension_numbers = #tpu.dot_dimension_numbers<[1], [0], [0], [1], [0, 0, 1, 1], [], []>} : vector<16x128xf32>, vector<128x128xf32>, vector<16x128xf32> -> vector<16x128xf32>
    %26 = vector.broadcast %24 : vector<1x128xf32> to vector<16x128xf32>
    %27 = arith.addf %25, %26 : vector<16x128xf32>
    %28 = vector.shape_cast %27 : vector<16x128xf32> to vector<2x8x128xf32>
    %c3 = arith.constant 3 : index
    %c0_25 = arith.constant 0 : index
    %c0_26 = arith.constant 0 : index
    %29 = vector.load %arg4[%c3, %c0_25, %c0_26] : memref<10x128x128xf32, #tpu.memory_space<vmem>>, vector<1x128x128xf32>
    %30 = vector.shape_cast %29 : vector<1x128x128xf32> to vector<128x128xf32>
    %c3_27 = arith.constant 3 : index
    %c0_28 = arith.constant 0 : index
    %31 = vector.load %arg5[%c3_27, %c0_28] : memref<10x128xf32, #tpu.memory_space<vmem>>, vector<1x128xf32>
    %cst_29 = arith.constant dense<0.000000e+00> : vector<16x128xf32>
    %32 = tpu.matmul %5, %30, %cst_29 {dimension_numbers = #tpu.dot_dimension_numbers<[1], [0], [0], [1], [0, 0, 1, 1], [], []>} : vector<16x128xf32>, vector<128x128xf32>, vector<16x128xf32> -> vector<16x128xf32>
    %33 = vector.broadcast %31 : vector<1x128xf32> to vector<16x128xf32>
    %34 = arith.addf %32, %33 : vector<16x128xf32>
    %cst_30 = arith.constant 0.000000e+00 : f32
    %35 = vector.broadcast %cst_30 : f32 to vector<16x128xf32>
    %36 = arith.maximumf %34, %35 : vector<16x128xf32>
    %c4 = arith.constant 4 : index
    %c0_31 = arith.constant 0 : index
    %c0_32 = arith.constant 0 : index
    %37 = vector.load %arg4[%c4, %c0_31, %c0_32] : memref<10x128x128xf32, #tpu.memory_space<vmem>>, vector<1x128x128xf32>
    %38 = vector.shape_cast %37 : vector<1x128x128xf32> to vector<128x128xf32>
    %c4_33 = arith.constant 4 : index
    %c0_34 = arith.constant 0 : index
    %39 = vector.load %arg5[%c4_33, %c0_34] : memref<10x128xf32, #tpu.memory_space<vmem>>, vector<1x128xf32>
    %cst_35 = arith.constant dense<0.000000e+00> : vector<16x128xf32>
    %40 = tpu.matmul %36, %38, %cst_35 {dimension_numbers = #tpu.dot_dimension_numbers<[1], [0], [0], [1], [0, 0, 1, 1], [], []>} : vector<16x128xf32>, vector<128x128xf32>, vector<16x128xf32> -> vector<16x128xf32>
    %41 = vector.broadcast %39 : vector<1x128xf32> to vector<16x128xf32>
    %42 = arith.addf %40, %41 : vector<16x128xf32>
    %cst_36 = arith.constant 0.000000e+00 : f32
    %43 = vector.broadcast %cst_36 : f32 to vector<16x128xf32>
    %44 = arith.maximumf %42, %43 : vector<16x128xf32>
    %c5 = arith.constant 5 : index
    %c0_37 = arith.constant 0 : index
    %c0_38 = arith.constant 0 : index
    %45 = vector.load %arg4[%c5, %c0_37, %c0_38] : memref<10x128x128xf32, #tpu.memory_space<vmem>>, vector<1x128x128xf32>
    %46 = vector.shape_cast %45 : vector<1x128x128xf32> to vector<128x128xf32>
    %c5_39 = arith.constant 5 : index
    %c0_40 = arith.constant 0 : index
    %47 = vector.load %arg5[%c5_39, %c0_40] : memref<10x128xf32, #tpu.memory_space<vmem>>, vector<1x128xf32>
    %cst_41 = arith.constant dense<0.000000e+00> : vector<16x128xf32>
    %48 = tpu.matmul %44, %46, %cst_41 {dimension_numbers = #tpu.dot_dimension_numbers<[1], [0], [0], [1], [0, 0, 1, 1], [], []>} : vector<16x128xf32>, vector<128x128xf32>, vector<16x128xf32> -> vector<16x128xf32>
    %49 = vector.broadcast %47 : vector<1x128xf32> to vector<16x128xf32>
    %50 = arith.addf %48, %49 : vector<16x128xf32>
    %51 = vector.shape_cast %50 : vector<16x128xf32> to vector<2x8x128xf32>
    %c6 = arith.constant 6 : index
    %c0_42 = arith.constant 0 : index
    %c0_43 = arith.constant 0 : index
    %52 = vector.load %arg4[%c6, %c0_42, %c0_43] : memref<10x128x128xf32, #tpu.memory_space<vmem>>, vector<1x128x128xf32>
    %53 = vector.shape_cast %52 : vector<1x128x128xf32> to vector<128x128xf32>
    %c6_44 = arith.constant 6 : index
    %c0_45 = arith.constant 0 : index
    %54 = vector.load %arg5[%c6_44, %c0_45] : memref<10x128xf32, #tpu.memory_space<vmem>>, vector<1x128xf32>
    %cst_46 = arith.constant dense<0.000000e+00> : vector<16x128xf32>
    %55 = tpu.matmul %3, %53, %cst_46 {dimension_numbers = #tpu.dot_dimension_numbers<[1], [0], [0], [1], [0, 0, 1, 1], [], []>} : vector<16x128xf32>, vector<128x128xf32>, vector<16x128xf32> -> vector<16x128xf32>
    %56 = vector.broadcast %54 : vector<1x128xf32> to vector<16x128xf32>
    %57 = arith.addf %55, %56 : vector<16x128xf32>
    %cst_47 = arith.constant 0.000000e+00 : f32
    %58 = vector.broadcast %cst_47 : f32 to vector<16x128xf32>
    %59 = arith.maximumf %57, %58 : vector<16x128xf32>
    %c7 = arith.constant 7 : index
    %c0_48 = arith.constant 0 : index
    %c0_49 = arith.constant 0 : index
    %60 = vector.load %arg4[%c7, %c0_48, %c0_49] : memref<10x128x128xf32, #tpu.memory_space<vmem>>, vector<1x128x128xf32>
    %61 = vector.shape_cast %60 : vector<1x128x128xf32> to vector<128x128xf32>
    %c7_50 = arith.constant 7 : index
    %c0_51 = arith.constant 0 : index
    %62 = vector.load %arg5[%c7_50, %c0_51] : memref<10x128xf32, #tpu.memory_space<vmem>>, vector<1x128xf32>
    %cst_52 = arith.constant dense<0.000000e+00> : vector<16x128xf32>
    %63 = tpu.matmul %59, %61, %cst_52 {dimension_numbers = #tpu.dot_dimension_numbers<[1], [0], [0], [1], [0, 0, 1, 1], [], []>} : vector<16x128xf32>, vector<128x128xf32>, vector<16x128xf32> -> vector<16x128xf32>
    %64 = vector.broadcast %62 : vector<1x128xf32> to vector<16x128xf32>
    %65 = arith.addf %63, %64 : vector<16x128xf32>
    %cst_53 = arith.constant 0.000000e+00 : f32
    %66 = vector.broadcast %cst_53 : f32 to vector<16x128xf32>
    %67 = arith.maximumf %65, %66 : vector<16x128xf32>
    %c8 = arith.constant 8 : index
    %c0_54 = arith.constant 0 : index
    %c0_55 = arith.constant 0 : index
    %68 = vector.load %arg4[%c8, %c0_54, %c0_55] : memref<10x128x128xf32, #tpu.memory_space<vmem>>, vector<1x128x128xf32>
    %69 = vector.shape_cast %68 : vector<1x128x128xf32> to vector<128x128xf32>
    %c8_56 = arith.constant 8 : index
    %c0_57 = arith.constant 0 : index
    %70 = vector.load %arg5[%c8_56, %c0_57] : memref<10x128xf32, #tpu.memory_space<vmem>>, vector<1x128xf32>
    %cst_58 = arith.constant dense<0.000000e+00> : vector<16x128xf32>
    %71 = tpu.matmul %67, %69, %cst_58 {dimension_numbers = #tpu.dot_dimension_numbers<[1], [0], [0], [1], [0, 0, 1, 1], [], []>} : vector<16x128xf32>, vector<128x128xf32>, vector<16x128xf32> -> vector<16x128xf32>
    %72 = vector.broadcast %70 : vector<1x128xf32> to vector<16x128xf32>
    %73 = arith.addf %71, %72 : vector<16x128xf32>
    %74 = vector.shape_cast %73 : vector<16x128xf32> to vector<2x8x128xf32>
    "tpu.trace_start"() <{level = 10 : i32, message = "bid,bkd->bik"}> : () -> ()
    %cst_59 = arith.constant dense<0.000000e+00> : vector<2x8x8xf32>
    %75 = tpu.matmul %28, %51, %cst_59 {dimension_numbers = #tpu.dot_dimension_numbers<[2], [2], [1], [1], [0, 0, 0, 1, 1, 1], [0], [0]>} : vector<2x8x128xf32>, vector<2x8x128xf32>, vector<2x8x8xf32> -> vector<2x8x8xf32>
    "tpu.trace_stop"() : () -> ()
    %cst_60 = arith.constant dense<0xFF800000> : vector<2x8xf32>
    %76 = vector.multi_reduction <maximumf>, %75, %cst_60 [2] : vector<2x8x8xf32> to vector<2x8xf32>
    %77 = vector.shape_cast %76 : vector<2x8xf32> to vector<2x8x1xf32>
    %78 = vector.broadcast %77 : vector<2x8x1xf32> to vector<2x8x8xf32>
    %79 = arith.subf %75, %78 : vector<2x8x8xf32>
    %80 = math.exp %79 : vector<2x8x8xf32>
    %cst_61 = arith.constant dense<0.000000e+00> : vector<2x8xf32>
    %81 = vector.multi_reduction <add>, %80, %cst_61 [2] : vector<2x8x8xf32> to vector<2x8xf32>
    %82 = vector.shape_cast %81 : vector<2x8xf32> to vector<2x8x1xf32>
    %83 = tpu.reciprocal %82 {approx = true} : vector<2x8x1xf32> -> vector<2x8x1xf32>
    %84 = vector.broadcast %83 : vector<2x8x1xf32> to vector<2x8x8xf32>
    %85 = arith.mulf %80, %84 : vector<2x8x8xf32>
    "tpu.trace_start"() <{level = 10 : i32, message = "bik,bid->bkd"}> : () -> ()
    %cst_62 = arith.constant dense<0.000000e+00> : vector<2x8x128xf32>
    %86 = tpu.matmul %85, %74, %cst_62 {dimension_numbers = #tpu.dot_dimension_numbers<[1], [1], [2], [2], [0, 0, 0, 2, 1, 2], [0], [0]>} : vector<2x8x8xf32>, vector<2x8x128xf32>, vector<2x8x128xf32> -> vector<2x8x128xf32>
    "tpu.trace_stop"() : () -> ()
    %87 = vector.shape_cast %86 : vector<2x8x128xf32> to vector<16x128xf32>
    %c9 = arith.constant 9 : index
    %c0_63 = arith.constant 0 : index
    %c0_64 = arith.constant 0 : index
    %88 = vector.load %arg4[%c9, %c0_63, %c0_64] : memref<10x128x128xf32, #tpu.memory_space<vmem>>, vector<1x128x128xf32>
    %89 = vector.shape_cast %88 : vector<1x128x128xf32> to vector<128x128xf32>
    %cst_65 = arith.constant dense<0.000000e+00> : vector<16x128xf32>
    %90 = tpu.matmul %87, %89, %cst_65 {dimension_numbers = #tpu.dot_dimension_numbers<[1], [0], [0], [1], [0, 0, 1, 1], [], []>} : vector<16x128xf32>, vector<128x128xf32>, vector<16x128xf32> -> vector<16x128xf32>
    %c9_66 = arith.constant 9 : index
    %c0_67 = arith.constant 0 : index
    %91 = vector.load %arg5[%c9_66, %c0_67] : memref<10x128xf32, #tpu.memory_space<vmem>>, vector<1x128xf32>
    %92 = vector.broadcast %91 : vector<1x128xf32> to vector<16x128xf32>
    %93 = arith.addf %90, %92 : vector<16x128xf32>
    %c0_68 = arith.constant 0 : index
    %c0_69 = arith.constant 0 : index
    %94 = vector.load %arg6[%c0_68, %c0_69] : memref<16x128xf32, #tpu.memory_space<vmem>>, vector<16x128xf32>
    tpu.vector_store %arg6[%c0_68, %c0_69], %93 {strides = array<i32>} : memref<16x128xf32, #tpu.memory_space<vmem>>, vector<16x128xf32>,
    return
  }
  func.func @transform_0(%arg0: i32) -> (i32, i32, i32) {
    %c0_i32 = arith.constant 0 : i32
    %c0_i32_0 = arith.constant 0 : i32
    %c0_i32_1 = arith.constant 0 : i32
    return %arg0, %c0_i32, %c0_i32_0 : i32, i32, i32
  }
  func.func @transform_1(%arg0: i32) -> (i32, i32, i32) {
    %c0_i32 = arith.constant 0 : i32
    %c0_i32_0 = arith.constant 0 : i32
    %c0_i32_1 = arith.constant 0 : i32
    return %arg0, %c0_i32, %c0_i32_0 : i32, i32, i32
  }
  func.func @transform_2(%arg0: i32) -> (i32, i32, i32) {
    %c0_i32 = arith.constant 0 : i32
    %c0_i32_0 = arith.constant 0 : i32
    %c0_i32_1 = arith.constant 0 : i32
    return %arg0, %c0_i32, %c0_i32_0 : i32, i32, i32
  }
  func.func @transform_3(%arg0: i32) -> (i32, i32, i32) {
    %c0_i32 = arith.constant 0 : i32
    %c0_i32_0 = arith.constant 0 : i32
    %c0_i32_1 = arith.constant 0 : i32
    %c0_i32_2 = arith.constant 0 : i32
    return %c0_i32, %c0_i32_0, %c0_i32_1 : i32, i32, i32
  }
  func.func @transform_4(%arg0: i32) -> (i32, i32) {
    %c0_i32 = arith.constant 0 : i32
    %c0_i32_0 = arith.constant 0 : i32
    %c0_i32_1 = arith.constant 0 : i32
    return %c0_i32, %c0_i32_0 : i32, i32
  }
  func.func @transform_5(%arg0: i32) -> (i32, i32) {
    %c0_i32 = arith.constant 0 : i32
    %c0_i32_0 = arith.constant 0 : i32
    return %arg0, %c0_i32 : i32, i32
  }
}

module attributes {stable_mosaic.version = 11 : i64} {
  func.func @mha_kernel(%arg0: i32, %arg1: memref<2x8x128xf32, #tpu.memory_space<vmem>>, %arg2: memref<2x8x128xf32, #tpu.memory_space<vmem>>, %arg3: memref<2x8x128xf32, #tpu.memory_space<vmem>>, %arg4: memref<10x128x128xf32, #tpu.memory_space<vmem>>, %arg5: memref<10x128xf32, #tpu.memory_space<vmem>>, %arg6: memref<16x128xf32, #tpu.memory_space<vmem>>) attributes {dimension_semantics = [#tpu.dimension_semantics<parallel>], iteration_bounds = array<i64: 1>, scalar_prefetch = 0 : i64, scratch_operands = 0 : i64, tpu.core_type = #tpu.core_type<tc>, window_params = [{transform_indices = @transform_0, window_bounds = array<i64: 2, 8, 128>}, {transform_indices = @transform_1, window_bounds = array<i64: 2, 8, 128>}, {transform_indices = @transform_2, window_bounds = array<i64: 2, 8, 128>}, {pipeline_mode = #tpu.pipeline_mode<synchronous>, transform_indices = @transform_3, window_bounds = array<i64: 10, 128, 128>}, {pipeline_mode = #tpu.pipeline_mode<synchronous>, transform_indices = @transform_4, window_bounds = array<i64: 10, 128>}, {transform_indices = @transform_5, window_bounds = array<i64: 16, 128>}]} {
    %c0 = arith.constant 0 : index
    %c0_0 = arith.constant 0 : index
    %c0_1 = arith.constant 0 : index
    %0 = vector.load %arg1[%c0, %c0_0, %c0_1] : memref<2x8x128xf32, #tpu.memory_space<vmem>>, vector<2x8x128xf32>
    %1 = vector.shape_cast %0 : vector<2x8x128xf32> to vector<16x128xf32>
    %c0_2 = arith.constant 0 : index
    %c0_3 = arith.constant 0 : index
    %c0_4 = arith.constant 0 : index
    %2 = vector.load %arg2[%c0_2, %c0_3, %c0_4] : memref<2x8x128xf32, #tpu.memory_space<vmem>>, vector<2x8x128xf32>
    %3 = vector.shape_cast %2 : vector<2x8x128xf32> to vector<16x128xf32>
    %c0_5 = arith.constant 0 : index
    %c0_6 = arith.constant 0 : index
    %c0_7 = arith.constant 0 : index
    %4 = vector.load %arg3[%c0_5, %c0_6, %c0_7] : memref<2x8x128xf32, #tpu.memory_space<vmem>>, vector<2x8x128xf32>
    %5 = vector.shape_cast %4 : vector<2x8x128xf32> to vector<16x128xf32>
    %c0_8 = arith.constant 0 : index
    %c0_9 = arith.constant 0 : index
    %c0_10 = arith.constant 0 : index
    %6 = vector.load %arg4[%c0_8, %c0_9, %c0_10] : memref<10x128x128xf32, #tpu.memory_space<vmem>>, vector<1x128x128xf32>
    %7 = vector.shape_cast %6 : vector<1x128x128xf32> to vector<128x128xf32>
    %c0_11 = arith.constant 0 : index
    %c0_12 = arith.constant 0 : index
    %8 = vector.load %arg5[%c0_11, %c0_12] : memref<10x128xf32, #tpu.memory_space<vmem>>, vector<1x128xf32>
    %cst = arith.constant dense<0.000000e+00> : vector<16x128xf32>
    %9 = tpu.matmul %1, %7, %cst {dimension_numbers = #tpu.dot_dimension_numbers<[1], [0], [0], [1], [0, 0, 1, 1], [], []>} : vector<16x128xf32>, vector<128x128xf32>, vector<16x128xf32> -> vector<16x128xf32>
    %10 = vector.broadcast %8 : vector<1x128xf32> to vector<16x128xf32>
    %11 = arith.addf %9, %10 : vector<16x128xf32>
    %cst_13 = arith.constant 0.000000e+00 : f32
    %12 = vector.broadcast %cst_13 : f32 to vector<16x128xf32>
    %13 = arith.maximumf %11, %12 : vector<16x128xf32>
    %c1 = arith.constant 1 : index
    %c0_14 = arith.constant 0 : index
    %c0_15 = arith.constant 0 : index
    %14 = vector.load %arg4[%c1, %c0_14, %c0_15] : memref<10x128x128xf32, #tpu.memory_space<vmem>>, vector<1x128x128xf32>
    %15 = vector.shape_cast %14 : vector<1x128x128xf32> to vector<128x128xf32>
    %c1_16 = arith.constant 1 : index
    %c0_17 = arith.constant 0 : index
    %16 = vector.load %arg5[%c1_16, %c0_17] : memref<10x128xf32, #tpu.memory_space<vmem>>, vector<1x128xf32>
    %cst_18 = arith.constant dense<0.000000e+00> : vector<16x128xf32>
    %17 = tpu.matmul %13, %15, %cst_18 {dimension_numbers = #tpu.dot_dimension_numbers<[1], [0], [0], [1], [0, 0, 1, 1], [], []>} : vector<16x128xf32>, vector<128x128xf32>, vector<16x128xf32> -> vector<16x128xf32>
    %18 = vector.broadcast %16 : vector<1x128xf32> to vector<16x128xf32>
    %19 = arith.addf %17, %18 : vector<16x128xf32>
    %cst_19 = arith.constant 0.000000e+00 : f32
    %20 = vector.broadcast %cst_19 : f32 to vector<16x128xf32>
    %21 = arith.maximumf %19, %20 : vector<16x128xf32>
    %c2 = arith.constant 2 : index
    %c0_20 = arith.constant 0 : index
    %c0_21 = arith.constant 0 : index
    %22 = vector.load %arg4[%c2, %c0_20, %c0_21] : memref<10x128x128xf32, #tpu.memory_space<vmem>>, vector<1x128x128xf32>
    %23 = vector.shape_cast %22 : vector<1x128x128xf32> to vector<128x128xf32>
    %c2_22 = arith.constant 2 : index
    %c0_23 = arith.constant 0 : index
    %24 = vector.load %arg5[%c2_22, %c0_23] : memref<10x128xf32, #tpu.memory_space<vmem>>, vector<1x128xf32>
    %cst_24 = arith.constant dense<0.000000e+00> : vector<16x128xf32>
    %25 = tpu.matmul %21, %23, %cst_24 {dimension_numbers = #tpu.dot_dimension_numbers<[1], [0], [0], [1], [0, 0, 1, 1], [], []>} : vector<16x128xf32>, vector<128x128xf32>, vector<16x128xf32> -> vector<16x128xf32>
    %26 = vector.broadcast %24 : vector<1x128xf32> to vector<16x128xf32>
    %27 = arith.addf %25, %26 : vector<16x128xf32>
    %28 = vector.shape_cast %27 : vector<16x128xf32> to vector<2x8x128xf32>
    %c3 = arith.constant 3 : index
    %c0_25 = arith.constant 0 : index
    %c0_26 = arith.constant 0 : index
    %29 = vector.load %arg4[%c3, %c0_25, %c0_26] : memref<10x128x128xf32, #tpu.memory_space<vmem>>, vector<1x128x128xf32>
    %30 = vector.shape_cast %29 : vector<1x128x128xf32> to vector<128x128xf32>
    %c3_27 = arith.constant 3 : index
    %c0_28 = arith.constant 0 : index
    %31 = vector.load %arg5[%c3_27, %c0_28] : memref<10x128xf32, #tpu.memory_space<vmem>>, vector<1x128xf32>
    %cst_29 = arith.constant dense<0.000000e+00> : vector<16x128xf32>
    %32 = tpu.matmul %5, %30, %cst_29 {dimension_numbers = #tpu.dot_dimension_numbers<[1], [0], [0], [1], [0, 0, 1, 1], [], []>} : vector<16x128xf32>, vector<128x128xf32>, vector<16x128xf32> -> vector<16x128xf32>
    %33 = vector.broadcast %31 : vector<1x128xf32> to vector<16x128xf32>
    %34 = arith.addf %32, %33 : vector<16x128xf32>
    %cst_30 = arith.constant 0.000000e+00 : f32
    %35 = vector.broadcast %cst_30 : f32 to vector<16x128xf32>
    %36 = arith.maximumf %34, %35 : vector<16x128xf32>
    %c4 = arith.constant 4 : index
    %c0_31 = arith.constant 0 : index
    %c0_32 = arith.constant 0 : index
    %37 = vector.load %arg4[%c4, %c0_31, %c0_32] : memref<10x128x128xf32, #tpu.memory_space<vmem>>, vector<1x128x128xf32>
    %38 = vector.shape_cast %37 : vector<1x128x128xf32> to vector<128x128xf32>
    %c4_33 = arith.constant 4 : index
    %c0_34 = arith.constant 0 : index
    %39 = vector.load %arg5[%c4_33, %c0_34] : memref<10x128xf32, #tpu.memory_space<vmem>>, vector<1x128xf32>
    %cst_35 = arith.constant dense<0.000000e+00> : vector<16x128xf32>
    %40 = tpu.matmul %36, %38, %cst_35 {dimension_numbers = #tpu.dot_dimension_numbers<[1], [0], [0], [1], [0, 0, 1, 1], [], []>} : vector<16x128xf32>, vector<128x128xf32>, vector<16x128xf32> -> vector<16x128xf32>
    %41 = vector.broadcast %39 : vector<1x128xf32> to vector<16x128xf32>
    %42 = arith.addf %40, %41 : vector<16x128xf32>
    %cst_36 = arith.constant 0.000000e+00 : f32
    %43 = vector.broadcast %cst_36 : f32 to vector<16x128xf32>
    %44 = arith.maximumf %42, %43 : vector<16x128xf32>
    %c5 = arith.constant 5 : index
    %c0_37 = arith.constant 0 : index
    %c0_38 = arith.constant 0 : index
    %45 = vector.load %arg4[%c5, %c0_37, %c0_38] : memref<10x128x128xf32, #tpu.memory_space<vmem>>, vector<1x128x128xf32>
    %46 = vector.shape_cast %45 : vector<1x128x128xf32> to vector<128x128xf32>
    %c5_39 = arith.constant 5 : index
    %c0_40 = arith.constant 0 : index
    %47 = vector.load %arg5[%c5_39, %c0_40] : memref<10x128xf32, #tpu.memory_space<vmem>>, vector<1x128xf32>
    %cst_41 = arith.constant dense<0.000000e+00> : vector<16x128xf32>
    %48 = tpu.matmul %44, %46, %cst_41 {dimension_numbers = #tpu.dot_dimension_numbers<[1], [0], [0], [1], [0, 0, 1, 1], [], []>} : vector<16x128xf32>, vector<128x128xf32>, vector<16x128xf32> -> vector<16x128xf32>
    %49 = vector.broadcast %47 : vector<1x128xf32> to vector<16x128xf32>
    %50 = arith.addf %48, %49 : vector<16x128xf32>
    %51 = vector.shape_cast %50 : vector<16x128xf32> to vector<2x8x128xf32>
    %c6 = arith.constant 6 : index
    %c0_42 = arith.constant 0 : index
    %c0_43 = arith.constant 0 : index
    %52 = vector.load %arg4[%c6, %c0_42, %c0_43] : memref<10x128x128xf32, #tpu.memory_space<vmem>>, vector<1x128x128xf32>
    %53 = vector.shape_cast %52 : vector<1x128x128xf32> to vector<128x128xf32>
    %c6_44 = arith.constant 6 : index
    %c0_45 = arith.constant 0 : index
    %54 = vector.load %arg5[%c6_44, %c0_45] : memref<10x128xf32, #tpu.memory_space<vmem>>, vector<1x128xf32>
    %cst_46 = arith.constant dense<0.000000e+00> : vector<16x128xf32>
    %55 = tpu.matmul %3, %53, %cst_46 {dimension_numbers = #tpu.dot_dimension_numbers<[1], [0], [0], [1], [0, 0, 1, 1], [], []>} : vector<16x128xf32>, vector<128x128xf32>, vector<16x128xf32> -> vector<16x128xf32>
    %56 = vector.broadcast %54 : vector<1x128xf32> to vector<16x128xf32>
    %57 = arith.addf %55, %56 : vector<16x128xf32>
    %cst_47 = arith.constant 0.000000e+00 : f32
    %58 = vector.broadcast %cst_47 : f32 to vector<16x128xf32>
    %59 = arith.maximumf %57, %58 : vector<16x128xf32>
    %c7 = arith.constant 7 : index
    %c0_48 = arith.constant 0 : index
    %c0_49 = arith.constant 0 : index
    %60 = vector.load %arg4[%c7, %c0_48, %c0_49] : memref<10x128x128xf32, #tpu.memory_space<vmem>>, vector<1x128x128xf32>
    %61 = vector.shape_cast %60 : vector<1x128x128xf32> to vector<128x128xf32>
    %c7_50 = arith.constant 7 : index
    %c0_51 = arith.constant 0 : index
    %62 = vector.load %arg5[%c7_50, %c0_51] : memref<10x128xf32, #tpu.memory_space<vmem>>, vector<1x128xf32>
    %cst_52 = arith.constant dense<0.000000e+00> : vector<16x128xf32>
    %63 = tpu.matmul %59, %61, %cst_52 {dimension_numbers = #tpu.dot_dimension_numbers<[1], [0], [0], [1], [0, 0, 1, 1], [], []>} : vector<16x128xf32>, vector<128x128xf32>, vector<16x128xf32> -> vector<16x128xf32>
    %64 = vector.broadcast %62 : vector<1x128xf32> to vector<16x128xf32>
    %65 = arith.addf %63, %64 : vector<16x128xf32>
    %cst_53 = arith.constant 0.000000e+00 : f32
    %66 = vector.broadcast %cst_53 : f32 to vector<16x128xf32>
    %67 = arith.maximumf %65, %66 : vector<16x128xf32>
    %c8 = arith.constant 8 : index
    %c0_54 = arith.constant 0 : index
    %c0_55 = arith.constant 0 : index
    %68 = vector.load %arg4[%c8, %c0_54, %c0_55] : memref<10x128x128xf32, #tpu.memory_space<vmem>>, vector<1x128x128xf32>
    %69 = vector.shape_cast %68 : vector<1x128x128xf32> to vector<128x128xf32>
    %c8_56 = arith.constant 8 : index
    %c0_57 = arith.constant 0 : index
    %70 = vector.load %arg5[%c8_56, %c0_57] : memref<10x128xf32, #tpu.memory_space<vmem>>, vector<1x128xf32>
    %cst_58 = arith.constant dense<0.000000e+00> : vector<16x128xf32>
    %71 = tpu.matmul %67, %69, %cst_58 {dimension_numbers = #tpu.dot_dimension_numbers<[1], [0], [0], [1], [0, 0, 1, 1], [], []>} : vector<16x128xf32>, vector<128x128xf32>, vector<16x128xf32> -> vector<16x128xf32>
    %72 = vector.broadcast %70 : vector<1x128xf32> to vector<16x128xf32>
    %73 = arith.addf %71, %72 : vector<16x128xf32>
    %74 = vector.shape_cast %73 : vector<16x128xf32> to vector<2x8x128xf32>
    "tpu.trace_start"() <{level = 10 : i32, message = "bid,bkd->bik"}> : () -> ()
    %cst_59 = arith.constant dense<0.000000e+00> : vector<2x8x8xf32>
    %75 = tpu.matmul %28, %51, %cst_59 {dimension_numbers = #tpu.dot_dimension_numbers<[2], [2], [1], [1], [0, 0, 0, 1, 1, 1], [0], [0]>} : vector<2x8x128xf32>, vector<2x8x128xf32>, vector<2x8x8xf32> -> vector<2x8x8xf32>
    "tpu.trace_stop"() : () -> ()
    %cst_60 = arith.constant dense<0xFF800000> : vector<2x8xf32>
    %76 = vector.multi_reduction <maximumf>, %75, %cst_60 [2] : vector<2x8x8xf32> to vector<2x8xf32>
    %77 = vector.shape_cast %76 : vector<2x8xf32> to vector<2x8x1xf32>
    %78 = vector.broadcast %77 : vector<2x8x1xf32> to vector<2x8x8xf32>
    %79 = arith.subf %75, %78 : vector<2x8x8xf32>
    %80 = math.exp %79 : vector<2x8x8xf32>
    %cst_61 = arith.constant dense<0.000000e+00> : vector<2x8xf32>
    %81 = vector.multi_reduction <add>, %80, %cst_61 [2] : vector<2x8x8xf32> to vector<2x8xf32>
    %82 = vector.shape_cast %81 : vector<2x8xf32> to vector<2x8x1xf32>
    %83 = tpu.reciprocal %82 {approx = true} : vector<2x8x1xf32> -> vector<2x8x1xf32>
    %84 = vector.broadcast %83 : vector<2x8x1xf32> to vector<2x8x8xf32>
    %85 = arith.mulf %80, %84 : vector<2x8x8xf32>
    "tpu.trace_start"() <{level = 10 : i32, message = "bik,bid->bkd"}> : () -> ()
    %cst_62 = arith.constant dense<0.000000e+00> : vector<2x8x128xf32>
    %86 = tpu.matmul %85, %74, %cst_62 {dimension_numbers = #tpu.dot_dimension_numbers<[1], [1], [2], [2], [0, 0, 0, 2, 1, 2], [0], [0]>} : vector<2x8x8xf32>, vector<2x8x128xf32>, vector<2x8x128xf32> -> vector<2x8x128xf32>
    "tpu.trace_stop"() : () -> ()
    %87 = vector.shape_cast %86 : vector<2x8x128xf32> to vector<16x128xf32>
    %c9 = arith.constant 9 : index
    %c0_63 = arith.constant 0 : index
    %c0_64 = arith.constant 0 : index
    %88 = vector.load %arg4[%c9, %c0_63, %c0_64] : memref<10x128x128xf32, #tpu.memory_space<vmem>>, vector<1x128x128xf32>
    %89 = vector.shape_cast %88 : vector<1x128x128xf32> to vector<128x128xf32>
    %cst_65 = arith.constant dense<0.000000e+00> : vector<16x128xf32>
    %90 = tpu.matmul %87, %89, %cst_65 {dimension_numbers = #tpu.dot_dimension_numbers<[1], [0], [0], [1], [0, 0, 1, 1], [], []>} : vector<16x128xf32>, vector<128x128xf32>, vector<16x128xf32> -> vector<16x128xf32>
    %c9_66 = arith.constant 9 : index
    %c0_67 = arith.constant 0 : index
    %91 = vector.load %arg5[%c9_66, %c0_67] : memref<10x128xf32, #tpu.memory_space<vmem>>, vector<1x128xf32>
    %92 = vector.broadcast %91 : vector<1x128xf32> to vector<16x128xf32>
    %93 = arith.addf %90, %92 : vector<16x128xf32>
    %c0_68 = arith.constant 0 : index
    %c0_69 = arith.constant 0 : index
    %94 = vector.load %arg6[%c0_68, %c0_69] : memref<16x128xf32, #tpu.memory_space<vmem>>, vector<16x128xf32>
    tpu.vector_store %arg6[%c0_68, %c0_69], %93 {strides = array<i32>} : memref<16x128xf32, #tpu.memory_space<vmem>>, vector<16x128xf32>,
    return
  }
  func.func @transform_0(%arg0: i32) -> (i32, i32, i32) {
    %c0_i32 = arith.constant 0 : i32
    %c0_i32_0 = arith.constant 0 : i32
    %c0_i32_1 = arith.constant 0 : i32
    return %arg0, %c0_i32, %c0_i32_0 : i32, i32, i32
  }
  func.func @transform_1(%arg0: i32) -> (i32, i32, i32) {
    %c0_i32 = arith.constant 0 : i32
    %c0_i32_0 = arith.constant 0 : i32
    %c0_i32_1 = arith.constant 0 : i32
    return %arg0, %c0_i32, %c0_i32_0 : i32, i32, i32
  }
  func.func @transform_2(%arg0: i32) -> (i32, i32, i32) {
    %c0_i32 = arith.constant 0 : i32
    %c0_i32_0 = arith.constant 0 : i32
    %c0_i32_1 = arith.constant 0 : i32
    return %arg0, %c0_i32, %c0_i32_0 : i32, i32, i32
  }
  func.func @transform_3(%arg0: i32) -> (i32, i32, i32) {
    %c0_i32 = arith.constant 0 : i32
    %c0_i32_0 = arith.constant 0 : i32
    %c0_i32_1 = arith.constant 0 : i32
    %c0_i32_2 = arith.constant 0 : i32
    return %c0_i32, %c0_i32_0, %c0_i32_1 : i32, i32, i32
  }
  func.func @transform_4(%arg0: i32) -> (i32, i32) {
    %c0_i32 = arith.constant 0 : i32
    %c0_i32_0 = arith.constant 0 : i32
    %c0_i32_1 = arith.constant 0 : i32
    return %c0_i32, %c0_i32_0 : i32, i32
  }
  func.func @transform_5(%arg0: i32) -> (i32, i32) {
    %c0_i32 = arith.constant 0 : i32
    %c0_i32_0 = arith.constant 0 : i32
    return %arg0, %c0_i32 : i32, i32
  }
}

</mosaic_0001>

<llo_original>
// kernel: tpu_custom_call.1
$region0: #{tpu_custom_call.1}
  #allocation0 [shape = 'u32[]', space=smem, size = 0x4, offset = 0x4, fixed_abs, tag = 'smem constant byte address 0x4 - core index']
  #allocation1 [shape = 'u32[144,128]{1,0:T(1,128)}', space=vmem, size = 0x12000, scoped, tag = 'internal scratch']
  %s0 = inlined_call_operand.hbm [shape: f32[2,8,128], index: 0, kind: input, shape index: {}]
  %s1 = inlined_call_operand.hbm [shape: f32[2,8,128], index: 1, kind: input, shape index: {}]
  %s2 = inlined_call_operand.hbm [shape: f32[2,8,128], index: 2, kind: input, shape index: {}]
  %s3 = inlined_call_operand.hbm [shape: f32[10,128,128], index: 3, kind: input, shape index: {}]
  %s4 = inlined_call_operand.hbm [shape: f32[10,128], index: 4, kind: input, shape index: {}]
  %s5 = inlined_call_operand.hbm [shape: f32[16,128], index: 5, kind: output, shape index: {}]
  %s6 = sld [smem:[#allocation0]]
  $region50: #{tpu_custom_call.1} parent=0
    _
  %s8 = ssub.s32 1, %s6
  %s9 = scalar_select 0, %s8, %s6
  $region1: #{tpu_custom_call.1} parent=0
    #allocation2 [shape = 'u8[8192]{0}', space=vmem, size = 0x2000, scoped, tag = 'input window, operand 0, single buffered']
    #allocation3 [shape = 's32[1]{0}', space=sflag, size = 0x4, scoped, tag = 'scoped memory for tpu_custom_call.1']
    #allocation4 [shape = 's32[1]{0}', space=sflag, size = 0x4, scoped, tag = 'scoped memory for tpu_custom_call.1']
    #allocation5 [shape = 'u8[8192]{0}', space=vmem, size = 0x2000, scoped, tag = 'input window, operand 1, single buffered']
    #allocation6 [shape = 's32[1]{0}', space=sflag, size = 0x4, scoped, tag = 'scoped memory for tpu_custom_call.1']
    #allocation7 [shape = 'u8[8192]{0}', space=vmem, size = 0x2000, scoped, tag = 'input window, operand 2, single buffered']
    #allocation8 [shape = 'u8[655360]{0}', space=vmem, size = 0xa0000, scoped, tag = 'input window, operand 3, single buffered']
    #allocation9 [shape = 's32[1]{0}', space=sflag, size = 0x4, scoped, tag = 'scoped memory for tpu_custom_call.1']
    #allocation10 [shape = 'u8[8192]{0}', space=vmem, size = 0x2000, scoped, tag = 'input window, operand 4, single buffered']
    #allocation11 [shape = 'u8[8192]{0}', space=vmem, size = 0x2000, scoped, tag = 'output window, operand 0, single buffered']
    %10 = vsyncpa [#allocation3], 0
    %11 = vsyncpa [#allocation6], 0
    %12 = vsyncpa [#allocation9], 0
    %13 = vsyncpa [#allocation4], 0
    // Predicated region
    $region2: #{tpu_custom_call.1} parent=1 // pred_check
      _
    $region3: #{tpu_custom_call.1} parent=1 // pred_check_branch
      %15 = sbr.rel (0) target = $region5
    $region4: #{tpu_custom_call.1} parent=1 // pred_region
      %s17 = ssub.s32 256, 256
      %18 = vsyncadd [#allocation3], %s17
      %s19 = sshll.u32 [#allocation2], 4
      %s20 = int_to_ptr.vmem [resolvable:$true] %s19
      %25 = dma.hbm_to_vmem [thread:$0]  %s0, 256, %s20, [#allocation3], 128, 128, 8
    $region5: #{tpu_custom_call.1} parent=1 // pred_fallthru
      _
    // Predicated region
    $region6: #{tpu_custom_call.1} parent=1 // pred_check
      _
    $region7: #{tpu_custom_call.1} parent=1 // pred_check_branch
      %27 = sbr.rel (0) target = $region9
    $region8: #{tpu_custom_call.1} parent=1 // pred_region
      %s29 = ssub.s32 256, 256
      %30 = vsyncadd [#allocation6], %s29
      %s31 = sshll.u32 [#allocation5], 4
      %s32 = int_to_ptr.vmem [resolvable:$true] %s31
      %37 = dma.hbm_to_vmem [thread:$0]  %s1, 256, %s32, [#allocation6], 128, 128, 8
    $region9: #{tpu_custom_call.1} parent=1 // pred_fallthru
      _
    // Predicated region
    $region10: #{tpu_custom_call.1} parent=1 // pred_check
      _
    $region11: #{tpu_custom_call.1} parent=1 // pred_check_branch
      %39 = sbr.rel (0) target = $region13
    $region12: #{tpu_custom_call.1} parent=1 // pred_region
      %s41 = ssub.s32 256, 256
      %42 = vsyncadd [#allocation6], %s41
      %s43 = sshll.u32 [#allocation7], 4
      %s44 = int_to_ptr.vmem [resolvable:$true] %s43
      %49 = dma.hbm_to_vmem [thread:$0]  %s2, 256, %s44, [#allocation6], 128, 128, 8
    $region13: #{tpu_custom_call.1} parent=1 // pred_fallthru
      _
    // Predicated region
    $region14: #{tpu_custom_call.1} parent=1 // pred_check
      _
    $region15: #{tpu_custom_call.1} parent=1 // pred_check_branch
      %51 = sbr.rel (0) target = $region17
    $region16: #{tpu_custom_call.1} parent=1 // pred_region
      %s53 = ssub.s32 20480, 20480
      %54 = vsyncadd [#allocation9], %s53
      %s55 = sshll.u32 [#allocation8], 4
      %s56 = int_to_ptr.vmem [resolvable:$true] %s55
      %61 = dma.hbm_to_vmem [thread:$0]  %s3, 20480, %s56, [#allocation9], 128, 128, 8
    $region17: #{tpu_custom_call.1} parent=1 // pred_fallthru
      _
    // Predicated region
    $region18: #{tpu_custom_call.1} parent=1 // pred_check
      _
    $region19: #{tpu_custom_call.1} parent=1 // pred_check_branch
      %63 = sbr.rel (0) target = $region21
    $region20: #{tpu_custom_call.1} parent=1 // pred_region
      %s65 = ssub.s32 256, 256
      %66 = vsyncadd [#allocation9], %s65
      %s67 = sshll.u32 [#allocation10], 4
      %s68 = int_to_ptr.vmem [resolvable:$true] %s67
      %73 = dma.hbm_to_vmem [thread:$0]  %s4, 256, %s68, [#allocation9], 128, 128, 8
    $region21: #{tpu_custom_call.1} parent=1 // pred_fallthru
      _
    // Predicated region
    $region22: #{tpu_custom_call.1} parent=1 // pred_check
      _
    $region23: #{tpu_custom_call.1} parent=1 // pred_check_branch
      %75 = sbr.rel (0) target = $region25
    $region24: #{tpu_custom_call.1} parent=1 // pred_region
      %76 = dma.done [#allocation3], 256
    $region25: #{tpu_custom_call.1} parent=1 // pred_fallthru
      _
    // Predicated region
    $region26: #{tpu_custom_call.1} parent=1 // pred_check
      _
    $region27: #{tpu_custom_call.1} parent=1 // pred_check_branch
      %78 = sbr.rel (0) target = $region29
    $region28: #{tpu_custom_call.1} parent=1 // pred_region
      %79 = dma.done [#allocation6], 256
    $region29: #{tpu_custom_call.1} parent=1 // pred_fallthru
      _
    // Predicated region
    $region30: #{tpu_custom_call.1} parent=1 // pred_check
      _
    $region31: #{tpu_custom_call.1} parent=1 // pred_check_branch
      %81 = sbr.rel (0) target = $region33
    $region32: #{tpu_custom_call.1} parent=1 // pred_region
      %82 = dma.done [#allocation6], 256
    $region33: #{tpu_custom_call.1} parent=1 // pred_fallthru
      _
    // Predicated region
    $region34: #{tpu_custom_call.1} parent=1 // pred_check
      _
    $region35: #{tpu_custom_call.1} parent=1 // pred_check_branch
      %84 = sbr.rel (0) target = $region37
    $region36: #{tpu_custom_call.1} parent=1 // pred_region
      %85 = dma.done [#allocation9], 20480
    $region37: #{tpu_custom_call.1} parent=1 // pred_fallthru
      _
    // Predicated region
    $region38: #{tpu_custom_call.1} parent=1 // pred_check
      _
    $region39: #{tpu_custom_call.1} parent=1 // pred_check_branch
      %87 = sbr.rel (0) target = $region41
    $region40: #{tpu_custom_call.1} parent=1 // pred_region
      %88 = dma.done [#allocation9], 256
    $region41: #{tpu_custom_call.1} parent=1 // pred_fallthru
      _
    %v89 = vld [vmem:[#allocation2] sm:$0xff]
    %v90 = vld [vmem:[#allocation2 + $0x8] sm:$0xff]
    %v91 = vld [vmem:[#allocation5] sm:$0xff]
    %v92 = vld [vmem:[#allocation5 + $0x8] sm:$0xff]
    %v93 = vld [vmem:[#allocation7] sm:$0xff]
    %v94 = vld [vmem:[#allocation7 + $0x8] sm:$0xff]
    %v95 = vld [vmem:[#allocation8] sm:$0xff]
    %v96 = vld [vmem:[#allocation8 + $0x8] sm:$0xff]
    %v97 = vld [vmem:[#allocation8 + $0x10] sm:$0xff]
    %v98 = vld [vmem:[#allocation8 + $0x18] sm:$0xff]
    %v99 = vld [vmem:[#allocation8 + $0x20] sm:$0xff]
    %v100 = vld [vmem:[#allocation8 + $0x28] sm:$0xff]
    %v101 = vld [vmem:[#allocation8 + $0x30] sm:$0xff]
    %v102 = vld [vmem:[#allocation8 + $0x38] sm:$0xff]
    %v103 = vld [vmem:[#allocation8 + $0x40] sm:$0xff]
    %v104 = vld [vmem:[#allocation8 + $0x48] sm:$0xff]
    %v105 = vld [vmem:[#allocation8 + $0x50] sm:$0xff]
    %v106 = vld [vmem:[#allocation8 + $0x58] sm:$0xff]
    %v107 = vld [vmem:[#allocation8 + $0x60] sm:$0xff]
    %v108 = vld [vmem:[#allocation8 + $0x68] sm:$0xff]
    %v109 = vld [vmem:[#allocation8 + $0x70] sm:$0xff]
    %v110 = vld [vmem:[#allocation8 + $0x78] sm:$0xff]
    %v111 = vld [vmem:[#allocation10] sm:$0x1]
    %v112 = vlaneseq
    %v113 = vshrl.u32 %v112, 7
    %v114 = vsub.s32 0, %v113
    %v115 = vrot.slane %v111, %v114
    %116 = vmatprep.subr.mxu0 0.0
    %117 = vmatpush1.msra.mxu0 %v95
    %118 = vmatprep.subr.mxu0 0.0
    %119 = vmatpush1.msra.mxu0 %v96
    %120 = vmatprep.subr.mxu0 0.0
    %121 = vmatpush1.msra.mxu0 %v97
    %122 = vmatprep.subr.mxu0 0.0
    %123 = vmatpush1.msra.mxu0 %v98
    %124 = vmatprep.subr.mxu0 0.0
    %125 = vmatpush1.msra.mxu0 %v99
    %126 = vmatprep.subr.mxu0 0.0
    %127 = vmatpush1.msra.mxu0 %v100
    %128 = vmatprep.subr.mxu0 0.0
    %129 = vmatpush1.msra.mxu0 %v101
    %130 = vmatprep.subr.mxu0 0.0
    %131 = vmatpush1.msra.mxu0 %v102
    %132 = vmatprep.subr.mxu0 0.0
    %133 = vmatpush1.msra.mxu0 %v103
    %134 = vmatprep.subr.mxu0 0.0
    %135 = vmatpush1.msra.mxu0 %v104
    %136 = vmatprep.subr.mxu0 0.0
    %137 = vmatpush1.msra.mxu0 %v105
    %138 = vmatprep.subr.mxu0 0.0
    %139 = vmatpush1.msra.mxu0 %v106
    %140 = vmatprep.subr.mxu0 0.0
    %141 = vmatpush1.msra.mxu0 %v107
    %142 = vmatprep.subr.mxu0 0.0
    %143 = vmatpush1.msra.mxu0 %v108
    %144 = vmatprep.subr.mxu0 0.0
    %145 = vmatpush1.msra.mxu0 %v109
    %146 = vmatprep.subr.mxu0 0.0
    %147 = vmatpush1.msra.mxu0 %v110
    %148 = vmatprep.subr.mxu0 0.0
    %149 = vmatpush1.msra.mxu0 0.0
    %150 = vmatprep.subr.mxu0 0.0
    %151 = vmatpush1.msra.mxu0 0.0
    %152 = vmatprep.subr.mxu0 0.0
    %153 = vmatpush1.msra.mxu0 0.0
    %154 = vmatprep.subr.mxu0 0.0
    %155 = vmatpush1.msra.mxu0 0.0
    %156 = vmatprep.subr.mxu0 0.0
    %157 = vmatpush1.msra.mxu0 0.0
    %158 = vmatprep.subr.mxu0 0.0
    %159 = vmatpush1.msra.mxu0 0.0
    %160 = vmatprep.subr.mxu0 0.0
    %161 = vmatpush1.msra.mxu0 0.0
    %162 = vmatprep.subr.mxu0 0.0
    %163 = vmatpush1.msra.mxu0 0.0
    %164 = vmatprep.subr.mxu0 0.0
    %165 = vmatpush1.msra.mxu0 0.0
    %166 = vmatprep.subr.mxu0 0.0
    %167 = vmatpush1.msra.mxu0 0.0
    %168 = vmatprep.subr.mxu0 0.0
    %169 = vmatpush1.msra.mxu0 0.0
    %170 = vmatprep.subr.mxu0 0.0
    %171 = vmatpush1.msra.mxu0 0.0
    %172 = vmatprep.subr.mxu0 0.0
    %173 = vmatpush1.msra.mxu0 0.0
    %174 = vmatprep.subr.mxu0 0.0
    %175 = vmatpush1.msra.mxu0 0.0
    %176 = vmatprep.subr.mxu0 0.0
    %177 = vmatpush1.msra.mxu0 0.0
    %178 = vmatprep.subr.mxu0 0.0
    %179 = vmatpush1.msra.mxu0 0.0
    %180 = vmatprep.mubr.f32.mxu0 0.0
    %181 = vmatmul.mubr.f32.gmra.mrb[0].mxu0 %v89
    %v182 = vpop.f32.mrb[0].mxu0
    %v183 = vadd.f32 %v115, %v182
    %v184 = vpop.f32.mrb[0].mxu0
    %185 = vmatprep.mubr.f32.mxu0 0.0
    %186 = vmatmul.mubr.f32.gmra.mrb[0].mxu0 %v90
    %v187 = vpop.f32.mrb[0].mxu0
    %v188 = vadd.f32 %v115, %v187
    %v189 = vpop.f32.mrb[0].mxu0
    %190 = vdwg.mxu0
    %v191 = vmax.f32 %v183, 0.0
    %v192 = vmax.f32 %v188, 0.0
    %s193 = scalar_lea.vmem [#allocation8], 128
    %v194 = vld [vmem:[%s193] sm:$0xff]
    %v195 = vld [vmem:[%s193 + $0x8] sm:$0xff]
    %v196 = vld [vmem:[%s193 + $0x10] sm:$0xff]
    %v197 = vld [vmem:[%s193 + $0x18] sm:$0xff]
    %v198 = vld [vmem:[%s193 + $0x20] sm:$0xff]
    %v199 = vld [vmem:[%s193 + $0x28] sm:$0xff]
    %v200 = vld [vmem:[%s193 + $0x30] sm:$0xff]
    %v201 = vld [vmem:[%s193 + $0x38] sm:$0xff]
    %v202 = vld [vmem:[%s193 + $0x40] sm:$0xff]
    %v203 = vld [vmem:[%s193 + $0x48] sm:$0xff]
    %v204 = vld [vmem:[%s193 + $0x50] sm:$0xff]
    %v205 = vld [vmem:[%s193 + $0x58] sm:$0xff]
    %v206 = vld [vmem:[%s193 + $0x60] sm:$0xff]
    %v207 = vld [vmem:[%s193 + $0x68] sm:$0xff]
    %v208 = vld [vmem:[%s193 + $0x70] sm:$0xff]
    %v209 = vld [vmem:[%s193 + $0x78] sm:$0xff]
    %v210 = vld [vmem:[#allocation10 + $0x1] sm:$0x1]
    %v211 = vlaneseq
    %v212 = vshrl.u32 %v211, 7
    %v213 = vsub.s32 0, %v212
    %v214 = vrot.slane %v210, %v213
    %215 = vmatprep.subr.mxu0 0.0
    %216 = vmatpush1.msra.mxu0 %v194
    %217 = vmatprep.subr.mxu0 0.0
    %218 = vmatpush1.msra.mxu0 %v195
    %219 = vmatprep.subr.mxu0 0.0
    %220 = vmatpush1.msra.mxu0 %v196
    %221 = vmatprep.subr.mxu0 0.0
    %222 = vmatpush1.msra.mxu0 %v197
    %223 = vmatprep.subr.mxu0 0.0
    %224 = vmatpush1.msra.mxu0 %v198
    %225 = vmatprep.subr.mxu0 0.0
    %226 = vmatpush1.msra.mxu0 %v199
    %227 = vmatprep.subr.mxu0 0.0
    %228 = vmatpush1.msra.mxu0 %v200
    %229 = vmatprep.subr.mxu0 0.0
    %230 = vmatpush1.msra.mxu0 %v201
    %231 = vmatprep.subr.mxu0 0.0
    %232 = vmatpush1.msra.mxu0 %v202
    %233 = vmatprep.subr.mxu0 0.0
    %234 = vmatpush1.msra.mxu0 %v203
    %235 = vmatprep.subr.mxu0 0.0
    %236 = vmatpush1.msra.mxu0 %v204
    %237 = vmatprep.subr.mxu0 0.0
    %238 = vmatpush1.msra.mxu0 %v205
    %239 = vmatprep.subr.mxu0 0.0
    %240 = vmatpush1.msra.mxu0 %v206
    %241 = vmatprep.subr.mxu0 0.0
    %242 = vmatpush1.msra.mxu0 %v207
    %243 = vmatprep.subr.mxu0 0.0
    %244 = vmatpush1.msra.mxu0 %v208
    %245 = vmatprep.subr.mxu0 0.0
    %246 = vmatpush1.msra.mxu0 %v209
    %247 = vmatprep.subr.mxu0 0.0
    %248 = vmatpush1.msra.mxu0 0.0
    %249 = vmatprep.subr.mxu0 0.0
    %250 = vmatpush1.msra.mxu0 0.0
    %251 = vmatprep.subr.mxu0 0.0
    %252 = vmatpush1.msra.mxu0 0.0
    %253 = vmatprep.subr.mxu0 0.0
    %254 = vmatpush1.msra.mxu0 0.0
    %255 = vmatprep.subr.mxu0 0.0
    %256 = vmatpush1.msra.mxu0 0.0
    %257 = vmatprep.subr.mxu0 0.0
    %258 = vmatpush1.msra.mxu0 0.0
    %259 = vmatprep.subr.mxu0 0.0
    %260 = vmatpush1.msra.mxu0 0.0
    %261 = vmatprep.subr.mxu0 0.0
    %262 = vmatpush1.msra.mxu0 0.0
    %263 = vmatprep.subr.mxu0 0.0
    %264 = vmatpush1.msra.mxu0 0.0
    %265 = vmatprep.subr.mxu0 0.0
    %266 = vmatpush1.msra.mxu0 0.0
    %267 = vmatprep.subr.mxu0 0.0
    %268 = vmatpush1.msra.mxu0 0.0
    %269 = vmatprep.subr.mxu0 0.0
    %270 = vmatpush1.msra.mxu0 0.0
    %271 = vmatprep.subr.mxu0 0.0
    %272 = vmatpush1.msra.mxu0 0.0
    %273 = vmatprep.subr.mxu0 0.0
    %274 = vmatpush1.msra.mxu0 0.0
    %275 = vmatprep.subr.mxu0 0.0
    %276 = vmatpush1.msra.mxu0 0.0
    %277 = vmatprep.subr.mxu0 0.0
    %278 = vmatpush1.msra.mxu0 0.0
    %279 = vmatprep.mubr.f32.mxu0 0.0
    %280 = vmatmul.mubr.f32.gmra.mrb[0].mxu0 %v191
    %v281 = vpop.f32.mrb[0].mxu0
    %v282 = vadd.f32 %v214, %v281
    %v283 = vpop.f32.mrb[0].mxu0
    %284 = vmatprep.mubr.f32.mxu0 0.0
    %285 = vmatmul.mubr.f32.gmra.mrb[0].mxu0 %v192
    %v286 = vpop.f32.mrb[0].mxu0
    %v287 = vadd.f32 %v214, %v286
    %v288 = vpop.f32.mrb[0].mxu0
    %289 = vdwg.mxu0
    %v290 = vmax.f32 %v282, 0.0
    %v291 = vmax.f32 %v287, 0.0
    %s292 = scalar_lea.vmem [#allocation8], 256
    %v293 = vld [vmem:[%s292] sm:$0xff]
    %v294 = vld [vmem:[%s292 + $0x8] sm:$0xff]
    %v295 = vld [vmem:[%s292 + $0x10] sm:$0xff]
    %v296 = vld [vmem:[%s292 + $0x18] sm:$0xff]
    %v297 = vld [vmem:[%s292 + $0x20] sm:$0xff]
    %v298 = vld [vmem:[%s292 + $0x28] sm:$0xff]
    %v299 = vld [vmem:[%s292 + $0x30] sm:$0xff]
    %v300 = vld [vmem:[%s292 + $0x38] sm:$0xff]
    %v301 = vld [vmem:[%s292 + $0x40] sm:$0xff]
    %v302 = vld [vmem:[%s292 + $0x48] sm:$0xff]
    %v303 = vld [vmem:[%s292 + $0x50] sm:$0xff]
    %v304 = vld [vmem:[%s292 + $0x58] sm:$0xff]
    %v305 = vld [vmem:[%s292 + $0x60] sm:$0xff]
    %v306 = vld [vmem:[%s292 + $0x68] sm:$0xff]
    %v307 = vld [vmem:[%s292 + $0x70] sm:$0xff]
    %v308 = vld [vmem:[%s292 + $0x78] sm:$0xff]
    %v309 = vld [vmem:[#allocation10 + $0x2] sm:$0x1]
    %v310 = vlaneseq
    %v311 = vshrl.u32 %v310, 7
    %v312 = vsub.s32 0, %v311
    %v313 = vrot.slane %v309, %v312
    %314 = vmatprep.subr.mxu0 0.0
    %315 = vmatpush1.msra.mxu0 %v293
    %316 = vmatprep.subr.mxu0 0.0
    %317 = vmatpush1.msra.mxu0 %v294
    %318 = vmatprep.subr.mxu0 0.0
    %319 = vmatpush1.msra.mxu0 %v295
    %320 = vmatprep.subr.mxu0 0.0
    %321 = vmatpush1.msra.mxu0 %v296
    %322 = vmatprep.subr.mxu0 0.0
    %323 = vmatpush1.msra.mxu0 %v297
    %324 = vmatprep.subr.mxu0 0.0
    %325 = vmatpush1.msra.mxu0 %v298
    %326 = vmatprep.subr.mxu0 0.0
    %327 = vmatpush1.msra.mxu0 %v299
    %328 = vmatprep.subr.mxu0 0.0
    %329 = vmatpush1.msra.mxu0 %v300
    %330 = vmatprep.subr.mxu0 0.0
    %331 = vmatpush1.msra.mxu0 %v301
    %332 = vmatprep.subr.mxu0 0.0
    %333 = vmatpush1.msra.mxu0 %v302
    %334 = vmatprep.subr.mxu0 0.0
    %335 = vmatpush1.msra.mxu0 %v303
    %336 = vmatprep.subr.mxu0 0.0
    %337 = vmatpush1.msra.mxu0 %v304
    %338 = vmatprep.subr.mxu0 0.0
    %339 = vmatpush1.msra.mxu0 %v305
    %340 = vmatprep.subr.mxu0 0.0
    %341 = vmatpush1.msra.mxu0 %v306
    %342 = vmatprep.subr.mxu0 0.0
    %343 = vmatpush1.msra.mxu0 %v307
    %344 = vmatprep.subr.mxu0 0.0
    %345 = vmatpush1.msra.mxu0 %v308
    %346 = vmatprep.subr.mxu0 0.0
    %347 = vmatpush1.msra.mxu0 0.0
    %348 = vmatprep.subr.mxu0 0.0
    %349 = vmatpush1.msra.mxu0 0.0
    %350 = vmatprep.subr.mxu0 0.0
    %351 = vmatpush1.msra.mxu0 0.0
    %352 = vmatprep.subr.mxu0 0.0
    %353 = vmatpush1.msra.mxu0 0.0
    %354 = vmatprep.subr.mxu0 0.0
    %355 = vmatpush1.msra.mxu0 0.0
    %356 = vmatprep.subr.mxu0 0.0
    %357 = vmatpush1.msra.mxu0 0.0
    %358 = vmatprep.subr.mxu0 0.0
    %359 = vmatpush1.msra.mxu0 0.0
    %360 = vmatprep.subr.mxu0 0.0
    %361 = vmatpush1.msra.mxu0 0.0
    %362 = vmatprep.subr.mxu0 0.0
    %363 = vmatpush1.msra.mxu0 0.0
    %364 = vmatprep.subr.mxu0 0.0
    %365 = vmatpush1.msra.mxu0 0.0
    %366 = vmatprep.subr.mxu0 0.0
    %367 = vmatpush1.msra.mxu0 0.0
    %368 = vmatprep.subr.mxu0 0.0
    %369 = vmatpush1.msra.mxu0 0.0
    %370 = vmatprep.subr.mxu0 0.0
    %371 = vmatpush1.msra.mxu0 0.0
    %372 = vmatprep.subr.mxu0 0.0
    %373 = vmatpush1.msra.mxu0 0.0
    %374 = vmatprep.subr.mxu0 0.0
    %375 = vmatpush1.msra.mxu0 0.0
    %376 = vmatprep.subr.mxu0 0.0
    %377 = vmatpush1.msra.mxu0 0.0
    %378 = vmatprep.mubr.f32.mxu0 0.0
    %379 = vmatmul.mubr.f32.gmra.mrb[0].mxu0 %v290
    %v380 = vpop.f32.mrb[0].mxu0
    %v381 = vadd.f32 %v313, %v380
    %v382 = vpop.f32.mrb[0].mxu0
    %383 = vmatprep.mubr.f32.mxu0 0.0
    %384 = vmatmul.mubr.f32.gmra.mrb[0].mxu0 %v291
    %v385 = vpop.f32.mrb[0].mxu0
    %v386 = vadd.f32 %v313, %v385
    %v387 = vpop.f32.mrb[0].mxu0
    %388 = vdwg.mxu0
    %s389 = scalar_lea.vmem [#allocation8], 384
    %v390 = vld [vmem:[%s389] sm:$0xff]
    %v391 = vld [vmem:[%s389 + $0x8] sm:$0xff]
    %v392 = vld [vmem:[%s389 + $0x10] sm:$0xff]
    %v393 = vld [vmem:[%s389 + $0x18] sm:$0xff]
    %v394 = vld [vmem:[%s389 + $0x20] sm:$0xff]
    %v395 = vld [vmem:[%s389 + $0x28] sm:$0xff]
    %v396 = vld [vmem:[%s389 + $0x30] sm:$0xff]
    %v397 = vld [vmem:[%s389 + $0x38] sm:$0xff]
    %v398 = vld [vmem:[%s389 + $0x40] sm:$0xff]
    %v399 = vld [vmem:[%s389 + $0x48] sm:$0xff]
    %v400 = vld [vmem:[%s389 + $0x50] sm:$0xff]
    %v401 = vld [vmem:[%s389 + $0x58] sm:$0xff]
    %v402 = vld [vmem:[%s389 + $0x60] sm:$0xff]
    %v403 = vld [vmem:[%s389 + $0x68] sm:$0xff]
    %v404 = vld [vmem:[%s389 + $0x70] sm:$0xff]
    %v405 = vld [vmem:[%s389 + $0x78] sm:$0xff]
    %v406 = vld [vmem:[#allocation10 + $0x3] sm:$0x1]
    %v407 = vlaneseq
    %v408 = vshrl.u32 %v407, 7
    %v409 = vsub.s32 0, %v408
    %v410 = vrot.slane %v406, %v409
    %411 = vmatprep.subr.mxu0 0.0
    %412 = vmatpush1.msra.mxu0 %v390
    %413 = vmatprep.subr.mxu0 0.0
    %414 = vmatpush1.msra.mxu0 %v391
    %415 = vmatprep.subr.mxu0 0.0
    %416 = vmatpush1.msra.mxu0 %v392
    %417 = vmatprep.subr.mxu0 0.0
    %418 = vmatpush1.msra.mxu0 %v393
    %419 = vmatprep.subr.mxu0 0.0
    %420 = vmatpush1.msra.mxu0 %v394
    %421 = vmatprep.subr.mxu0 0.0
    %422 = vmatpush1.msra.mxu0 %v395
    %423 = vmatprep.subr.mxu0 0.0
    %424 = vmatpush1.msra.mxu0 %v396
    %425 = vmatprep.subr.mxu0 0.0
    %426 = vmatpush1.msra.mxu0 %v397
    %427 = vmatprep.subr.mxu0 0.0
    %428 = vmatpush1.msra.mxu0 %v398
    %429 = vmatprep.subr.mxu0 0.0
    %430 = vmatpush1.msra.mxu0 %v399
    %431 = vmatprep.subr.mxu0 0.0
    %432 = vmatpush1.msra.mxu0 %v400
    %433 = vmatprep.subr.mxu0 0.0
    %434 = vmatpush1.msra.mxu0 %v401
    %435 = vmatprep.subr.mxu0 0.0
    %436 = vmatpush1.msra.mxu0 %v402
    %437 = vmatprep.subr.mxu0 0.0
    %438 = vmatpush1.msra.mxu0 %v403
    %439 = vmatprep.subr.mxu0 0.0
    %440 = vmatpush1.msra.mxu0 %v404
    %441 = vmatprep.subr.mxu0 0.0
    %442 = vmatpush1.msra.mxu0 %v405
    %443 = vmatprep.subr.mxu0 0.0
    %444 = vmatpush1.msra.mxu0 0.0
    %445 = vmatprep.subr.mxu0 0.0
    %446 = vmatpush1.msra.mxu0 0.0
    %447 = vmatprep.subr.mxu0 0.0
    %448 = vmatpush1.msra.mxu0 0.0
    %449 = vmatprep.subr.mxu0 0.0
    %450 = vmatpush1.msra.mxu0 0.0
    %451 = vmatprep.subr.mxu0 0.0
    %452 = vmatpush1.msra.mxu0 0.0
    %453 = vmatprep.subr.mxu0 0.0
    %454 = vmatpush1.msra.mxu0 0.0
    %455 = vmatprep.subr.mxu0 0.0
    %456 = vmatpush1.msra.mxu0 0.0
    %457 = vmatprep.subr.mxu0 0.0
    %458 = vmatpush1.msra.mxu0 0.0
    %459 = vmatprep.subr.mxu0 0.0
    %460 = vmatpush1.msra.mxu0 0.0
    %461 = vmatprep.subr.mxu0 0.0
    %462 = vmatpush1.msra.mxu0 0.0
    %463 = vmatprep.subr.mxu0 0.0
    %464 = vmatpush1.msra.mxu0 0.0
    %465 = vmatprep.subr.mxu0 0.0
    %466 = vmatpush1.msra.mxu0 0.0
    %467 = vmatprep.subr.mxu0 0.0
    %468 = vmatpush1.msra.mxu0 0.0
    %469 = vmatprep.subr.mxu0 0.0
    %470 = vmatpush1.msra.mxu0 0.0
    %471 = vmatprep.subr.mxu0 0.0
    %472 = vmatpush1.msra.mxu0 0.0
    %473 = vmatprep.subr.mxu0 0.0
    %474 = vmatpush1.msra.mxu0 0.0
    %475 = vmatprep.mubr.f32.mxu0 0.0
    %476 = vmatmul.mubr.f32.gmra.mrb[0].mxu0 %v93
    %v477 = vpop.f32.mrb[0].mxu0
    %v478 = vadd.f32 %v410, %v477
    %v479 = vpop.f32.mrb[0].mxu0
    %480 = vmatprep.mubr.f32.mxu0 0.0
    %481 = vmatmul.mubr.f32.gmra.mrb[0].mxu0 %v94
    %v482 = vpop.f32.mrb[0].mxu0
    %v483 = vadd.f32 %v410, %v482
    %v484 = vpop.f32.mrb[0].mxu0
    %485 = vdwg.mxu0
    %v486 = vmax.f32 %v478, 0.0
    %v487 = vmax.f32 %v483, 0.0
    %s488 = scalar_lea.vmem [#allocation8], 512
    %v489 = vld [vmem:[%s488] sm:$0xff]
    %v490 = vld [vmem:[%s488 + $0x8] sm:$0xff]
    %v491 = vld [vmem:[%s488 + $0x10] sm:$0xff]
    %v492 = vld [vmem:[%s488 + $0x18] sm:$0xff]
    %v493 = vld [vmem:[%s488 + $0x20] sm:$0xff]
    %v494 = vld [vmem:[%s488 + $0x28] sm:$0xff]
    %v495 = vld [vmem:[%s488 + $0x30] sm:$0xff]
    %v496 = vld [vmem:[%s488 + $0x38] sm:$0xff]
    %v497 = vld [vmem:[%s488 + $0x40] sm:$0xff]
    %v498 = vld [vmem:[%s488 + $0x48] sm:$0xff]
    %v499 = vld [vmem:[%s488 + $0x50] sm:$0xff]
    %v500 = vld [vmem:[%s488 + $0x58] sm:$0xff]
    %v501 = vld [vmem:[%s488 + $0x60] sm:$0xff]
    %v502 = vld [vmem:[%s488 + $0x68] sm:$0xff]
    %v503 = vld [vmem:[%s488 + $0x70] sm:$0xff]
    %v504 = vld [vmem:[%s488 + $0x78] sm:$0xff]
    %v505 = vld [vmem:[#allocation10 + $0x4] sm:$0x1]
    %v506 = vlaneseq
    %v507 = vshrl.u32 %v506, 7
    %v508 = vsub.s32 0, %v507
    %v509 = vrot.slane %v505, %v508
    %510 = vmatprep.subr.mxu0 0.0
    %511 = vmatpush1.msra.mxu0 %v489
    %512 = vmatprep.subr.mxu0 0.0
    %513 = vmatpush1.msra.mxu0 %v490
    %514 = vmatprep.subr.mxu0 0.0
    %515 = vmatpush1.msra.mxu0 %v491
    %516 = vmatprep.subr.mxu0 0.0
    %517 = vmatpush1.msra.mxu0 %v492
    %518 = vmatprep.subr.mxu0 0.0
    %519 = vmatpush1.msra.mxu0 %v493
    %520 = vmatprep.subr.mxu0 0.0
    %521 = vmatpush1.msra.mxu0 %v494
    %522 = vmatprep.subr.mxu0 0.0
    %523 = vmatpush1.msra.mxu0 %v495
    %524 = vmatprep.subr.mxu0 0.0
    %525 = vmatpush1.msra.mxu0 %v496
    %526 = vmatprep.subr.mxu0 0.0
    %527 = vmatpush1.msra.mxu0 %v497
    %528 = vmatprep.subr.mxu0 0.0
    %529 = vmatpush1.msra.mxu0 %v498
    %530 = vmatprep.subr.mxu0 0.0
    %531 = vmatpush1.msra.mxu0 %v499
    %532 = vmatprep.subr.mxu0 0.0
    %533 = vmatpush1.msra.mxu0 %v500
    %534 = vmatprep.subr.mxu0 0.0
    %535 = vmatpush1.msra.mxu0 %v501
    %536 = vmatprep.subr.mxu0 0.0
    %537 = vmatpush1.msra.mxu0 %v502
    %538 = vmatprep.subr.mxu0 0.0
    %539 = vmatpush1.msra.mxu0 %v503
    %540 = vmatprep.subr.mxu0 0.0
    %541 = vmatpush1.msra.mxu0 %v504
    %542 = vmatprep.subr.mxu0 0.0
    %543 = vmatpush1.msra.mxu0 0.0
    %544 = vmatprep.subr.mxu0 0.0
    %545 = vmatpush1.msra.mxu0 0.0
    %546 = vmatprep.subr.mxu0 0.0
    %547 = vmatpush1.msra.mxu0 0.0
    %548 = vmatprep.subr.mxu0 0.0
    %549 = vmatpush1.msra.mxu0 0.0
    %550 = vmatprep.subr.mxu0 0.0
    %551 = vmatpush1.msra.mxu0 0.0
    %552 = vmatprep.subr.mxu0 0.0
    %553 = vmatpush1.msra.mxu0 0.0
    %554 = vmatprep.subr.mxu0 0.0
    %555 = vmatpush1.msra.mxu0 0.0
    %556 = vmatprep.subr.mxu0 0.0
    %557 = vmatpush1.msra.mxu0 0.0
    %558 = vmatprep.subr.mxu0 0.0
    %559 = vmatpush1.msra.mxu0 0.0
    %560 = vmatprep.subr.mxu0 0.0
    %561 = vmatpush1.msra.mxu0 0.0
    %562 = vmatprep.subr.mxu0 0.0
    %563 = vmatpush1.msra.mxu0 0.0
    %564 = vmatprep.subr.mxu0 0.0
    %565 = vmatpush1.msra.mxu0 0.0
    %566 = vmatprep.subr.mxu0 0.0
    %567 = vmatpush1.msra.mxu0 0.0
    %568 = vmatprep.subr.mxu0 0.0
    %569 = vmatpush1.msra.mxu0 0.0
    %570 = vmatprep.subr.mxu0 0.0
    %571 = vmatpush1.msra.mxu0 0.0
    %572 = vmatprep.subr.mxu0 0.0
    %573 = vmatpush1.msra.mxu0 0.0
    %574 = vmatprep.mubr.f32.mxu0 0.0
    %575 = vmatmul.mubr.f32.gmra.mrb[0].mxu0 %v486
    %v576 = vpop.f32.mrb[0].mxu0
    %v577 = vadd.f32 %v509, %v576
    %v578 = vpop.f32.mrb[0].mxu0
    %579 = vmatprep.mubr.f32.mxu0 0.0
    %580 = vmatmul.mubr.f32.gmra.mrb[0].mxu0 %v487
    %v581 = vpop.f32.mrb[0].mxu0
    %v582 = vadd.f32 %v509, %v581
    %v583 = vpop.f32.mrb[0].mxu0
    %584 = vdwg.mxu0
    %v585 = vmax.f32 %v577, 0.0
    %v586 = vmax.f32 %v582, 0.0
    %s587 = scalar_lea.vmem [#allocation8], 640
    %v588 = vld [vmem:[%s587] sm:$0xff]
    %v589 = vld [vmem:[%s587 + $0x8] sm:$0xff]
    %v590 = vld [vmem:[%s587 + $0x10] sm:$0xff]
    %v591 = vld [vmem:[%s587 + $0x18] sm:$0xff]
    %v592 = vld [vmem:[%s587 + $0x20] sm:$0xff]
    %v593 = vld [vmem:[%s587 + $0x28] sm:$0xff]
    %v594 = vld [vmem:[%s587 + $0x30] sm:$0xff]
    %v595 = vld [vmem:[%s587 + $0x38] sm:$0xff]
    %v596 = vld [vmem:[%s587 + $0x40] sm:$0xff]
    %v597 = vld [vmem:[%s587 + $0x48] sm:$0xff]
    %v598 = vld [vmem:[%s587 + $0x50] sm:$0xff]
    %v599 = vld [vmem:[%s587 + $0x58] sm:$0xff]
    %v600 = vld [vmem:[%s587 + $0x60] sm:$0xff]
    %v601 = vld [vmem:[%s587 + $0x68] sm:$0xff]
    %v602 = vld [vmem:[%s587 + $0x70] sm:$0xff]
    %v603 = vld [vmem:[%s587 + $0x78] sm:$0xff]
    %v604 = vld [vmem:[#allocation10 + $0x5] sm:$0x1]
    %v605 = vlaneseq
    %v606 = vshrl.u32 %v605, 7
    %v607 = vsub.s32 0, %v606
    %v608 = vrot.slane %v604, %v607
    %609 = vmatprep.subr.mxu0 0.0
    %610 = vmatpush1.msra.mxu0 %v588
    %611 = vmatprep.subr.mxu0 0.0
    %612 = vmatpush1.msra.mxu0 %v589
    %613 = vmatprep.subr.mxu0 0.0
    %614 = vmatpush1.msra.mxu0 %v590
    %615 = vmatprep.subr.mxu0 0.0
    %616 = vmatpush1.msra.mxu0 %v591
    %617 = vmatprep.subr.mxu0 0.0
    %618 = vmatpush1.msra.mxu0 %v592
    %619 = vmatprep.subr.mxu0 0.0
    %620 = vmatpush1.msra.mxu0 %v593
    %621 = vmatprep.subr.mxu0 0.0
    %622 = vmatpush1.msra.mxu0 %v594
    %623 = vmatprep.subr.mxu0 0.0
    %624 = vmatpush1.msra.mxu0 %v595
    %625 = vmatprep.subr.mxu0 0.0
    %626 = vmatpush1.msra.mxu0 %v596
    %627 = vmatprep.subr.mxu0 0.0
    %628 = vmatpush1.msra.mxu0 %v597
    %629 = vmatprep.subr.mxu0 0.0
    %630 = vmatpush1.msra.mxu0 %v598
    %631 = vmatprep.subr.mxu0 0.0
    %632 = vmatpush1.msra.mxu0 %v599
    %633 = vmatprep.subr.mxu0 0.0
    %634 = vmatpush1.msra.mxu0 %v600
    %635 = vmatprep.subr.mxu0 0.0
    %636 = vmatpush1.msra.mxu0 %v601
    %637 = vmatprep.subr.mxu0 0.0
    %638 = vmatpush1.msra.mxu0 %v602
    %639 = vmatprep.subr.mxu0 0.0
    %640 = vmatpush1.msra.mxu0 %v603
    %641 = vmatprep.subr.mxu0 0.0
    %642 = vmatpush1.msra.mxu0 0.0
    %643 = vmatprep.subr.mxu0 0.0
    %644 = vmatpush1.msra.mxu0 0.0
    %645 = vmatprep.subr.mxu0 0.0
    %646 = vmatpush1.msra.mxu0 0.0
    %647 = vmatprep.subr.mxu0 0.0
    %648 = vmatpush1.msra.mxu0 0.0
    %649 = vmatprep.subr.mxu0 0.0
    %650 = vmatpush1.msra.mxu0 0.0
    %651 = vmatprep.subr.mxu0 0.0
    %652 = vmatpush1.msra.mxu0 0.0
    %653 = vmatprep.subr.mxu0 0.0
    %654 = vmatpush1.msra.mxu0 0.0
    %655 = vmatprep.subr.mxu0 0.0
    %656 = vmatpush1.msra.mxu0 0.0
    %657 = vmatprep.subr.mxu0 0.0
    %658 = vmatpush1.msra.mxu0 0.0
    %659 = vmatprep.subr.mxu0 0.0
    %660 = vmatpush1.msra.mxu0 0.0
    %661 = vmatprep.subr.mxu0 0.0
    %662 = vmatpush1.msra.mxu0 0.0
    %663 = vmatprep.subr.mxu0 0.0
    %664 = vmatpush1.msra.mxu0 0.0
    %665 = vmatprep.subr.mxu0 0.0
    %666 = vmatpush1.msra.mxu0 0.0
    %667 = vmatprep.subr.mxu0 0.0
    %668 = vmatpush1.msra.mxu0 0.0
    %669 = vmatprep.subr.mxu0 0.0
    %670 = vmatpush1.msra.mxu0 0.0
    %671 = vmatprep.subr.mxu0 0.0
    %672 = vmatpush1.msra.mxu0 0.0
    %673 = vmatprep.mubr.f32.mxu0 0.0
    %674 = vmatmul.mubr.f32.gmra.mrb[0].mxu0 %v585
    %v675 = vpop.f32.mrb[0].mxu0
    %v676 = vadd.f32 %v608, %v675
    %v677 = vpop.f32.mrb[0].mxu0
    %678 = vmatprep.mubr.f32.mxu0 0.0
    %679 = vmatmul.mubr.f32.gmra.mrb[0].mxu0 %v586
    %v680 = vpop.f32.mrb[0].mxu0
    %v681 = vadd.f32 %v608, %v680
    %v682 = vpop.f32.mrb[0].mxu0
    %683 = vdwg.mxu0
    %s684 = scalar_lea.vmem [#allocation8], 768
    %v685 = vld [vmem:[%s684] sm:$0xff]
    %v686 = vld [vmem:[%s684 + $0x8] sm:$0xff]
    %v687 = vld [vmem:[%s684 + $0x10] sm:$0xff]
    %v688 = vld [vmem:[%s684 + $0x18] sm:$0xff]
    %v689 = vld [vmem:[%s684 + $0x20] sm:$0xff]
    %v690 = vld [vmem:[%s684 + $0x28] sm:$0xff]
    %v691 = vld [vmem:[%s684 + $0x30] sm:$0xff]
    %v692 = vld [vmem:[%s684 + $0x38] sm:$0xff]
    %v693 = vld [vmem:[%s684 + $0x40] sm:$0xff]
    %v694 = vld [vmem:[%s684 + $0x48] sm:$0xff]
    %v695 = vld [vmem:[%s684 + $0x50] sm:$0xff]
    %v696 = vld [vmem:[%s684 + $0x58] sm:$0xff]
    %v697 = vld [vmem:[%s684 + $0x60] sm:$0xff]
    %v698 = vld [vmem:[%s684 + $0x68] sm:$0xff]
    %v699 = vld [vmem:[%s684 + $0x70] sm:$0xff]
    %v700 = vld [vmem:[%s684 + $0x78] sm:$0xff]
    %v701 = vld [vmem:[#allocation10 + $0x6] sm:$0x1]
    %v702 = vlaneseq
    %v703 = vshrl.u32 %v702, 7
    %v704 = vsub.s32 0, %v703
    %v705 = vrot.slane %v701, %v704
    %706 = vmatprep.subr.mxu0 0.0
    %707 = vmatpush1.msra.mxu0 %v685
    %708 = vmatprep.subr.mxu0 0.0
    %709 = vmatpush1.msra.mxu0 %v686
    %710 = vmatprep.subr.mxu0 0.0
    %711 = vmatpush1.msra.mxu0 %v687
    %712 = vmatprep.subr.mxu0 0.0
    %713 = vmatpush1.msra.mxu0 %v688
    %714 = vmatprep.subr.mxu0 0.0
    %715 = vmatpush1.msra.mxu0 %v689
    %716 = vmatprep.subr.mxu0 0.0
    %717 = vmatpush1.msra.mxu0 %v690
    %718 = vmatprep.subr.mxu0 0.0
    %719 = vmatpush1.msra.mxu0 %v691
    %720 = vmatprep.subr.mxu0 0.0
    %721 = vmatpush1.msra.mxu0 %v692
    %722 = vmatprep.subr.mxu0 0.0
    %723 = vmatpush1.msra.mxu0 %v693
    %724 = vmatprep.subr.mxu0 0.0
    %725 = vmatpush1.msra.mxu0 %v694
    %726 = vmatprep.subr.mxu0 0.0
    %727 = vmatpush1.msra.mxu0 %v695
    %728 = vmatprep.subr.mxu0 0.0
    %729 = vmatpush1.msra.mxu0 %v696
    %730 = vmatprep.subr.mxu0 0.0
    %731 = vmatpush1.msra.mxu0 %v697
    %732 = vmatprep.subr.mxu0 0.0
    %733 = vmatpush1.msra.mxu0 %v698
    %734 = vmatprep.subr.mxu0 0.0
    %735 = vmatpush1.msra.mxu0 %v699
    %736 = vmatprep.subr.mxu0 0.0
    %737 = vmatpush1.msra.mxu0 %v700
    %738 = vmatprep.subr.mxu0 0.0
    %739 = vmatpush1.msra.mxu0 0.0
    %740 = vmatprep.subr.mxu0 0.0
    %741 = vmatpush1.msra.mxu0 0.0
    %742 = vmatprep.subr.mxu0 0.0
    %743 = vmatpush1.msra.mxu0 0.0
    %744 = vmatprep.subr.mxu0 0.0
    %745 = vmatpush1.msra.mxu0 0.0
    %746 = vmatprep.subr.mxu0 0.0
    %747 = vmatpush1.msra.mxu0 0.0
    %748 = vmatprep.subr.mxu0 0.0
    %749 = vmatpush1.msra.mxu0 0.0
    %750 = vmatprep.subr.mxu0 0.0
    %751 = vmatpush1.msra.mxu0 0.0
    %752 = vmatprep.subr.mxu0 0.0
    %753 = vmatpush1.msra.mxu0 0.0
    %754 = vmatprep.subr.mxu0 0.0
    %755 = vmatpush1.msra.mxu0 0.0
    %756 = vmatprep.subr.mxu0 0.0
    %757 = vmatpush1.msra.mxu0 0.0
    %758 = vmatprep.subr.mxu0 0.0
    %759 = vmatpush1.msra.mxu0 0.0
    %760 = vmatprep.subr.mxu0 0.0
    %761 = vmatpush1.msra.mxu0 0.0
    %762 = vmatprep.subr.mxu0 0.0
    %763 = vmatpush1.msra.mxu0 0.0
    %764 = vmatprep.subr.mxu0 0.0
    %765 = vmatpush1.msra.mxu0 0.0
    %766 = vmatprep.subr.mxu0 0.0
    %767 = vmatpush1.msra.mxu0 0.0
    %768 = vmatprep.subr.mxu0 0.0
    %769 = vmatpush1.msra.mxu0 0.0
    %770 = vmatprep.mubr.f32.mxu0 0.0
    %771 = vmatmul.mubr.f32.gmra.mrb[0].mxu0 %v91
    %v772 = vpop.f32.mrb[0].mxu0
    %v773 = vadd.f32 %v705, %v772
    %v774 = vpop.f32.mrb[0].mxu0
    %775 = vmatprep.mubr.f32.mxu0 0.0
    %776 = vmatmul.mubr.f32.gmra.mrb[0].mxu0 %v92
    %v777 = vpop.f32.mrb[0].mxu0
    %v778 = vadd.f32 %v705, %v777
    %v779 = vpop.f32.mrb[0].mxu0
    %780 = vdwg.mxu0
    %v781 = vmax.f32 %v773, 0.0
    %v782 = vmax.f32 %v778, 0.0
    %s783 = scalar_lea.vmem [#allocation8], 896
    %v784 = vld [vmem:[%s783] sm:$0xff]
    %v785 = vld [vmem:[%s783 + $0x8] sm:$0xff]
    %v786 = vld [vmem:[%s783 + $0x10] sm:$0xff]
    %v787 = vld [vmem:[%s783 + $0x18] sm:$0xff]
    %v788 = vld [vmem:[%s783 + $0x20] sm:$0xff]
    %v789 = vld [vmem:[%s783 + $0x28] sm:$0xff]
    %v790 = vld [vmem:[%s783 + $0x30] sm:$0xff]
    %v791 = vld [vmem:[%s783 + $0x38] sm:$0xff]
    %v792 = vld [vmem:[%s783 + $0x40] sm:$0xff]
    %v793 = vld [vmem:[%s783 + $0x48] sm:$0xff]
    %v794 = vld [vmem:[%s783 + $0x50] sm:$0xff]
    %v795 = vld [vmem:[%s783 + $0x58] sm:$0xff]
    %v796 = vld [vmem:[%s783 + $0x60] sm:$0xff]
    %v797 = vld [vmem:[%s783 + $0x68] sm:$0xff]
    %v798 = vld [vmem:[%s783 + $0x70] sm:$0xff]
    %v799 = vld [vmem:[%s783 + $0x78] sm:$0xff]
    %v800 = vld [vmem:[#allocation10 + $0x7] sm:$0x1]
    %v801 = vlaneseq
    %v802 = vshrl.u32 %v801, 7
    %v803 = vsub.s32 0, %v802
    %v804 = vrot.slane %v800, %v803
    %805 = vmatprep.subr.mxu0 0.0
    %806 = vmatpush1.msra.mxu0 %v784
    %807 = vmatprep.subr.mxu0 0.0
    %808 = vmatpush1.msra.mxu0 %v785
    %809 = vmatprep.subr.mxu0 0.0
    %810 = vmatpush1.msra.mxu0 %v786
    %811 = vmatprep.subr.mxu0 0.0
    %812 = vmatpush1.msra.mxu0 %v787
    %813 = vmatprep.subr.mxu0 0.0
    %814 = vmatpush1.msra.mxu0 %v788
    %815 = vmatprep.subr.mxu0 0.0
    %816 = vmatpush1.msra.mxu0 %v789
    %817 = vmatprep.subr.mxu0 0.0
    %818 = vmatpush1.msra.mxu0 %v790
    %819 = vmatprep.subr.mxu0 0.0
    %820 = vmatpush1.msra.mxu0 %v791
    %821 = vmatprep.subr.mxu0 0.0
    %822 = vmatpush1.msra.mxu0 %v792
    %823 = vmatprep.subr.mxu0 0.0
    %824 = vmatpush1.msra.mxu0 %v793
    %825 = vmatprep.subr.mxu0 0.0
    %826 = vmatpush1.msra.mxu0 %v794
    %827 = vmatprep.subr.mxu0 0.0
    %828 = vmatpush1.msra.mxu0 %v795
    %829 = vmatprep.subr.mxu0 0.0
    %830 = vmatpush1.msra.mxu0 %v796
    %831 = vmatprep.subr.mxu0 0.0
    %832 = vmatpush1.msra.mxu0 %v797
    %833 = vmatprep.subr.mxu0 0.0
    %834 = vmatpush1.msra.mxu0 %v798
    %835 = vmatprep.subr.mxu0 0.0
    %836 = vmatpush1.msra.mxu0 %v799
    %837 = vmatprep.subr.mxu0 0.0
    %838 = vmatpush1.msra.mxu0 0.0
    %839 = vmatprep.subr.mxu0 0.0
    %840 = vmatpush1.msra.mxu0 0.0
    %841 = vmatprep.subr.mxu0 0.0
    %842 = vmatpush1.msra.mxu0 0.0
    %843 = vmatprep.subr.mxu0 0.0
    %844 = vmatpush1.msra.mxu0 0.0
    %845 = vmatprep.subr.mxu0 0.0
    %846 = vmatpush1.msra.mxu0 0.0
    %847 = vmatprep.subr.mxu0 0.0
    %848 = vmatpush1.msra.mxu0 0.0
    %849 = vmatprep.subr.mxu0 0.0
    %850 = vmatpush1.msra.mxu0 0.0
    %851 = vmatprep.subr.mxu0 0.0
    %852 = vmatpush1.msra.mxu0 0.0
    %853 = vmatprep.subr.mxu0 0.0
    %854 = vmatpush1.msra.mxu0 0.0
    %855 = vmatprep.subr.mxu0 0.0
    %856 = vmatpush1.msra.mxu0 0.0
    %857 = vmatprep.subr.mxu0 0.0
    %858 = vmatpush1.msra.mxu0 0.0
    %859 = vmatprep.subr.mxu0 0.0
    %860 = vmatpush1.msra.mxu0 0.0
    %861 = vmatprep.subr.mxu0 0.0
    %862 = vmatpush1.msra.mxu0 0.0
    %863 = vmatprep.subr.mxu0 0.0
    %864 = vmatpush1.msra.mxu0 0.0
    %865 = vmatprep.subr.mxu0 0.0
    %866 = vmatpush1.msra.mxu0 0.0
    %867 = vmatprep.subr.mxu0 0.0
    %868 = vmatpush1.msra.mxu0 0.0
    %869 = vmatprep.mubr.f32.mxu0 0.0
    %870 = vmatmul.mubr.f32.gmra.mrb[0].mxu0 %v781
    %v871 = vpop.f32.mrb[0].mxu0
    %v872 = vadd.f32 %v804, %v871
    %v873 = vpop.f32.mrb[0].mxu0
    %874 = vmatprep.mubr.f32.mxu0 0.0
    %875 = vmatmul.mubr.f32.gmra.mrb[0].mxu0 %v782
    %v876 = vpop.f32.mrb[0].mxu0
    %v877 = vadd.f32 %v804, %v876
    %v878 = vpop.f32.mrb[0].mxu0
    %879 = vdwg.mxu0
    %v880 = vmax.f32 %v872, 0.0
    %v881 = vmax.f32 %v877, 0.0
    %s882 = scalar_lea.vmem [#allocation8], 1024
    %v883 = vld [vmem:[%s882] sm:$0xff]
    %v884 = vld [vmem:[%s882 + $0x8] sm:$0xff]
    %v885 = vld [vmem:[%s882 + $0x10] sm:$0xff]
    %v886 = vld [vmem:[%s882 + $0x18] sm:$0xff]
    %v887 = vld [vmem:[%s882 + $0x20] sm:$0xff]
    %v888 = vld [vmem:[%s882 + $0x28] sm:$0xff]
    %v889 = vld [vmem:[%s882 + $0x30] sm:$0xff]
    %v890 = vld [vmem:[%s882 + $0x38] sm:$0xff]
    %v891 = vld [vmem:[%s882 + $0x40] sm:$0xff]
    %v892 = vld [vmem:[%s882 + $0x48] sm:$0xff]
    %v893 = vld [vmem:[%s882 + $0x50] sm:$0xff]
    %v894 = vld [vmem:[%s882 + $0x58] sm:$0xff]
    %v895 = vld [vmem:[%s882 + $0x60] sm:$0xff]
    %v896 = vld [vmem:[%s882 + $0x68] sm:$0xff]
    %v897 = vld [vmem:[%s882 + $0x70] sm:$0xff]
    %v898 = vld [vmem:[%s882 + $0x78] sm:$0xff]
    %v899 = vld [vmem:[#allocation10 + $0x8] sm:$0x1]
    %v900 = vlaneseq
    %v901 = vshrl.u32 %v900, 7
    %v902 = vsub.s32 0, %v901
    %v903 = vrot.slane %v899, %v902
    %904 = vmatprep.subr.mxu0 0.0
    %905 = vmatpush1.msra.mxu0 %v883
    %906 = vmatprep.subr.mxu0 0.0
    %907 = vmatpush1.msra.mxu0 %v884
    %908 = vmatprep.subr.mxu0 0.0
    %909 = vmatpush1.msra.mxu0 %v885
    %910 = vmatprep.subr.mxu0 0.0
    %911 = vmatpush1.msra.mxu0 %v886
    %912 = vmatprep.subr.mxu0 0.0
    %913 = vmatpush1.msra.mxu0 %v887
    %914 = vmatprep.subr.mxu0 0.0
    %915 = vmatpush1.msra.mxu0 %v888
    %916 = vmatprep.subr.mxu0 0.0
    %917 = vmatpush1.msra.mxu0 %v889
    %918 = vmatprep.subr.mxu0 0.0
    %919 = vmatpush1.msra.mxu0 %v890
    %920 = vmatprep.subr.mxu0 0.0
    %921 = vmatpush1.msra.mxu0 %v891
    %922 = vmatprep.subr.mxu0 0.0
    %923 = vmatpush1.msra.mxu0 %v892
    %924 = vmatprep.subr.mxu0 0.0
    %925 = vmatpush1.msra.mxu0 %v893
    %926 = vmatprep.subr.mxu0 0.0
    %927 = vmatpush1.msra.mxu0 %v894
    %928 = vmatprep.subr.mxu0 0.0
    %929 = vmatpush1.msra.mxu0 %v895
    %930 = vmatprep.subr.mxu0 0.0
    %931 = vmatpush1.msra.mxu0 %v896
    %932 = vmatprep.subr.mxu0 0.0
    %933 = vmatpush1.msra.mxu0 %v897
    %934 = vmatprep.subr.mxu0 0.0
    %935 = vmatpush1.msra.mxu0 %v898
    %936 = vmatprep.subr.mxu0 0.0
    %937 = vmatpush1.msra.mxu0 0.0
    %938 = vmatprep.subr.mxu0 0.0
    %939 = vmatpush1.msra.mxu0 0.0
    %940 = vmatprep.subr.mxu0 0.0
    %941 = vmatpush1.msra.mxu0 0.0
    %942 = vmatprep.subr.mxu0 0.0
    %943 = vmatpush1.msra.mxu0 0.0
    %944 = vmatprep.subr.mxu0 0.0
    %945 = vmatpush1.msra.mxu0 0.0
    %946 = vmatprep.subr.mxu0 0.0
    %947 = vmatpush1.msra.mxu0 0.0
    %948 = vmatprep.subr.mxu0 0.0
    %949 = vmatpush1.msra.mxu0 0.0
    %950 = vmatprep.subr.mxu0 0.0
    %951 = vmatpush1.msra.mxu0 0.0
    %952 = vmatprep.subr.mxu0 0.0
    %953 = vmatpush1.msra.mxu0 0.0
    %954 = vmatprep.subr.mxu0 0.0
    %955 = vmatpush1.msra.mxu0 0.0
    %956 = vmatprep.subr.mxu0 0.0
    %957 = vmatpush1.msra.mxu0 0.0
    %958 = vmatprep.subr.mxu0 0.0
    %959 = vmatpush1.msra.mxu0 0.0
    %960 = vmatprep.subr.mxu0 0.0
    %961 = vmatpush1.msra.mxu0 0.0
    %962 = vmatprep.subr.mxu0 0.0
    %963 = vmatpush1.msra.mxu0 0.0
    %964 = vmatprep.subr.mxu0 0.0
    %965 = vmatpush1.msra.mxu0 0.0
    %966 = vmatprep.subr.mxu0 0.0
    %967 = vmatpush1.msra.mxu0 0.0
    %968 = vmatprep.mubr.f32.mxu0 0.0
    %969 = vmatmul.mubr.f32.gmra.mrb[0].mxu0 %v880
    %v970 = vpop.f32.mrb[0].mxu0
    %v971 = vadd.f32 %v903, %v970
    %v972 = vpop.f32.mrb[0].mxu0
    %973 = vmatprep.mubr.f32.mxu0 0.0
    %974 = vmatmul.mubr.f32.gmra.mrb[0].mxu0 %v881
    %v975 = vpop.f32.mrb[0].mxu0
    %v976 = vadd.f32 %v903, %v975
    %v977 = vpop.f32.mrb[0].mxu0
    %978 = vdwg.mxu0
    %979 = vmatprep.subr.mxu0 0.0
    %980 = vmatpush1.xpose.msra.mxu0 %v676
    %981 = vmatprep.subr.mxu0 0.0
    %982 = vmatpush1.xpose.msra.mxu0 0.0
    %983 = vmatprep.subr.mxu0 0.0
    %984 = vmatpush1.xpose.msra.mxu0 0.0
    %985 = vmatprep.subr.mxu0 0.0
    %986 = vmatpush1.xpose.msra.mxu0 0.0
    %987 = vmatprep.subr.mxu0 0.0
    %988 = vmatpush1.xpose.msra.mxu0 0.0
    %989 = vmatprep.subr.mxu0 0.0
    %990 = vmatpush1.xpose.msra.mxu0 0.0
    %991 = vmatprep.subr.mxu0 0.0
    %992 = vmatpush1.xpose.msra.mxu0 0.0
    %993 = vmatprep.subr.mxu0 0.0
    %994 = vmatpush1.xpose.msra.mxu0 0.0
    %995 = vmatprep.subr.mxu0 0.0
    %996 = vmatpush1.xpose.msra.mxu0 0.0
    %997 = vmatprep.subr.mxu0 0.0
    %998 = vmatpush1.xpose.msra.mxu0 0.0
    %999 = vmatprep.subr.mxu0 0.0
    %1000 = vmatpush1.xpose.msra.mxu0 0.0
    %1001 = vmatprep.subr.mxu0 0.0
    %1002 = vmatpush1.xpose.msra.mxu0 0.0
    %1003 = vmatprep.subr.mxu0 0.0
    %1004 = vmatpush1.xpose.msra.mxu0 0.0
    %1005 = vmatprep.subr.mxu0 0.0
    %1006 = vmatpush1.xpose.msra.mxu0 0.0
    %1007 = vmatprep.subr.mxu0 0.0
    %1008 = vmatpush1.xpose.msra.mxu0 0.0
    %1009 = vmatprep.subr.mxu0 0.0
    %1010 = vmatpush1.xpose.msra.mxu0 0.0
    %1011 = vmatprep.subr.mxu0 0.0
    %1012 = vmatpush1.xpose.msra.mxu0 0.0
    %1013 = vmatprep.subr.mxu0 0.0
    %1014 = vmatpush1.xpose.msra.mxu0 0.0
    %1015 = vmatprep.subr.mxu0 0.0
    %1016 = vmatpush1.xpose.msra.mxu0 0.0
    %1017 = vmatprep.subr.mxu0 0.0
    %1018 = vmatpush1.xpose.msra.mxu0 0.0
    %1019 = vmatprep.subr.mxu0 0.0
    %1020 = vmatpush1.xpose.msra.mxu0 0.0
    %1021 = vmatprep.subr.mxu0 0.0
    %1022 = vmatpush1.xpose.msra.mxu0 0.0
    %1023 = vmatprep.subr.mxu0 0.0
    %1024 = vmatpush1.xpose.msra.mxu0 0.0
    %1025 = vmatprep.subr.mxu0 0.0
    %1026 = vmatpush1.xpose.msra.mxu0 0.0
    %1027 = vmatprep.subr.mxu0 0.0
    %1028 = vmatpush1.xpose.msra.mxu0 0.0
    %1029 = vmatprep.subr.mxu0 0.0
    %1030 = vmatpush1.xpose.msra.mxu0 0.0
    %1031 = vmatprep.subr.mxu0 0.0
    %1032 = vmatpush1.xpose.msra.mxu0 0.0
    %1033 = vmatprep.subr.mxu0 0.0
    %1034 = vmatpush1.xpose.msra.mxu0 0.0
    %1035 = vmatprep.subr.mxu0 0.0
    %1036 = vmatpush1.xpose.msra.mxu0 0.0
    %1037 = vmatprep.subr.mxu0 0.0
    %1038 = vmatpush1.xpose.msra.mxu0 0.0
    %1039 = vmatprep.subr.mxu0 0.0
    %1040 = vmatpush1.xpose.msra.mxu0 0.0
    %1041 = vmatprep.subr.mxu0 0.0
    %1042 = vmatpush1.xpose.msra.mxu0 0.0
    %1043 = vmatprep.mubr.f32.mxu0 0.0
    %1044 = vmatmul.mubr.f32.gmra.mrb[0].mxu0 %v381
    %v1045 = vpop.f32.mrb[0].mxu0
    %v1046 = vadd.f32 0.0, %v1045
    %v1047 = vpop.f32.mrb[0].mxu0
    %1048 = vdwg.mxu0
    %1049 = vmatprep.subr.mxu0 0.0
    %1050 = vmatpush1.xpose.msra.mxu0 %v681
    %1051 = vmatprep.subr.mxu0 0.0
    %1052 = vmatpush1.xpose.msra.mxu0 0.0
    %1053 = vmatprep.subr.mxu0 0.0
    %1054 = vmatpush1.xpose.msra.mxu0 0.0
    %1055 = vmatprep.subr.mxu0 0.0
    %1056 = vmatpush1.xpose.msra.mxu0 0.0
    %1057 = vmatprep.subr.mxu0 0.0
    %1058 = vmatpush1.xpose.msra.mxu0 0.0
    %1059 = vmatprep.subr.mxu0 0.0
    %1060 = vmatpush1.xpose.msra.mxu0 0.0
    %1061 = vmatprep.subr.mxu0 0.0
    %1062 = vmatpush1.xpose.msra.mxu0 0.0
    %1063 = vmatprep.subr.mxu0 0.0
    %1064 = vmatpush1.xpose.msra.mxu0 0.0
    %1065 = vmatprep.subr.mxu0 0.0
    %1066 = vmatpush1.xpose.msra.mxu0 0.0
    %1067 = vmatprep.subr.mxu0 0.0
    %1068 = vmatpush1.xpose.msra.mxu0 0.0
    %1069 = vmatprep.subr.mxu0 0.0
    %1070 = vmatpush1.xpose.msra.mxu0 0.0
    %1071 = vmatprep.subr.mxu0 0.0
    %1072 = vmatpush1.xpose.msra.mxu0 0.0
    %1073 = vmatprep.subr.mxu0 0.0
    %1074 = vmatpush1.xpose.msra.mxu0 0.0
    %1075 = vmatprep.subr.mxu0 0.0
    %1076 = vmatpush1.xpose.msra.mxu0 0.0
    %1077 = vmatprep.subr.mxu0 0.0
    %1078 = vmatpush1.xpose.msra.mxu0 0.0
    %1079 = vmatprep.subr.mxu0 0.0
    %1080 = vmatpush1.xpose.msra.mxu0 0.0
    %1081 = vmatprep.subr.mxu0 0.0
    %1082 = vmatpush1.xpose.msra.mxu0 0.0
    %1083 = vmatprep.subr.mxu0 0.0
    %1084 = vmatpush1.xpose.msra.mxu0 0.0
    %1085 = vmatprep.subr.mxu0 0.0
    %1086 = vmatpush1.xpose.msra.mxu0 0.0
    %1087 = vmatprep.subr.mxu0 0.0
    %1088 = vmatpush1.xpose.msra.mxu0 0.0
    %1089 = vmatprep.subr.mxu0 0.0
    %1090 = vmatpush1.xpose.msra.mxu0 0.0
    %1091 = vmatprep.subr.mxu0 0.0
    %1092 = vmatpush1.xpose.msra.mxu0 0.0
    %1093 = vmatprep.subr.mxu0 0.0
    %1094 = vmatpush1.xpose.msra.mxu0 0.0
    %1095 = vmatprep.subr.mxu0 0.0
    %1096 = vmatpush1.xpose.msra.mxu0 0.0
    %1097 = vmatprep.subr.mxu0 0.0
    %1098 = vmatpush1.xpose.msra.mxu0 0.0
    %1099 = vmatprep.subr.mxu0 0.0
    %1100 = vmatpush1.xpose.msra.mxu0 0.0
    %1101 = vmatprep.subr.mxu0 0.0
    %1102 = vmatpush1.xpose.msra.mxu0 0.0
    %1103 = vmatprep.subr.mxu0 0.0
    %1104 = vmatpush1.xpose.msra.mxu0 0.0
    %1105 = vmatprep.subr.mxu0 0.0
    %1106 = vmatpush1.xpose.msra.mxu0 0.0
    %1107 = vmatprep.subr.mxu0 0.0
    %1108 = vmatpush1.xpose.msra.mxu0 0.0
    %1109 = vmatprep.subr.mxu0 0.0
    %1110 = vmatpush1.xpose.msra.mxu0 0.0
    %1111 = vmatprep.subr.mxu0 0.0
    %1112 = vmatpush1.xpose.msra.mxu0 0.0
    %1113 = vmatprep.mubr.f32.mxu0 0.0
    %1114 = vmatmul.mubr.f32.gmra.mrb[0].mxu0 %v386
    %v1115 = vpop.f32.mrb[0].mxu0
    %v1116 = vadd.f32 0.0, %v1115
    %v1117 = vpop.f32.mrb[0].mxu0
    %1118 = vdwg.mxu0
    %vm1119 = vcmask 64512
    %v1120 = vsel %vm1119, %v1046, -inf
    %1121 = vmax.xlane.f32.xlu0 %v1120
    %v1122 = vpop.xlane.xlu0 %1121
    %v1123 = vsel %vm1119, %v1116, -inf
    %1124 = vmax.xlane.f32.xlu0 %v1123
    %v1125 = vpop.xlane.xlu0 %1124
    %v1126 = vsub.f32 %v1046, %v1122
    %v1127 = vsub.f32 %v1116, %v1125
    %v1128 = vmul.f32 %v1126, 1.442695
    %v1129 = vpow.pop %v1128
    %v1130 = vmul.f32 %v1127, 1.442695
    %v1131 = vpow.pop %v1130
    %v1132 = vsel %vm1119, %v1129, 0.0
    %1133 = vadd.xlane.f32.xlu0 %v1132
    %v1134 = vpop.xlane.xlu0 %1133
    %v1135 = vsel %vm1119, %v1131, 0.0
    %1136 = vadd.xlane.f32.xlu0 %v1135
    %v1137 = vpop.xlane.xlu0 %1136
    %v1138 = vrcp.pop %v1134
    %v1139 = vrcp.pop %v1137
    %v1140 = vmul.f32 %v1129, %v1138
    %v1141 = vmul.f32 %v1131, %v1139
    %1142 = vxpose.xlu0.b32.start [1/16] %v1140, 128
    %1143 = vxpose.xlu0.b32.cont [2/16] 0.0, 128
    %1144 = vxpose.xlu0.b32.cont [3/16] 0.0, 128
    %1145 = vxpose.xlu0.b32.cont [4/16] 0.0, 128
    %1146 = vxpose.xlu0.b32.cont [5/16] 0.0, 128
    %1147 = vxpose.xlu0.b32.cont [6/16] 0.0, 128
    %1148 = vxpose.xlu0.b32.cont [7/16] 0.0, 128
    %1149 = vxpose.xlu0.b32.cont [8/16] 0.0, 128
    %1150 = vxpose.xlu0.b32.cont [9/16] 0.0, 128
    %1151 = vxpose.xlu0.b32.cont [10/16] 0.0, 128
    %1152 = vxpose.xlu0.b32.cont [11/16] 0.0, 128
    %1153 = vxpose.xlu0.b32.cont [12/16] 0.0, 128
    %1154 = vxpose.xlu0.b32.cont [13/16] 0.0, 128
    %1155 = vxpose.xlu0.b32.cont [14/16] 0.0, 128
    %1156 = vxpose.xlu0.b32.cont [15/16] 0.0, 128
    %1157 = vxpose.xlu0.b32.end [16/16] 0.0, 128
    %v1158 = vpop.trf.xlu0
    %v1159 = vpop.trf.xlu0
    %v1160 = vpop.trf.xlu0
    %v1161 = vpop.trf.xlu0
    %v1162 = vpop.trf.xlu0
    %v1163 = vpop.trf.xlu0
    %v1164 = vpop.trf.xlu0
    %v1165 = vpop.trf.xlu0
    %v1166 = vpop.trf.xlu0
    %v1167 = vpop.trf.xlu0
    %v1168 = vpop.trf.xlu0
    %v1169 = vpop.trf.xlu0
    %v1170 = vpop.trf.xlu0
    %v1171 = vpop.trf.xlu0
    %v1172 = vpop.trf.xlu0
    %v1173 = vpop.trf.xlu0
    %v1175 = vsel %vm1119, %v1158, 0
    %1177 = vmatprep.subr.mxu0 0.0
    %1178 = vmatpush1.msra.mxu0 %v971
    %1179 = vmatprep.subr.mxu0 0.0
    %1180 = vmatpush1.msra.mxu0 0.0
    %1181 = vmatprep.subr.mxu0 0.0
    %1182 = vmatpush1.msra.mxu0 0.0
    %1183 = vmatprep.subr.mxu0 0.0
    %1184 = vmatpush1.msra.mxu0 0.0
    %1185 = vmatprep.subr.mxu0 0.0
    %1186 = vmatpush1.msra.mxu0 0.0
    %1187 = vmatprep.subr.mxu0 0.0
    %1188 = vmatpush1.msra.mxu0 0.0
    %1189 = vmatprep.subr.mxu0 0.0
    %1190 = vmatpush1.msra.mxu0 0.0
    %1191 = vmatprep.subr.mxu0 0.0
    %1192 = vmatpush1.msra.mxu0 0.0
    %1193 = vmatprep.subr.mxu0 0.0
    %1194 = vmatpush1.msra.mxu0 0.0
    %1195 = vmatprep.subr.mxu0 0.0
    %1196 = vmatpush1.msra.mxu0 0.0
    %1197 = vmatprep.subr.mxu0 0.0
    %1198 = vmatpush1.msra.mxu0 0.0
    %1199 = vmatprep.subr.mxu0 0.0
    %1200 = vmatpush1.msra.mxu0 0.0
    %1201 = vmatprep.subr.mxu0 0.0
    %1202 = vmatpush1.msra.mxu0 0.0
    %1203 = vmatprep.subr.mxu0 0.0
    %1204 = vmatpush1.msra.mxu0 0.0
    %1205 = vmatprep.subr.mxu0 0.0
    %1206 = vmatpush1.msra.mxu0 0.0
    %1207 = vmatprep.subr.mxu0 0.0
    %1208 = vmatpush1.msra.mxu0 0.0
    %1209 = vmatprep.subr.mxu0 0.0
    %1210 = vmatpush1.msra.mxu0 0.0
    %1211 = vmatprep.subr.mxu0 0.0
    %1212 = vmatpush1.msra.mxu0 0.0
    %1213 = vmatprep.subr.mxu0 0.0
    %1214 = vmatpush1.msra.mxu0 0.0
    %1215 = vmatprep.subr.mxu0 0.0
    %1216 = vmatpush1.msra.mxu0 0.0
    %1217 = vmatprep.subr.mxu0 0.0
    %1218 = vmatpush1.msra.mxu0 0.0
    %1219 = vmatprep.subr.mxu0 0.0
    %1220 = vmatpush1.msra.mxu0 0.0
    %1221 = vmatprep.subr.mxu0 0.0
    %1222 = vmatpush1.msra.mxu0 0.0
    %1223 = vmatprep.subr.mxu0 0.0
    %1224 = vmatpush1.msra.mxu0 0.0
    %1225 = vmatprep.subr.mxu0 0.0
    %1226 = vmatpush1.msra.mxu0 0.0
    %1227 = vmatprep.subr.mxu0 0.0
    %1228 = vmatpush1.msra.mxu0 0.0
    %1229 = vmatprep.subr.mxu0 0.0
    %1230 = vmatpush1.msra.mxu0 0.0
    %1231 = vmatprep.subr.mxu0 0.0
    %1232 = vmatpush1.msra.mxu0 0.0
    %1233 = vmatprep.subr.mxu0 0.0
    %1234 = vmatpush1.msra.mxu0 0.0
    %1235 = vmatprep.subr.mxu0 0.0
    %1236 = vmatpush1.msra.mxu0 0.0
    %1237 = vmatprep.subr.mxu0 0.0
    %1238 = vmatpush1.msra.mxu0 0.0
    %1239 = vmatprep.subr.mxu0 0.0
    %1240 = vmatpush1.msra.mxu0 0.0
    %1241 = vmatprep.mubr.f32.mxu0 0.0
    %1242 = vmatmul.mubr.f32.gmra.mrb[0].mxu0 %v1175
    %v1243 = vpop.f32.mrb[0].mxu0
    %v1244 = vadd.f32 0.0, %v1243
    %v1245 = vpop.f32.mrb[0].mxu0
    %1246 = vdwg.mxu0
    %1247 = vxpose.xlu0.b32.start [1/16] %v1141, 128
    %1248 = vxpose.xlu0.b32.cont [2/16] 0.0, 128
    %1249 = vxpose.xlu0.b32.cont [3/16] 0.0, 128
    %1250 = vxpose.xlu0.b32.cont [4/16] 0.0, 128
    %1251 = vxpose.xlu0.b32.cont [5/16] 0.0, 128
    %1252 = vxpose.xlu0.b32.cont [6/16] 0.0, 128
    %1253 = vxpose.xlu0.b32.cont [7/16] 0.0, 128
    %1254 = vxpose.xlu0.b32.cont [8/16] 0.0, 128
    %1255 = vxpose.xlu0.b32.cont [9/16] 0.0, 128
    %1256 = vxpose.xlu0.b32.cont [10/16] 0.0, 128
    %1257 = vxpose.xlu0.b32.cont [11/16] 0.0, 128
    %1258 = vxpose.xlu0.b32.cont [12/16] 0.0, 128
    %1259 = vxpose.xlu0.b32.cont [13/16] 0.0, 128
    %1260 = vxpose.xlu0.b32.cont [14/16] 0.0, 128
    %1261 = vxpose.xlu0.b32.cont [15/16] 0.0, 128
    %1262 = vxpose.xlu0.b32.end [16/16] 0.0, 128
    %v1263 = vpop.trf.xlu0
    %v1264 = vpop.trf.xlu0
    %v1265 = vpop.trf.xlu0
    %v1266 = vpop.trf.xlu0
    %v1267 = vpop.trf.xlu0
    %v1268 = vpop.trf.xlu0
    %v1269 = vpop.trf.xlu0
    %v1270 = vpop.trf.xlu0
    %v1271 = vpop.trf.xlu0
    %v1272 = vpop.trf.xlu0
    %v1273 = vpop.trf.xlu0
    %v1274 = vpop.trf.xlu0
    %v1275 = vpop.trf.xlu0
    %v1276 = vpop.trf.xlu0
    %v1277 = vpop.trf.xlu0
    %v1278 = vpop.trf.xlu0
    %v1280 = vsel %vm1119, %v1263, 0
    %1282 = vmatprep.subr.mxu0 0.0
    %1283 = vmatpush1.msra.mxu0 %v976
    %1284 = vmatprep.subr.mxu0 0.0
    %1285 = vmatpush1.msra.mxu0 0.0
    %1286 = vmatprep.subr.mxu0 0.0
    %1287 = vmatpush1.msra.mxu0 0.0
    %1288 = vmatprep.subr.mxu0 0.0
    %1289 = vmatpush1.msra.mxu0 0.0
    %1290 = vmatprep.subr.mxu0 0.0
    %1291 = vmatpush1.msra.mxu0 0.0
    %1292 = vmatprep.subr.mxu0 0.0
    %1293 = vmatpush1.msra.mxu0 0.0
    %1294 = vmatprep.subr.mxu0 0.0
    %1295 = vmatpush1.msra.mxu0 0.0
    %1296 = vmatprep.subr.mxu0 0.0
    %1297 = vmatpush1.msra.mxu0 0.0
    %1298 = vmatprep.subr.mxu0 0.0
    %1299 = vmatpush1.msra.mxu0 0.0
    %1300 = vmatprep.subr.mxu0 0.0
    %1301 = vmatpush1.msra.mxu0 0.0
    %1302 = vmatprep.subr.mxu0 0.0
    %1303 = vmatpush1.msra.mxu0 0.0
    %1304 = vmatprep.subr.mxu0 0.0
    %1305 = vmatpush1.msra.mxu0 0.0
    %1306 = vmatprep.subr.mxu0 0.0
    %1307 = vmatpush1.msra.mxu0 0.0
    %1308 = vmatprep.subr.mxu0 0.0
    %1309 = vmatpush1.msra.mxu0 0.0
    %1310 = vmatprep.subr.mxu0 0.0
    %1311 = vmatpush1.msra.mxu0 0.0
    %1312 = vmatprep.subr.mxu0 0.0
    %1313 = vmatpush1.msra.mxu0 0.0
    %1314 = vmatprep.subr.mxu0 0.0
    %1315 = vmatpush1.msra.mxu0 0.0
    %1316 = vmatprep.subr.mxu0 0.0
    %1317 = vmatpush1.msra.mxu0 0.0
    %1318 = vmatprep.subr.mxu0 0.0
    %1319 = vmatpush1.msra.mxu0 0.0
    %1320 = vmatprep.subr.mxu0 0.0
    %1321 = vmatpush1.msra.mxu0 0.0
    %1322 = vmatprep.subr.mxu0 0.0
    %1323 = vmatpush1.msra.mxu0 0.0
    %1324 = vmatprep.subr.mxu0 0.0
    %1325 = vmatpush1.msra.mxu0 0.0
    %1326 = vmatprep.subr.mxu0 0.0
    %1327 = vmatpush1.msra.mxu0 0.0
    %1328 = vmatprep.subr.mxu0 0.0
    %1329 = vmatpush1.msra.mxu0 0.0
    %1330 = vmatprep.subr.mxu0 0.0
    %1331 = vmatpush1.msra.mxu0 0.0
    %1332 = vmatprep.subr.mxu0 0.0
    %1333 = vmatpush1.msra.mxu0 0.0
    %1334 = vmatprep.subr.mxu0 0.0
    %1335 = vmatpush1.msra.mxu0 0.0
    %1336 = vmatprep.subr.mxu0 0.0
    %1337 = vmatpush1.msra.mxu0 0.0
    %1338 = vmatprep.subr.mxu0 0.0
    %1339 = vmatpush1.msra.mxu0 0.0
    %1340 = vmatprep.subr.mxu0 0.0
    %1341 = vmatpush1.msra.mxu0 0.0
    %1342 = vmatprep.subr.mxu0 0.0
    %1343 = vmatpush1.msra.mxu0 0.0
    %1344 = vmatprep.subr.mxu0 0.0
    %1345 = vmatpush1.msra.mxu0 0.0
    %1346 = vmatprep.mubr.f32.mxu0 0.0
    %1347 = vmatmul.mubr.f32.gmra.mrb[0].mxu0 %v1280
    %v1348 = vpop.f32.mrb[0].mxu0
    %v1349 = vadd.f32 0.0, %v1348
    %v1350 = vpop.f32.mrb[0].mxu0
    %1351 = vdwg.mxu0
    %s1352 = scalar_lea.vmem [#allocation8], 1152
    %v1353 = vld [vmem:[%s1352] sm:$0xff]
    %v1354 = vld [vmem:[%s1352 + $0x8] sm:$0xff]
    %v1355 = vld [vmem:[%s1352 + $0x10] sm:$0xff]
    %v1356 = vld [vmem:[%s1352 + $0x18] sm:$0xff]
    %v1357 = vld [vmem:[%s1352 + $0x20] sm:$0xff]
    %v1358 = vld [vmem:[%s1352 + $0x28] sm:$0xff]
    %v1359 = vld [vmem:[%s1352 + $0x30] sm:$0xff]
    %v1360 = vld [vmem:[%s1352 + $0x38] sm:$0xff]
    %v1361 = vld [vmem:[%s1352 + $0x40] sm:$0xff]
    %v1362 = vld [vmem:[%s1352 + $0x48] sm:$0xff]
    %v1363 = vld [vmem:[%s1352 + $0x50] sm:$0xff]
    %v1364 = vld [vmem:[%s1352 + $0x58] sm:$0xff]
    %v1365 = vld [vmem:[%s1352 + $0x60] sm:$0xff]
    %v1366 = vld [vmem:[%s1352 + $0x68] sm:$0xff]
    %v1367 = vld [vmem:[%s1352 + $0x70] sm:$0xff]
    %v1368 = vld [vmem:[%s1352 + $0x78] sm:$0xff]
    %v1369 = vld [vmem:[#allocation10 + $0x9] sm:$0x1]
    %v1370 = vlaneseq
    %v1371 = vshrl.u32 %v1370, 7
    %v1372 = vsub.s32 0, %v1371
    %v1373 = vrot.slane %v1369, %v1372
    %1374 = vmatprep.subr.mxu0 0.0
    %1375 = vmatpush1.msra.mxu0 %v1353
    %1376 = vmatprep.subr.mxu0 0.0
    %1377 = vmatpush1.msra.mxu0 %v1354
    %1378 = vmatprep.subr.mxu0 0.0
    %1379 = vmatpush1.msra.mxu0 %v1355
    %1380 = vmatprep.subr.mxu0 0.0
    %1381 = vmatpush1.msra.mxu0 %v1356
    %1382 = vmatprep.subr.mxu0 0.0
    %1383 = vmatpush1.msra.mxu0 %v1357
    %1384 = vmatprep.subr.mxu0 0.0
    %1385 = vmatpush1.msra.mxu0 %v1358
    %1386 = vmatprep.subr.mxu0 0.0
    %1387 = vmatpush1.msra.mxu0 %v1359
    %1388 = vmatprep.subr.mxu0 0.0
    %1389 = vmatpush1.msra.mxu0 %v1360
    %1390 = vmatprep.subr.mxu0 0.0
    %1391 = vmatpush1.msra.mxu0 %v1361
    %1392 = vmatprep.subr.mxu0 0.0
    %1393 = vmatpush1.msra.mxu0 %v1362
    %1394 = vmatprep.subr.mxu0 0.0
    %1395 = vmatpush1.msra.mxu0 %v1363
    %1396 = vmatprep.subr.mxu0 0.0
    %1397 = vmatpush1.msra.mxu0 %v1364
    %1398 = vmatprep.subr.mxu0 0.0
    %1399 = vmatpush1.msra.mxu0 %v1365
    %1400 = vmatprep.subr.mxu0 0.0
    %1401 = vmatpush1.msra.mxu0 %v1366
    %1402 = vmatprep.subr.mxu0 0.0
    %1403 = vmatpush1.msra.mxu0 %v1367
    %1404 = vmatprep.subr.mxu0 0.0
    %1405 = vmatpush1.msra.mxu0 %v1368
    %1406 = vmatprep.subr.mxu0 0.0
    %1407 = vmatpush1.msra.mxu0 0.0
    %1408 = vmatprep.subr.mxu0 0.0
    %1409 = vmatpush1.msra.mxu0 0.0
    %1410 = vmatprep.subr.mxu0 0.0
    %1411 = vmatpush1.msra.mxu0 0.0
    %1412 = vmatprep.subr.mxu0 0.0
    %1413 = vmatpush1.msra.mxu0 0.0
    %1414 = vmatprep.subr.mxu0 0.0
    %1415 = vmatpush1.msra.mxu0 0.0
    %1416 = vmatprep.subr.mxu0 0.0
    %1417 = vmatpush1.msra.mxu0 0.0
    %1418 = vmatprep.subr.mxu0 0.0
    %1419 = vmatpush1.msra.mxu0 0.0
    %1420 = vmatprep.subr.mxu0 0.0
    %1421 = vmatpush1.msra.mxu0 0.0
    %1422 = vmatprep.subr.mxu0 0.0
    %1423 = vmatpush1.msra.mxu0 0.0
    %1424 = vmatprep.subr.mxu0 0.0
    %1425 = vmatpush1.msra.mxu0 0.0
    %1426 = vmatprep.subr.mxu0 0.0
    %1427 = vmatpush1.msra.mxu0 0.0
    %1428 = vmatprep.subr.mxu0 0.0
    %1429 = vmatpush1.msra.mxu0 0.0
    %1430 = vmatprep.subr.mxu0 0.0
    %1431 = vmatpush1.msra.mxu0 0.0
    %1432 = vmatprep.subr.mxu0 0.0
    %1433 = vmatpush1.msra.mxu0 0.0
    %1434 = vmatprep.subr.mxu0 0.0
    %1435 = vmatpush1.msra.mxu0 0.0
    %1436 = vmatprep.subr.mxu0 0.0
    %1437 = vmatpush1.msra.mxu0 0.0
    %1438 = vmatprep.mubr.f32.mxu0 0.0
    %1439 = vmatmul.mubr.f32.gmra.mrb[0].mxu0 %v1244
    %v1440 = vpop.f32.mrb[0].mxu0
    %v1441 = vadd.f32 %v1373, %v1440
    %v1442 = vpop.f32.mrb[0].mxu0
    %1443 = vmatprep.mubr.f32.mxu0 0.0
    %1444 = vmatmul.mubr.f32.gmra.mrb[0].mxu0 %v1349
    %v1445 = vpop.f32.mrb[0].mxu0
    %v1446 = vadd.f32 %v1373, %v1445
    %v1447 = vpop.f32.mrb[0].mxu0
    %1448 = vdwg.mxu0
    %1449 = vst [vmem:[#allocation11] sm:$0xff] %v1441
    %1450 = vst [vmem:[#allocation11 + $0x8] sm:$0xff] %v1446
    // Predicated region
    $region42: #{tpu_custom_call.1} parent=1 // pred_check
      _
    $region43: #{tpu_custom_call.1} parent=1 // pred_check_branch
      %1452 = sbr.rel (0) target = $region45
    $region44: #{tpu_custom_call.1} parent=1 // pred_region
      %s1454 = ssub.s32 256, 256
      %1455 = vsyncadd [#allocation4], %s1454
      %s1456 = sshll.u32 [#allocation11], 4
      %s1457 = int_to_ptr.vmem [resolvable:$true] %s1456
      %1462 = dma.vmem_to_hbm [thread:$0]  %s1457, 256, %s5, [#allocation4], 128, 128, 8
    $region45: #{tpu_custom_call.1} parent=1 // pred_fallthru
      _
    // Predicated region
    $region46: #{tpu_custom_call.1} parent=1 // pred_check
      _
    $region47: #{tpu_custom_call.1} parent=1 // pred_check_branch
      %1464 = sbr.rel (0) target = $region49
    $region48: #{tpu_custom_call.1} parent=1 // pred_region
      %1465 = dma.done [#allocation4], 256
    $region49: #{tpu_custom_call.1} parent=1 // pred_fallthru
      _
    %1466 = vsyncpa [#allocation3], 1
    %1467 = vsyncpa [#allocation6], 1
    %1468 = vsyncpa [#allocation9], 1
    %1469 = vsyncpa [#allocation4], 1

// kernel: tpu_custom_call.1
$region0: #{tpu_custom_call.1}
  #allocation0 [shape = 'u32[]', space=smem, size = 0x4, offset = 0x4, fixed_abs, tag = 'smem constant byte address 0x4 - core index']
  #allocation1 [shape = 'u32[144,128]{1,0:T(1,128)}', space=vmem, size = 0x12000, scoped, tag = 'internal scratch']
  %s0 = inlined_call_operand.hbm [shape: f32[2,8,128], index: 0, kind: input, shape index: {}]
  %s1 = inlined_call_operand.hbm [shape: f32[2,8,128], index: 1, kind: input, shape index: {}]
  %s2 = inlined_call_operand.hbm [shape: f32[2,8,128], index: 2, kind: input, shape index: {}]
  %s3 = inlined_call_operand.hbm [shape: f32[10,128,128], index: 3, kind: input, shape index: {}]
  %s4 = inlined_call_operand.hbm [shape: f32[10,128], index: 4, kind: input, shape index: {}]
  %s5 = inlined_call_operand.hbm [shape: f32[16,128], index: 5, kind: output, shape index: {}]
  %s6 = sld [smem:[#allocation0]]
  $region50: #{tpu_custom_call.1} parent=0
    _
  %s8 = ssub.s32 1, %s6
  %s9 = scalar_select 0, %s8, %s6
  $region1: #{tpu_custom_call.1} parent=0
    #allocation2 [shape = 'u8[8192]{0}', space=vmem, size = 0x2000, scoped, tag = 'input window, operand 0, single buffered']
    #allocation3 [shape = 's32[1]{0}', space=sflag, size = 0x4, scoped, tag = 'scoped memory for tpu_custom_call.1']
    #allocation4 [shape = 's32[1]{0}', space=sflag, size = 0x4, scoped, tag = 'scoped memory for tpu_custom_call.1']
    #allocation5 [shape = 'u8[8192]{0}', space=vmem, size = 0x2000, scoped, tag = 'input window, operand 1, single buffered']
    #allocation6 [shape = 's32[1]{0}', space=sflag, size = 0x4, scoped, tag = 'scoped memory for tpu_custom_call.1']
    #allocation7 [shape = 'u8[8192]{0}', space=vmem, size = 0x2000, scoped, tag = 'input window, operand 2, single buffered']
    #allocation8 [shape = 'u8[655360]{0}', space=vmem, size = 0xa0000, scoped, tag = 'input window, operand 3, single buffered']
    #allocation9 [shape = 's32[1]{0}', space=sflag, size = 0x4, scoped, tag = 'scoped memory for tpu_custom_call.1']
    #allocation10 [shape = 'u8[8192]{0}', space=vmem, size = 0x2000, scoped, tag = 'input window, operand 4, single buffered']
    #allocation11 [shape = 'u8[8192]{0}', space=vmem, size = 0x2000, scoped, tag = 'output window, operand 0, single buffered']
    %10 = vsyncpa [#allocation3], 0
    %11 = vsyncpa [#allocation6], 0
    %12 = vsyncpa [#allocation9], 0
    %13 = vsyncpa [#allocation4], 0
    // Predicated region
    $region2: #{tpu_custom_call.1} parent=1 // pred_check
      _
    $region3: #{tpu_custom_call.1} parent=1 // pred_check_branch
      %15 = sbr.rel (0) target = $region5
    $region4: #{tpu_custom_call.1} parent=1 // pred_region
      %s17 = ssub.s32 256, 256
      %18 = vsyncadd [#allocation3], %s17
      %s19 = sshll.u32 [#allocation2], 4
      %s20 = int_to_ptr.vmem [resolvable:$true] %s19
      %25 = dma.hbm_to_vmem [thread:$0]  %s0, 256, %s20, [#allocation3], 128, 128, 8
    $region5: #{tpu_custom_call.1} parent=1 // pred_fallthru
      _
    // Predicated region
    $region6: #{tpu_custom_call.1} parent=1 // pred_check
      _
    $region7: #{tpu_custom_call.1} parent=1 // pred_check_branch
      %27 = sbr.rel (0) target = $region9
    $region8: #{tpu_custom_call.1} parent=1 // pred_region
      %s29 = ssub.s32 256, 256
      %30 = vsyncadd [#allocation6], %s29
      %s31 = sshll.u32 [#allocation5], 4
      %s32 = int_to_ptr.vmem [resolvable:$true] %s31
      %37 = dma.hbm_to_vmem [thread:$0]  %s1, 256, %s32, [#allocation6], 128, 128, 8
    $region9: #{tpu_custom_call.1} parent=1 // pred_fallthru
      _
    // Predicated region
    $region10: #{tpu_custom_call.1} parent=1 // pred_check
      _
    $region11: #{tpu_custom_call.1} parent=1 // pred_check_branch
      %39 = sbr.rel (0) target = $region13
    $region12: #{tpu_custom_call.1} parent=1 // pred_region
      %s41 = ssub.s32 256, 256
      %42 = vsyncadd [#allocation6], %s41
      %s43 = sshll.u32 [#allocation7], 4
      %s44 = int_to_ptr.vmem [resolvable:$true] %s43
      %49 = dma.hbm_to_vmem [thread:$0]  %s2, 256, %s44, [#allocation6], 128, 128, 8
    $region13: #{tpu_custom_call.1} parent=1 // pred_fallthru
      _
    // Predicated region
    $region14: #{tpu_custom_call.1} parent=1 // pred_check
      _
    $region15: #{tpu_custom_call.1} parent=1 // pred_check_branch
      %51 = sbr.rel (0) target = $region17
    $region16: #{tpu_custom_call.1} parent=1 // pred_region
      %s53 = ssub.s32 20480, 20480
      %54 = vsyncadd [#allocation9], %s53
      %s55 = sshll.u32 [#allocation8], 4
      %s56 = int_to_ptr.vmem [resolvable:$true] %s55
      %61 = dma.hbm_to_vmem [thread:$0]  %s3, 20480, %s56, [#allocation9], 128, 128, 8
    $region17: #{tpu_custom_call.1} parent=1 // pred_fallthru
      _
    // Predicated region
    $region18: #{tpu_custom_call.1} parent=1 // pred_check
      _
    $region19: #{tpu_custom_call.1} parent=1 // pred_check_branch
      %63 = sbr.rel (0) target = $region21
    $region20: #{tpu_custom_call.1} parent=1 // pred_region
      %s65 = ssub.s32 256, 256
      %66 = vsyncadd [#allocation9], %s65
      %s67 = sshll.u32 [#allocation10], 4
      %s68 = int_to_ptr.vmem [resolvable:$true] %s67
      %73 = dma.hbm_to_vmem [thread:$0]  %s4, 256, %s68, [#allocation9], 128, 128, 8
    $region21: #{tpu_custom_call.1} parent=1 // pred_fallthru
      _
    // Predicated region
    $region22: #{tpu_custom_call.1} parent=1 // pred_check
      _
    $region23: #{tpu_custom_call.1} parent=1 // pred_check_branch
      %75 = sbr.rel (0) target = $region25
    $region24: #{tpu_custom_call.1} parent=1 // pred_region
      %76 = dma.done [#allocation3], 256
    $region25: #{tpu_custom_call.1} parent=1 // pred_fallthru
      _
    // Predicated region
    $region26: #{tpu_custom_call.1} parent=1 // pred_check
      _
    $region27: #{tpu_custom_call.1} parent=1 // pred_check_branch
      %78 = sbr.rel (0) target = $region29
    $region28: #{tpu_custom_call.1} parent=1 // pred_region
      %79 = dma.done [#allocation6], 256
    $region29: #{tpu_custom_call.1} parent=1 // pred_fallthru
      _
    // Predicated region
    $region30: #{tpu_custom_call.1} parent=1 // pred_check
      _
    $region31: #{tpu_custom_call.1} parent=1 // pred_check_branch
      %81 = sbr.rel (0) target = $region33
    $region32: #{tpu_custom_call.1} parent=1 // pred_region
      %82 = dma.done [#allocation6], 256
    $region33: #{tpu_custom_call.1} parent=1 // pred_fallthru
      _
    // Predicated region
    $region34: #{tpu_custom_call.1} parent=1 // pred_check
      _
    $region35: #{tpu_custom_call.1} parent=1 // pred_check_branch
      %84 = sbr.rel (0) target = $region37
    $region36: #{tpu_custom_call.1} parent=1 // pred_region
      %85 = dma.done [#allocation9], 20480
    $region37: #{tpu_custom_call.1} parent=1 // pred_fallthru
      _
    // Predicated region
    $region38: #{tpu_custom_call.1} parent=1 // pred_check
      _
    $region39: #{tpu_custom_call.1} parent=1 // pred_check_branch
      %87 = sbr.rel (0) target = $region41
    $region40: #{tpu_custom_call.1} parent=1 // pred_region
      %88 = dma.done [#allocation9], 256
    $region41: #{tpu_custom_call.1} parent=1 // pred_fallthru
      _
    %v89 = vld [vmem:[#allocation2] sm:$0xff]
    %v90 = vld [vmem:[#allocation2 + $0x8] sm:$0xff]
    %v91 = vld [vmem:[#allocation5] sm:$0xff]
    %v92 = vld [vmem:[#allocation5 + $0x8] sm:$0xff]
    %v93 = vld [vmem:[#allocation7] sm:$0xff]
    %v94 = vld [vmem:[#allocation7 + $0x8] sm:$0xff]
    %v95 = vld [vmem:[#allocation8] sm:$0xff]
    %v96 = vld [vmem:[#allocation8 + $0x8] sm:$0xff]
    %v97 = vld [vmem:[#allocation8 + $0x10] sm:$0xff]
    %v98 = vld [vmem:[#allocation8 + $0x18] sm:$0xff]
    %v99 = vld [vmem:[#allocation8 + $0x20] sm:$0xff]
    %v100 = vld [vmem:[#allocation8 + $0x28] sm:$0xff]
    %v101 = vld [vmem:[#allocation8 + $0x30] sm:$0xff]
    %v102 = vld [vmem:[#allocation8 + $0x38] sm:$0xff]
    %v103 = vld [vmem:[#allocation8 + $0x40] sm:$0xff]
    %v104 = vld [vmem:[#allocation8 + $0x48] sm:$0xff]
    %v105 = vld [vmem:[#allocation8 + $0x50] sm:$0xff]
    %v106 = vld [vmem:[#allocation8 + $0x58] sm:$0xff]
    %v107 = vld [vmem:[#allocation8 + $0x60] sm:$0xff]
    %v108 = vld [vmem:[#allocation8 + $0x68] sm:$0xff]
    %v109 = vld [vmem:[#allocation8 + $0x70] sm:$0xff]
    %v110 = vld [vmem:[#allocation8 + $0x78] sm:$0xff]
    %v111 = vld [vmem:[#allocation10] sm:$0x1]
    %v112 = vlaneseq
    %v113 = vshrl.u32 %v112, 7
    %v114 = vsub.s32 0, %v113
    %v115 = vrot.slane %v111, %v114
    %116 = vmatprep.subr.mxu0 0.0
    %117 = vmatpush1.msra.mxu0 %v95
    %118 = vmatprep.subr.mxu0 0.0
    %119 = vmatpush1.msra.mxu0 %v96
    %120 = vmatprep.subr.mxu0 0.0
    %121 = vmatpush1.msra.mxu0 %v97
    %122 = vmatprep.subr.mxu0 0.0
    %123 = vmatpush1.msra.mxu0 %v98
    %124 = vmatprep.subr.mxu0 0.0
    %125 = vmatpush1.msra.mxu0 %v99
    %126 = vmatprep.subr.mxu0 0.0
    %127 = vmatpush1.msra.mxu0 %v100
    %128 = vmatprep.subr.mxu0 0.0
    %129 = vmatpush1.msra.mxu0 %v101
    %130 = vmatprep.subr.mxu0 0.0
    %131 = vmatpush1.msra.mxu0 %v102
    %132 = vmatprep.subr.mxu0 0.0
    %133 = vmatpush1.msra.mxu0 %v103
    %134 = vmatprep.subr.mxu0 0.0
    %135 = vmatpush1.msra.mxu0 %v104
    %136 = vmatprep.subr.mxu0 0.0
    %137 = vmatpush1.msra.mxu0 %v105
    %138 = vmatprep.subr.mxu0 0.0
    %139 = vmatpush1.msra.mxu0 %v106
    %140 = vmatprep.subr.mxu0 0.0
    %141 = vmatpush1.msra.mxu0 %v107
    %142 = vmatprep.subr.mxu0 0.0
    %143 = vmatpush1.msra.mxu0 %v108
    %144 = vmatprep.subr.mxu0 0.0
    %145 = vmatpush1.msra.mxu0 %v109
    %146 = vmatprep.subr.mxu0 0.0
    %147 = vmatpush1.msra.mxu0 %v110
    %148 = vmatprep.subr.mxu0 0.0
    %149 = vmatpush1.msra.mxu0 0.0
    %150 = vmatprep.subr.mxu0 0.0
    %151 = vmatpush1.msra.mxu0 0.0
    %152 = vmatprep.subr.mxu0 0.0
    %153 = vmatpush1.msra.mxu0 0.0
    %154 = vmatprep.subr.mxu0 0.0
    %155 = vmatpush1.msra.mxu0 0.0
    %156 = vmatprep.subr.mxu0 0.0
    %157 = vmatpush1.msra.mxu0 0.0
    %158 = vmatprep.subr.mxu0 0.0
    %159 = vmatpush1.msra.mxu0 0.0
    %160 = vmatprep.subr.mxu0 0.0
    %161 = vmatpush1.msra.mxu0 0.0
    %162 = vmatprep.subr.mxu0 0.0
    %163 = vmatpush1.msra.mxu0 0.0
    %164 = vmatprep.subr.mxu0 0.0
    %165 = vmatpush1.msra.mxu0 0.0
    %166 = vmatprep.subr.mxu0 0.0
    %167 = vmatpush1.msra.mxu0 0.0
    %168 = vmatprep.subr.mxu0 0.0
    %169 = vmatpush1.msra.mxu0 0.0
    %170 = vmatprep.subr.mxu0 0.0
    %171 = vmatpush1.msra.mxu0 0.0
    %172 = vmatprep.subr.mxu0 0.0
    %173 = vmatpush1.msra.mxu0 0.0
    %174 = vmatprep.subr.mxu0 0.0
    %175 = vmatpush1.msra.mxu0 0.0
    %176 = vmatprep.subr.mxu0 0.0
    %177 = vmatpush1.msra.mxu0 0.0
    %178 = vmatprep.subr.mxu0 0.0
    %179 = vmatpush1.msra.mxu0 0.0
    %180 = vmatprep.mubr.f32.mxu0 0.0
    %181 = vmatmul.mubr.f32.gmra.mrb[0].mxu0 %v89
    %v182 = vpop.f32.mrb[0].mxu0
    %v183 = vadd.f32 %v115, %v182
    %v184 = vpop.f32.mrb[0].mxu0
    %185 = vmatprep.mubr.f32.mxu0 0.0
    %186 = vmatmul.mubr.f32.gmra.mrb[0].mxu0 %v90
    %v187 = vpop.f32.mrb[0].mxu0
    %v188 = vadd.f32 %v115, %v187
    %v189 = vpop.f32.mrb[0].mxu0
    %190 = vdwg.mxu0
    %v191 = vmax.f32 %v183, 0.0
    %v192 = vmax.f32 %v188, 0.0
    %s193 = scalar_lea.vmem [#allocation8], 128
    %v194 = vld [vmem:[%s193] sm:$0xff]
    %v195 = vld [vmem:[%s193 + $0x8] sm:$0xff]
    %v196 = vld [vmem:[%s193 + $0x10] sm:$0xff]
    %v197 = vld [vmem:[%s193 + $0x18] sm:$0xff]
    %v198 = vld [vmem:[%s193 + $0x20] sm:$0xff]
    %v199 = vld [vmem:[%s193 + $0x28] sm:$0xff]
    %v200 = vld [vmem:[%s193 + $0x30] sm:$0xff]
    %v201 = vld [vmem:[%s193 + $0x38] sm:$0xff]
    %v202 = vld [vmem:[%s193 + $0x40] sm:$0xff]
    %v203 = vld [vmem:[%s193 + $0x48] sm:$0xff]
    %v204 = vld [vmem:[%s193 + $0x50] sm:$0xff]
    %v205 = vld [vmem:[%s193 + $0x58] sm:$0xff]
    %v206 = vld [vmem:[%s193 + $0x60] sm:$0xff]
    %v207 = vld [vmem:[%s193 + $0x68] sm:$0xff]
    %v208 = vld [vmem:[%s193 + $0x70] sm:$0xff]
    %v209 = vld [vmem:[%s193 + $0x78] sm:$0xff]
    %v210 = vld [vmem:[#allocation10 + $0x1] sm:$0x1]
    %v211 = vlaneseq
    %v212 = vshrl.u32 %v211, 7
    %v213 = vsub.s32 0, %v212
    %v214 = vrot.slane %v210, %v213
    %215 = vmatprep.subr.mxu0 0.0
    %216 = vmatpush1.msra.mxu0 %v194
    %217 = vmatprep.subr.mxu0 0.0
    %218 = vmatpush1.msra.mxu0 %v195
    %219 = vmatprep.subr.mxu0 0.0
    %220 = vmatpush1.msra.mxu0 %v196
    %221 = vmatprep.subr.mxu0 0.0
    %222 = vmatpush1.msra.mxu0 %v197
    %223 = vmatprep.subr.mxu0 0.0
    %224 = vmatpush1.msra.mxu0 %v198
    %225 = vmatprep.subr.mxu0 0.0
    %226 = vmatpush1.msra.mxu0 %v199
    %227 = vmatprep.subr.mxu0 0.0
    %228 = vmatpush1.msra.mxu0 %v200
    %229 = vmatprep.subr.mxu0 0.0
    %230 = vmatpush1.msra.mxu0 %v201
    %231 = vmatprep.subr.mxu0 0.0
    %232 = vmatpush1.msra.mxu0 %v202
    %233 = vmatprep.subr.mxu0 0.0
    %234 = vmatpush1.msra.mxu0 %v203
    %235 = vmatprep.subr.mxu0 0.0
    %236 = vmatpush1.msra.mxu0 %v204
    %237 = vmatprep.subr.mxu0 0.0
    %238 = vmatpush1.msra.mxu0 %v205
    %239 = vmatprep.subr.mxu0 0.0
    %240 = vmatpush1.msra.mxu0 %v206
    %241 = vmatprep.subr.mxu0 0.0
    %242 = vmatpush1.msra.mxu0 %v207
    %243 = vmatprep.subr.mxu0 0.0
    %244 = vmatpush1.msra.mxu0 %v208
    %245 = vmatprep.subr.mxu0 0.0
    %246 = vmatpush1.msra.mxu0 %v209
    %247 = vmatprep.subr.mxu0 0.0
    %248 = vmatpush1.msra.mxu0 0.0
    %249 = vmatprep.subr.mxu0 0.0
    %250 = vmatpush1.msra.mxu0 0.0
    %251 = vmatprep.subr.mxu0 0.0
    %252 = vmatpush1.msra.mxu0 0.0
    %253 = vmatprep.subr.mxu0 0.0
    %254 = vmatpush1.msra.mxu0 0.0
    %255 = vmatprep.subr.mxu0 0.0
    %256 = vmatpush1.msra.mxu0 0.0
    %257 = vmatprep.subr.mxu0 0.0
    %258 = vmatpush1.msra.mxu0 0.0
    %259 = vmatprep.subr.mxu0 0.0
    %260 = vmatpush1.msra.mxu0 0.0
    %261 = vmatprep.subr.mxu0 0.0
    %262 = vmatpush1.msra.mxu0 0.0
    %263 = vmatprep.subr.mxu0 0.0
    %264 = vmatpush1.msra.mxu0 0.0
    %265 = vmatprep.subr.mxu0 0.0
    %266 = vmatpush1.msra.mxu0 0.0
    %267 = vmatprep.subr.mxu0 0.0
    %268 = vmatpush1.msra.mxu0 0.0
    %269 = vmatprep.subr.mxu0 0.0
    %270 = vmatpush1.msra.mxu0 0.0
    %271 = vmatprep.subr.mxu0 0.0
    %272 = vmatpush1.msra.mxu0 0.0
    %273 = vmatprep.subr.mxu0 0.0
    %274 = vmatpush1.msra.mxu0 0.0
    %275 = vmatprep.subr.mxu0 0.0
    %276 = vmatpush1.msra.mxu0 0.0
    %277 = vmatprep.subr.mxu0 0.0
    %278 = vmatpush1.msra.mxu0 0.0
    %279 = vmatprep.mubr.f32.mxu0 0.0
    %280 = vmatmul.mubr.f32.gmra.mrb[0].mxu0 %v191
    %v281 = vpop.f32.mrb[0].mxu0
    %v282 = vadd.f32 %v214, %v281
    %v283 = vpop.f32.mrb[0].mxu0
    %284 = vmatprep.mubr.f32.mxu0 0.0
    %285 = vmatmul.mubr.f32.gmra.mrb[0].mxu0 %v192
    %v286 = vpop.f32.mrb[0].mxu0
    %v287 = vadd.f32 %v214, %v286
    %v288 = vpop.f32.mrb[0].mxu0
    %289 = vdwg.mxu0
    %v290 = vmax.f32 %v282, 0.0
    %v291 = vmax.f32 %v287, 0.0
    %s292 = scalar_lea.vmem [#allocation8], 256
    %v293 = vld [vmem:[%s292] sm:$0xff]
    %v294 = vld [vmem:[%s292 + $0x8] sm:$0xff]
    %v295 = vld [vmem:[%s292 + $0x10] sm:$0xff]
    %v296 = vld [vmem:[%s292 + $0x18] sm:$0xff]
    %v297 = vld [vmem:[%s292 + $0x20] sm:$0xff]
    %v298 = vld [vmem:[%s292 + $0x28] sm:$0xff]
    %v299 = vld [vmem:[%s292 + $0x30] sm:$0xff]
    %v300 = vld [vmem:[%s292 + $0x38] sm:$0xff]
    %v301 = vld [vmem:[%s292 + $0x40] sm:$0xff]
    %v302 = vld [vmem:[%s292 + $0x48] sm:$0xff]
    %v303 = vld [vmem:[%s292 + $0x50] sm:$0xff]
    %v304 = vld [vmem:[%s292 + $0x58] sm:$0xff]
    %v305 = vld [vmem:[%s292 + $0x60] sm:$0xff]
    %v306 = vld [vmem:[%s292 + $0x68] sm:$0xff]
    %v307 = vld [vmem:[%s292 + $0x70] sm:$0xff]
    %v308 = vld [vmem:[%s292 + $0x78] sm:$0xff]
    %v309 = vld [vmem:[#allocation10 + $0x2] sm:$0x1]
    %v310 = vlaneseq
    %v311 = vshrl.u32 %v310, 7
    %v312 = vsub.s32 0, %v311
    %v313 = vrot.slane %v309, %v312
    %314 = vmatprep.subr.mxu0 0.0
    %315 = vmatpush1.msra.mxu0 %v293
    %316 = vmatprep.subr.mxu0 0.0
    %317 = vmatpush1.msra.mxu0 %v294
    %318 = vmatprep.subr.mxu0 0.0
    %319 = vmatpush1.msra.mxu0 %v295
    %320 = vmatprep.subr.mxu0 0.0
    %321 = vmatpush1.msra.mxu0 %v296
    %322 = vmatprep.subr.mxu0 0.0
    %323 = vmatpush1.msra.mxu0 %v297
    %324 = vmatprep.subr.mxu0 0.0
    %325 = vmatpush1.msra.mxu0 %v298
    %326 = vmatprep.subr.mxu0 0.0
    %327 = vmatpush1.msra.mxu0 %v299
    %328 = vmatprep.subr.mxu0 0.0
    %329 = vmatpush1.msra.mxu0 %v300
    %330 = vmatprep.subr.mxu0 0.0
    %331 = vmatpush1.msra.mxu0 %v301
    %332 = vmatprep.subr.mxu0 0.0
    %333 = vmatpush1.msra.mxu0 %v302
    %334 = vmatprep.subr.mxu0 0.0
    %335 = vmatpush1.msra.mxu0 %v303
    %336 = vmatprep.subr.mxu0 0.0
    %337 = vmatpush1.msra.mxu0 %v304
    %338 = vmatprep.subr.mxu0 0.0
    %339 = vmatpush1.msra.mxu0 %v305
    %340 = vmatprep.subr.mxu0 0.0
    %341 = vmatpush1.msra.mxu0 %v306
    %342 = vmatprep.subr.mxu0 0.0
    %343 = vmatpush1.msra.mxu0 %v307
    %344 = vmatprep.subr.mxu0 0.0
    %345 = vmatpush1.msra.mxu0 %v308
    %346 = vmatprep.subr.mxu0 0.0
    %347 = vmatpush1.msra.mxu0 0.0
    %348 = vmatprep.subr.mxu0 0.0
    %349 = vmatpush1.msra.mxu0 0.0
    %350 = vmatprep.subr.mxu0 0.0
    %351 = vmatpush1.msra.mxu0 0.0
    %352 = vmatprep.subr.mxu0 0.0
    %353 = vmatpush1.msra.mxu0 0.0
    %354 = vmatprep.subr.mxu0 0.0
    %355 = vmatpush1.msra.mxu0 0.0
    %356 = vmatprep.subr.mxu0 0.0
    %357 = vmatpush1.msra.mxu0 0.0
    %358 = vmatprep.subr.mxu0 0.0
    %359 = vmatpush1.msra.mxu0 0.0
    %360 = vmatprep.subr.mxu0 0.0
    %361 = vmatpush1.msra.mxu0 0.0
    %362 = vmatprep.subr.mxu0 0.0
    %363 = vmatpush1.msra.mxu0 0.0
    %364 = vmatprep.subr.mxu0 0.0
    %365 = vmatpush1.msra.mxu0 0.0
    %366 = vmatprep.subr.mxu0 0.0
    %367 = vmatpush1.msra.mxu0 0.0
    %368 = vmatprep.subr.mxu0 0.0
    %369 = vmatpush1.msra.mxu0 0.0
    %370 = vmatprep.subr.mxu0 0.0
    %371 = vmatpush1.msra.mxu0 0.0
    %372 = vmatprep.subr.mxu0 0.0
    %373 = vmatpush1.msra.mxu0 0.0
    %374 = vmatprep.subr.mxu0 0.0
    %375 = vmatpush1.msra.mxu0 0.0
    %376 = vmatprep.subr.mxu0 0.0
    %377 = vmatpush1.msra.mxu0 0.0
    %378 = vmatprep.mubr.f32.mxu0 0.0
    %379 = vmatmul.mubr.f32.gmra.mrb[0].mxu0 %v290
    %v380 = vpop.f32.mrb[0].mxu0
    %v381 = vadd.f32 %v313, %v380
    %v382 = vpop.f32.mrb[0].mxu0
    %383 = vmatprep.mubr.f32.mxu0 0.0
    %384 = vmatmul.mubr.f32.gmra.mrb[0].mxu0 %v291
    %v385 = vpop.f32.mrb[0].mxu0
    %v386 = vadd.f32 %v313, %v385
    %v387 = vpop.f32.mrb[0].mxu0
    %388 = vdwg.mxu0
    %s389 = scalar_lea.vmem [#allocation8], 384
    %v390 = vld [vmem:[%s389] sm:$0xff]
    %v391 = vld [vmem:[%s389 + $0x8] sm:$0xff]
    %v392 = vld [vmem:[%s389 + $0x10] sm:$0xff]
    %v393 = vld [vmem:[%s389 + $0x18] sm:$0xff]
    %v394 = vld [vmem:[%s389 + $0x20] sm:$0xff]
    %v395 = vld [vmem:[%s389 + $0x28] sm:$0xff]
    %v396 = vld [vmem:[%s389 + $0x30] sm:$0xff]
    %v397 = vld [vmem:[%s389 + $0x38] sm:$0xff]
    %v398 = vld [vmem:[%s389 + $0x40] sm:$0xff]
    %v399 = vld [vmem:[%s389 + $0x48] sm:$0xff]
    %v400 = vld [vmem:[%s389 + $0x50] sm:$0xff]
    %v401 = vld [vmem:[%s389 + $0x58] sm:$0xff]
    %v402 = vld [vmem:[%s389 + $0x60] sm:$0xff]
    %v403 = vld [vmem:[%s389 + $0x68] sm:$0xff]
    %v404 = vld [vmem:[%s389 + $0x70] sm:$0xff]
    %v405 = vld [vmem:[%s389 + $0x78] sm:$0xff]
    %v406 = vld [vmem:[#allocation10 + $0x3] sm:$0x1]
    %v407 = vlaneseq
    %v408 = vshrl.u32 %v407, 7
    %v409 = vsub.s32 0, %v408
    %v410 = vrot.slane %v406, %v409
    %411 = vmatprep.subr.mxu0 0.0
    %412 = vmatpush1.msra.mxu0 %v390
    %413 = vmatprep.subr.mxu0 0.0
    %414 = vmatpush1.msra.mxu0 %v391
    %415 = vmatprep.subr.mxu0 0.0
    %416 = vmatpush1.msra.mxu0 %v392
    %417 = vmatprep.subr.mxu0 0.0
    %418 = vmatpush1.msra.mxu0 %v393
    %419 = vmatprep.subr.mxu0 0.0
    %420 = vmatpush1.msra.mxu0 %v394
    %421 = vmatprep.subr.mxu0 0.0
    %422 = vmatpush1.msra.mxu0 %v395
    %423 = vmatprep.subr.mxu0 0.0
    %424 = vmatpush1.msra.mxu0 %v396
    %425 = vmatprep.subr.mxu0 0.0
    %426 = vmatpush1.msra.mxu0 %v397
    %427 = vmatprep.subr.mxu0 0.0
    %428 = vmatpush1.msra.mxu0 %v398
    %429 = vmatprep.subr.mxu0 0.0
    %430 = vmatpush1.msra.mxu0 %v399
    %431 = vmatprep.subr.mxu0 0.0
    %432 = vmatpush1.msra.mxu0 %v400
    %433 = vmatprep.subr.mxu0 0.0
    %434 = vmatpush1.msra.mxu0 %v401
    %435 = vmatprep.subr.mxu0 0.0
    %436 = vmatpush1.msra.mxu0 %v402
    %437 = vmatprep.subr.mxu0 0.0
    %438 = vmatpush1.msra.mxu0 %v403
    %439 = vmatprep.subr.mxu0 0.0
    %440 = vmatpush1.msra.mxu0 %v404
    %441 = vmatprep.subr.mxu0 0.0
    %442 = vmatpush1.msra.mxu0 %v405
    %443 = vmatprep.subr.mxu0 0.0
    %444 = vmatpush1.msra.mxu0 0.0
    %445 = vmatprep.subr.mxu0 0.0
    %446 = vmatpush1.msra.mxu0 0.0
    %447 = vmatprep.subr.mxu0 0.0
    %448 = vmatpush1.msra.mxu0 0.0
    %449 = vmatprep.subr.mxu0 0.0
    %450 = vmatpush1.msra.mxu0 0.0
    %451 = vmatprep.subr.mxu0 0.0
    %452 = vmatpush1.msra.mxu0 0.0
    %453 = vmatprep.subr.mxu0 0.0
    %454 = vmatpush1.msra.mxu0 0.0
    %455 = vmatprep.subr.mxu0 0.0
    %456 = vmatpush1.msra.mxu0 0.0
    %457 = vmatprep.subr.mxu0 0.0
    %458 = vmatpush1.msra.mxu0 0.0
    %459 = vmatprep.subr.mxu0 0.0
    %460 = vmatpush1.msra.mxu0 0.0
    %461 = vmatprep.subr.mxu0 0.0
    %462 = vmatpush1.msra.mxu0 0.0
    %463 = vmatprep.subr.mxu0 0.0
    %464 = vmatpush1.msra.mxu0 0.0
    %465 = vmatprep.subr.mxu0 0.0
    %466 = vmatpush1.msra.mxu0 0.0
    %467 = vmatprep.subr.mxu0 0.0
    %468 = vmatpush1.msra.mxu0 0.0
    %469 = vmatprep.subr.mxu0 0.0
    %470 = vmatpush1.msra.mxu0 0.0
    %471 = vmatprep.subr.mxu0 0.0
    %472 = vmatpush1.msra.mxu0 0.0
    %473 = vmatprep.subr.mxu0 0.0
    %474 = vmatpush1.msra.mxu0 0.0
    %475 = vmatprep.mubr.f32.mxu0 0.0
    %476 = vmatmul.mubr.f32.gmra.mrb[0].mxu0 %v93
    %v477 = vpop.f32.mrb[0].mxu0
    %v478 = vadd.f32 %v410, %v477
    %v479 = vpop.f32.mrb[0].mxu0
    %480 = vmatprep.mubr.f32.mxu0 0.0
    %481 = vmatmul.mubr.f32.gmra.mrb[0].mxu0 %v94
    %v482 = vpop.f32.mrb[0].mxu0
    %v483 = vadd.f32 %v410, %v482
    %v484 = vpop.f32.mrb[0].mxu0
    %485 = vdwg.mxu0
    %v486 = vmax.f32 %v478, 0.0
    %v487 = vmax.f32 %v483, 0.0
    %s488 = scalar_lea.vmem [#allocation8], 512
    %v489 = vld [vmem:[%s488] sm:$0xff]
    %v490 = vld [vmem:[%s488 + $0x8] sm:$0xff]
    %v491 = vld [vmem:[%s488 + $0x10] sm:$0xff]
    %v492 = vld [vmem:[%s488 + $0x18] sm:$0xff]
    %v493 = vld [vmem:[%s488 + $0x20] sm:$0xff]
    %v494 = vld [vmem:[%s488 + $0x28] sm:$0xff]
    %v495 = vld [vmem:[%s488 + $0x30] sm:$0xff]
    %v496 = vld [vmem:[%s488 + $0x38] sm:$0xff]
    %v497 = vld [vmem:[%s488 + $0x40] sm:$0xff]
    %v498 = vld [vmem:[%s488 + $0x48] sm:$0xff]
    %v499 = vld [vmem:[%s488 + $0x50] sm:$0xff]
    %v500 = vld [vmem:[%s488 + $0x58] sm:$0xff]
    %v501 = vld [vmem:[%s488 + $0x60] sm:$0xff]
    %v502 = vld [vmem:[%s488 + $0x68] sm:$0xff]
    %v503 = vld [vmem:[%s488 + $0x70] sm:$0xff]
    %v504 = vld [vmem:[%s488 + $0x78] sm:$0xff]
    %v505 = vld [vmem:[#allocation10 + $0x4] sm:$0x1]
    %v506 = vlaneseq
    %v507 = vshrl.u32 %v506, 7
    %v508 = vsub.s32 0, %v507
    %v509 = vrot.slane %v505, %v508
    %510 = vmatprep.subr.mxu0 0.0
    %511 = vmatpush1.msra.mxu0 %v489
    %512 = vmatprep.subr.mxu0 0.0
    %513 = vmatpush1.msra.mxu0 %v490
    %514 = vmatprep.subr.mxu0 0.0
    %515 = vmatpush1.msra.mxu0 %v491
    %516 = vmatprep.subr.mxu0 0.0
    %517 = vmatpush1.msra.mxu0 %v492
    %518 = vmatprep.subr.mxu0 0.0
    %519 = vmatpush1.msra.mxu0 %v493
    %520 = vmatprep.subr.mxu0 0.0
    %521 = vmatpush1.msra.mxu0 %v494
    %522 = vmatprep.subr.mxu0 0.0
    %523 = vmatpush1.msra.mxu0 %v495
    %524 = vmatprep.subr.mxu0 0.0
    %525 = vmatpush1.msra.mxu0 %v496
    %526 = vmatprep.subr.mxu0 0.0
    %527 = vmatpush1.msra.mxu0 %v497
    %528 = vmatprep.subr.mxu0 0.0
    %529 = vmatpush1.msra.mxu0 %v498
    %530 = vmatprep.subr.mxu0 0.0
    %531 = vmatpush1.msra.mxu0 %v499
    %532 = vmatprep.subr.mxu0 0.0
    %533 = vmatpush1.msra.mxu0 %v500
    %534 = vmatprep.subr.mxu0 0.0
    %535 = vmatpush1.msra.mxu0 %v501
    %536 = vmatprep.subr.mxu0 0.0
    %537 = vmatpush1.msra.mxu0 %v502
    %538 = vmatprep.subr.mxu0 0.0
    %539 = vmatpush1.msra.mxu0 %v503
    %540 = vmatprep.subr.mxu0 0.0
    %541 = vmatpush1.msra.mxu0 %v504
    %542 = vmatprep.subr.mxu0 0.0
    %543 = vmatpush1.msra.mxu0 0.0
    %544 = vmatprep.subr.mxu0 0.0
    %545 = vmatpush1.msra.mxu0 0.0
    %546 = vmatprep.subr.mxu0 0.0
    %547 = vmatpush1.msra.mxu0 0.0
    %548 = vmatprep.subr.mxu0 0.0
    %549 = vmatpush1.msra.mxu0 0.0
    %550 = vmatprep.subr.mxu0 0.0
    %551 = vmatpush1.msra.mxu0 0.0
    %552 = vmatprep.subr.mxu0 0.0
    %553 = vmatpush1.msra.mxu0 0.0
    %554 = vmatprep.subr.mxu0 0.0
    %555 = vmatpush1.msra.mxu0 0.0
    %556 = vmatprep.subr.mxu0 0.0
    %557 = vmatpush1.msra.mxu0 0.0
    %558 = vmatprep.subr.mxu0 0.0
    %559 = vmatpush1.msra.mxu0 0.0
    %560 = vmatprep.subr.mxu0 0.0
    %561 = vmatpush1.msra.mxu0 0.0
    %562 = vmatprep.subr.mxu0 0.0
    %563 = vmatpush1.msra.mxu0 0.0
    %564 = vmatprep.subr.mxu0 0.0
    %565 = vmatpush1.msra.mxu0 0.0
    %566 = vmatprep.subr.mxu0 0.0
    %567 = vmatpush1.msra.mxu0 0.0
    %568 = vmatprep.subr.mxu0 0.0
    %569 = vmatpush1.msra.mxu0 0.0
    %570 = vmatprep.subr.mxu0 0.0
    %571 = vmatpush1.msra.mxu0 0.0
    %572 = vmatprep.subr.mxu0 0.0
    %573 = vmatpush1.msra.mxu0 0.0
    %574 = vmatprep.mubr.f32.mxu0 0.0
    %575 = vmatmul.mubr.f32.gmra.mrb[0].mxu0 %v486
    %v576 = vpop.f32.mrb[0].mxu0
    %v577 = vadd.f32 %v509, %v576
    %v578 = vpop.f32.mrb[0].mxu0
    %579 = vmatprep.mubr.f32.mxu0 0.0
    %580 = vmatmul.mubr.f32.gmra.mrb[0].mxu0 %v487
    %v581 = vpop.f32.mrb[0].mxu0
    %v582 = vadd.f32 %v509, %v581
    %v583 = vpop.f32.mrb[0].mxu0
    %584 = vdwg.mxu0
    %v585 = vmax.f32 %v577, 0.0
    %v586 = vmax.f32 %v582, 0.0
    %s587 = scalar_lea.vmem [#allocation8], 640
    %v588 = vld [vmem:[%s587] sm:$0xff]
    %v589 = vld [vmem:[%s587 + $0x8] sm:$0xff]
    %v590 = vld [vmem:[%s587 + $0x10] sm:$0xff]
    %v591 = vld [vmem:[%s587 + $0x18] sm:$0xff]
    %v592 = vld [vmem:[%s587 + $0x20] sm:$0xff]
    %v593 = vld [vmem:[%s587 + $0x28] sm:$0xff]
    %v594 = vld [vmem:[%s587 + $0x30] sm:$0xff]
    %v595 = vld [vmem:[%s587 + $0x38] sm:$0xff]
    %v596 = vld [vmem:[%s587 + $0x40] sm:$0xff]
    %v597 = vld [vmem:[%s587 + $0x48] sm:$0xff]
    %v598 = vld [vmem:[%s587 + $0x50] sm:$0xff]
    %v599 = vld [vmem:[%s587 + $0x58] sm:$0xff]
    %v600 = vld [vmem:[%s587 + $0x60] sm:$0xff]
    %v601 = vld [vmem:[%s587 + $0x68] sm:$0xff]
    %v602 = vld [vmem:[%s587 + $0x70] sm:$0xff]
    %v603 = vld [vmem:[%s587 + $0x78] sm:$0xff]
    %v604 = vld [vmem:[#allocation10 + $0x5] sm:$0x1]
    %v605 = vlaneseq
    %v606 = vshrl.u32 %v605, 7
    %v607 = vsub.s32 0, %v606
    %v608 = vrot.slane %v604, %v607
    %609 = vmatprep.subr.mxu0 0.0
    %610 = vmatpush1.msra.mxu0 %v588
    %611 = vmatprep.subr.mxu0 0.0
    %612 = vmatpush1.msra.mxu0 %v589
    %613 = vmatprep.subr.mxu0 0.0
    %614 = vmatpush1.msra.mxu0 %v590
    %615 = vmatprep.subr.mxu0 0.0
    %616 = vmatpush1.msra.mxu0 %v591
    %617 = vmatprep.subr.mxu0 0.0
    %618 = vmatpush1.msra.mxu0 %v592
    %619 = vmatprep.subr.mxu0 0.0
    %620 = vmatpush1.msra.mxu0 %v593
    %621 = vmatprep.subr.mxu0 0.0
    %622 = vmatpush1.msra.mxu0 %v594
    %623 = vmatprep.subr.mxu0 0.0
    %624 = vmatpush1.msra.mxu0 %v595
    %625 = vmatprep.subr.mxu0 0.0
    %626 = vmatpush1.msra.mxu0 %v596
    %627 = vmatprep.subr.mxu0 0.0
    %628 = vmatpush1.msra.mxu0 %v597
    %629 = vmatprep.subr.mxu0 0.0
    %630 = vmatpush1.msra.mxu0 %v598
    %631 = vmatprep.subr.mxu0 0.0
    %632 = vmatpush1.msra.mxu0 %v599
    %633 = vmatprep.subr.mxu0 0.0
    %634 = vmatpush1.msra.mxu0 %v600
    %635 = vmatprep.subr.mxu0 0.0
    %636 = vmatpush1.msra.mxu0 %v601
    %637 = vmatprep.subr.mxu0 0.0
    %638 = vmatpush1.msra.mxu0 %v602
    %639 = vmatprep.subr.mxu0 0.0
    %640 = vmatpush1.msra.mxu0 %v603
    %641 = vmatprep.subr.mxu0 0.0
    %642 = vmatpush1.msra.mxu0 0.0
    %643 = vmatprep.subr.mxu0 0.0
    %644 = vmatpush1.msra.mxu0 0.0
    %645 = vmatprep.subr.mxu0 0.0
    %646 = vmatpush1.msra.mxu0 0.0
    %647 = vmatprep.subr.mxu0 0.0
    %648 = vmatpush1.msra.mxu0 0.0
    %649 = vmatprep.subr.mxu0 0.0
    %650 = vmatpush1.msra.mxu0 0.0
    %651 = vmatprep.subr.mxu0 0.0
    %652 = vmatpush1.msra.mxu0 0.0
    %653 = vmatprep.subr.mxu0 0.0
    %654 = vmatpush1.msra.mxu0 0.0
    %655 = vmatprep.subr.mxu0 0.0
    %656 = vmatpush1.msra.mxu0 0.0
    %657 = vmatprep.subr.mxu0 0.0
    %658 = vmatpush1.msra.mxu0 0.0
    %659 = vmatprep.subr.mxu0 0.0
    %660 = vmatpush1.msra.mxu0 0.0
    %661 = vmatprep.subr.mxu0 0.0
    %662 = vmatpush1.msra.mxu0 0.0
    %663 = vmatprep.subr.mxu0 0.0
    %664 = vmatpush1.msra.mxu0 0.0
    %665 = vmatprep.subr.mxu0 0.0
    %666 = vmatpush1.msra.mxu0 0.0
    %667 = vmatprep.subr.mxu0 0.0
    %668 = vmatpush1.msra.mxu0 0.0
    %669 = vmatprep.subr.mxu0 0.0
    %670 = vmatpush1.msra.mxu0 0.0
    %671 = vmatprep.subr.mxu0 0.0
    %672 = vmatpush1.msra.mxu0 0.0
    %673 = vmatprep.mubr.f32.mxu0 0.0
    %674 = vmatmul.mubr.f32.gmra.mrb[0].mxu0 %v585
    %v675 = vpop.f32.mrb[0].mxu0
    %v676 = vadd.f32 %v608, %v675
    %v677 = vpop.f32.mrb[0].mxu0
    %678 = vmatprep.mubr.f32.mxu0 0.0
    %679 = vmatmul.mubr.f32.gmra.mrb[0].mxu0 %v586
    %v680 = vpop.f32.mrb[0].mxu0
    %v681 = vadd.f32 %v608, %v680
    %v682 = vpop.f32.mrb[0].mxu0
    %683 = vdwg.mxu0
    %s684 = scalar_lea.vmem [#allocation8], 768
    %v685 = vld [vmem:[%s684] sm:$0xff]
    %v686 = vld [vmem:[%s684 + $0x8] sm:$0xff]
    %v687 = vld [vmem:[%s684 + $0x10] sm:$0xff]
    %v688 = vld [vmem:[%s684 + $0x18] sm:$0xff]
    %v689 = vld [vmem:[%s684 + $0x20] sm:$0xff]
    %v690 = vld [vmem:[%s684 + $0x28] sm:$0xff]
    %v691 = vld [vmem:[%s684 + $0x30] sm:$0xff]
    %v692 = vld [vmem:[%s684 + $0x38] sm:$0xff]
    %v693 = vld [vmem:[%s684 + $0x40] sm:$0xff]
    %v694 = vld [vmem:[%s684 + $0x48] sm:$0xff]
    %v695 = vld [vmem:[%s684 + $0x50] sm:$0xff]
    %v696 = vld [vmem:[%s684 + $0x58] sm:$0xff]
    %v697 = vld [vmem:[%s684 + $0x60] sm:$0xff]
    %v698 = vld [vmem:[%s684 + $0x68] sm:$0xff]
    %v699 = vld [vmem:[%s684 + $0x70] sm:$0xff]
    %v700 = vld [vmem:[%s684 + $0x78] sm:$0xff]
    %v701 = vld [vmem:[#allocation10 + $0x6] sm:$0x1]
    %v702 = vlaneseq
    %v703 = vshrl.u32 %v702, 7
    %v704 = vsub.s32 0, %v703
    %v705 = vrot.slane %v701, %v704
    %706 = vmatprep.subr.mxu0 0.0
    %707 = vmatpush1.msra.mxu0 %v685
    %708 = vmatprep.subr.mxu0 0.0
    %709 = vmatpush1.msra.mxu0 %v686
    %710 = vmatprep.subr.mxu0 0.0
    %711 = vmatpush1.msra.mxu0 %v687
    %712 = vmatprep.subr.mxu0 0.0
    %713 = vmatpush1.msra.mxu0 %v688
    %714 = vmatprep.subr.mxu0 0.0
    %715 = vmatpush1.msra.mxu0 %v689
    %716 = vmatprep.subr.mxu0 0.0
    %717 = vmatpush1.msra.mxu0 %v690
    %718 = vmatprep.subr.mxu0 0.0
    %719 = vmatpush1.msra.mxu0 %v691
    %720 = vmatprep.subr.mxu0 0.0
    %721 = vmatpush1.msra.mxu0 %v692
    %722 = vmatprep.subr.mxu0 0.0
    %723 = vmatpush1.msra.mxu0 %v693
    %724 = vmatprep.subr.mxu0 0.0
    %725 = vmatpush1.msra.mxu0 %v694
    %726 = vmatprep.subr.mxu0 0.0
    %727 = vmatpush1.msra.mxu0 %v695
    %728 = vmatprep.subr.mxu0 0.0
    %729 = vmatpush1.msra.mxu0 %v696
    %730 = vmatprep.subr.mxu0 0.0
    %731 = vmatpush1.msra.mxu0 %v697
    %732 = vmatprep.subr.mxu0 0.0
    %733 = vmatpush1.msra.mxu0 %v698
    %734 = vmatprep.subr.mxu0 0.0
    %735 = vmatpush1.msra.mxu0 %v699
    %736 = vmatprep.subr.mxu0 0.0
    %737 = vmatpush1.msra.mxu0 %v700
    %738 = vmatprep.subr.mxu0 0.0
    %739 = vmatpush1.msra.mxu0 0.0
    %740 = vmatprep.subr.mxu0 0.0
    %741 = vmatpush1.msra.mxu0 0.0
    %742 = vmatprep.subr.mxu0 0.0
    %743 = vmatpush1.msra.mxu0 0.0
    %744 = vmatprep.subr.mxu0 0.0
    %745 = vmatpush1.msra.mxu0 0.0
    %746 = vmatprep.subr.mxu0 0.0
    %747 = vmatpush1.msra.mxu0 0.0
    %748 = vmatprep.subr.mxu0 0.0
    %749 = vmatpush1.msra.mxu0 0.0
    %750 = vmatprep.subr.mxu0 0.0
    %751 = vmatpush1.msra.mxu0 0.0
    %752 = vmatprep.subr.mxu0 0.0
    %753 = vmatpush1.msra.mxu0 0.0
    %754 = vmatprep.subr.mxu0 0.0
    %755 = vmatpush1.msra.mxu0 0.0
    %756 = vmatprep.subr.mxu0 0.0
    %757 = vmatpush1.msra.mxu0 0.0
    %758 = vmatprep.subr.mxu0 0.0
    %759 = vmatpush1.msra.mxu0 0.0
    %760 = vmatprep.subr.mxu0 0.0
    %761 = vmatpush1.msra.mxu0 0.0
    %762 = vmatprep.subr.mxu0 0.0
    %763 = vmatpush1.msra.mxu0 0.0
    %764 = vmatprep.subr.mxu0 0.0
    %765 = vmatpush1.msra.mxu0 0.0
    %766 = vmatprep.subr.mxu0 0.0
    %767 = vmatpush1.msra.mxu0 0.0
    %768 = vmatprep.subr.mxu0 0.0
    %769 = vmatpush1.msra.mxu0 0.0
    %770 = vmatprep.mubr.f32.mxu0 0.0
    %771 = vmatmul.mubr.f32.gmra.mrb[0].mxu0 %v91
    %v772 = vpop.f32.mrb[0].mxu0
    %v773 = vadd.f32 %v705, %v772
    %v774 = vpop.f32.mrb[0].mxu0
    %775 = vmatprep.mubr.f32.mxu0 0.0
    %776 = vmatmul.mubr.f32.gmra.mrb[0].mxu0 %v92
    %v777 = vpop.f32.mrb[0].mxu0
    %v778 = vadd.f32 %v705, %v777
    %v779 = vpop.f32.mrb[0].mxu0
    %780 = vdwg.mxu0
    %v781 = vmax.f32 %v773, 0.0
    %v782 = vmax.f32 %v778, 0.0
    %s783 = scalar_lea.vmem [#allocation8], 896
    %v784 = vld [vmem:[%s783] sm:$0xff]
    %v785 = vld [vmem:[%s783 + $0x8] sm:$0xff]
    %v786 = vld [vmem:[%s783 + $0x10] sm:$0xff]
    %v787 = vld [vmem:[%s783 + $0x18] sm:$0xff]
    %v788 = vld [vmem:[%s783 + $0x20] sm:$0xff]
    %v789 = vld [vmem:[%s783 + $0x28] sm:$0xff]
    %v790 = vld [vmem:[%s783 + $0x30] sm:$0xff]
    %v791 = vld [vmem:[%s783 + $0x38] sm:$0xff]
    %v792 = vld [vmem:[%s783 + $0x40] sm:$0xff]
    %v793 = vld [vmem:[%s783 + $0x48] sm:$0xff]
    %v794 = vld [vmem:[%s783 + $0x50] sm:$0xff]
    %v795 = vld [vmem:[%s783 + $0x58] sm:$0xff]
    %v796 = vld [vmem:[%s783 + $0x60] sm:$0xff]
    %v797 = vld [vmem:[%s783 + $0x68] sm:$0xff]
    %v798 = vld [vmem:[%s783 + $0x70] sm:$0xff]
    %v799 = vld [vmem:[%s783 + $0x78] sm:$0xff]
    %v800 = vld [vmem:[#allocation10 + $0x7] sm:$0x1]
    %v801 = vlaneseq
    %v802 = vshrl.u32 %v801, 7
    %v803 = vsub.s32 0, %v802
    %v804 = vrot.slane %v800, %v803
    %805 = vmatprep.subr.mxu0 0.0
    %806 = vmatpush1.msra.mxu0 %v784
    %807 = vmatprep.subr.mxu0 0.0
    %808 = vmatpush1.msra.mxu0 %v785
    %809 = vmatprep.subr.mxu0 0.0
    %810 = vmatpush1.msra.mxu0 %v786
    %811 = vmatprep.subr.mxu0 0.0
    %812 = vmatpush1.msra.mxu0 %v787
    %813 = vmatprep.subr.mxu0 0.0
    %814 = vmatpush1.msra.mxu0 %v788
    %815 = vmatprep.subr.mxu0 0.0
    %816 = vmatpush1.msra.mxu0 %v789
    %817 = vmatprep.subr.mxu0 0.0
    %818 = vmatpush1.msra.mxu0 %v790
    %819 = vmatprep.subr.mxu0 0.0
    %820 = vmatpush1.msra.mxu0 %v791
    %821 = vmatprep.subr.mxu0 0.0
    %822 = vmatpush1.msra.mxu0 %v792
    %823 = vmatprep.subr.mxu0 0.0
    %824 = vmatpush1.msra.mxu0 %v793
    %825 = vmatprep.subr.mxu0 0.0
    %826 = vmatpush1.msra.mxu0 %v794
    %827 = vmatprep.subr.mxu0 0.0
    %828 = vmatpush1.msra.mxu0 %v795
    %829 = vmatprep.subr.mxu0 0.0
    %830 = vmatpush1.msra.mxu0 %v796
    %831 = vmatprep.subr.mxu0 0.0
    %832 = vmatpush1.msra.mxu0 %v797
    %833 = vmatprep.subr.mxu0 0.0
    %834 = vmatpush1.msra.mxu0 %v798
    %835 = vmatprep.subr.mxu0 0.0
    %836 = vmatpush1.msra.mxu0 %v799
    %837 = vmatprep.subr.mxu0 0.0
    %838 = vmatpush1.msra.mxu0 0.0
    %839 = vmatprep.subr.mxu0 0.0
    %840 = vmatpush1.msra.mxu0 0.0
    %841 = vmatprep.subr.mxu0 0.0
    %842 = vmatpush1.msra.mxu0 0.0
    %843 = vmatprep.subr.mxu0 0.0
    %844 = vmatpush1.msra.mxu0 0.0
    %845 = vmatprep.subr.mxu0 0.0
    %846 = vmatpush1.msra.mxu0 0.0
    %847 = vmatprep.subr.mxu0 0.0
    %848 = vmatpush1.msra.mxu0 0.0
    %849 = vmatprep.subr.mxu0 0.0
    %850 = vmatpush1.msra.mxu0 0.0
    %851 = vmatprep.subr.mxu0 0.0
    %852 = vmatpush1.msra.mxu0 0.0
    %853 = vmatprep.subr.mxu0 0.0
    %854 = vmatpush1.msra.mxu0 0.0
    %855 = vmatprep.subr.mxu0 0.0
    %856 = vmatpush1.msra.mxu0 0.0
    %857 = vmatprep.subr.mxu0 0.0
    %858 = vmatpush1.msra.mxu0 0.0
    %859 = vmatprep.subr.mxu0 0.0
    %860 = vmatpush1.msra.mxu0 0.0
    %861 = vmatprep.subr.mxu0 0.0
    %862 = vmatpush1.msra.mxu0 0.0
    %863 = vmatprep.subr.mxu0 0.0
    %864 = vmatpush1.msra.mxu0 0.0
    %865 = vmatprep.subr.mxu0 0.0
    %866 = vmatpush1.msra.mxu0 0.0
    %867 = vmatprep.subr.mxu0 0.0
    %868 = vmatpush1.msra.mxu0 0.0
    %869 = vmatprep.mubr.f32.mxu0 0.0
    %870 = vmatmul.mubr.f32.gmra.mrb[0].mxu0 %v781
    %v871 = vpop.f32.mrb[0].mxu0
    %v872 = vadd.f32 %v804, %v871
    %v873 = vpop.f32.mrb[0].mxu0
    %874 = vmatprep.mubr.f32.mxu0 0.0
    %875 = vmatmul.mubr.f32.gmra.mrb[0].mxu0 %v782
    %v876 = vpop.f32.mrb[0].mxu0
    %v877 = vadd.f32 %v804, %v876
    %v878 = vpop.f32.mrb[0].mxu0
    %879 = vdwg.mxu0
    %v880 = vmax.f32 %v872, 0.0
    %v881 = vmax.f32 %v877, 0.0
    %s882 = scalar_lea.vmem [#allocation8], 1024
    %v883 = vld [vmem:[%s882] sm:$0xff]
    %v884 = vld [vmem:[%s882 + $0x8] sm:$0xff]
    %v885 = vld [vmem:[%s882 + $0x10] sm:$0xff]
    %v886 = vld [vmem:[%s882 + $0x18] sm:$0xff]
    %v887 = vld [vmem:[%s882 + $0x20] sm:$0xff]
    %v888 = vld [vmem:[%s882 + $0x28] sm:$0xff]
    %v889 = vld [vmem:[%s882 + $0x30] sm:$0xff]
    %v890 = vld [vmem:[%s882 + $0x38] sm:$0xff]
    %v891 = vld [vmem:[%s882 + $0x40] sm:$0xff]
    %v892 = vld [vmem:[%s882 + $0x48] sm:$0xff]
    %v893 = vld [vmem:[%s882 + $0x50] sm:$0xff]
    %v894 = vld [vmem:[%s882 + $0x58] sm:$0xff]
    %v895 = vld [vmem:[%s882 + $0x60] sm:$0xff]
    %v896 = vld [vmem:[%s882 + $0x68] sm:$0xff]
    %v897 = vld [vmem:[%s882 + $0x70] sm:$0xff]
    %v898 = vld [vmem:[%s882 + $0x78] sm:$0xff]
    %v899 = vld [vmem:[#allocation10 + $0x8] sm:$0x1]
    %v900 = vlaneseq
    %v901 = vshrl.u32 %v900, 7
    %v902 = vsub.s32 0, %v901
    %v903 = vrot.slane %v899, %v902
    %904 = vmatprep.subr.mxu0 0.0
    %905 = vmatpush1.msra.mxu0 %v883
    %906 = vmatprep.subr.mxu0 0.0
    %907 = vmatpush1.msra.mxu0 %v884
    %908 = vmatprep.subr.mxu0 0.0
    %909 = vmatpush1.msra.mxu0 %v885
    %910 = vmatprep.subr.mxu0 0.0
    %911 = vmatpush1.msra.mxu0 %v886
    %912 = vmatprep.subr.mxu0 0.0
    %913 = vmatpush1.msra.mxu0 %v887
    %914 = vmatprep.subr.mxu0 0.0
    %915 = vmatpush1.msra.mxu0 %v888
    %916 = vmatprep.subr.mxu0 0.0
    %917 = vmatpush1.msra.mxu0 %v889
    %918 = vmatprep.subr.mxu0 0.0
    %919 = vmatpush1.msra.mxu0 %v890
    %920 = vmatprep.subr.mxu0 0.0
    %921 = vmatpush1.msra.mxu0 %v891
    %922 = vmatprep.subr.mxu0 0.0
    %923 = vmatpush1.msra.mxu0 %v892
    %924 = vmatprep.subr.mxu0 0.0
    %925 = vmatpush1.msra.mxu0 %v893
    %926 = vmatprep.subr.mxu0 0.0
    %927 = vmatpush1.msra.mxu0 %v894
    %928 = vmatprep.subr.mxu0 0.0
    %929 = vmatpush1.msra.mxu0 %v895
    %930 = vmatprep.subr.mxu0 0.0
    %931 = vmatpush1.msra.mxu0 %v896
    %932 = vmatprep.subr.mxu0 0.0
    %933 = vmatpush1.msra.mxu0 %v897
    %934 = vmatprep.subr.mxu0 0.0
    %935 = vmatpush1.msra.mxu0 %v898
    %936 = vmatprep.subr.mxu0 0.0
    %937 = vmatpush1.msra.mxu0 0.0
    %938 = vmatprep.subr.mxu0 0.0
    %939 = vmatpush1.msra.mxu0 0.0
    %940 = vmatprep.subr.mxu0 0.0
    %941 = vmatpush1.msra.mxu0 0.0
    %942 = vmatprep.subr.mxu0 0.0
    %943 = vmatpush1.msra.mxu0 0.0
    %944 = vmatprep.subr.mxu0 0.0
    %945 = vmatpush1.msra.mxu0 0.0
    %946 = vmatprep.subr.mxu0 0.0
    %947 = vmatpush1.msra.mxu0 0.0
    %948 = vmatprep.subr.mxu0 0.0
    %949 = vmatpush1.msra.mxu0 0.0
    %950 = vmatprep.subr.mxu0 0.0
    %951 = vmatpush1.msra.mxu0 0.0
    %952 = vmatprep.subr.mxu0 0.0
    %953 = vmatpush1.msra.mxu0 0.0
    %954 = vmatprep.subr.mxu0 0.0
    %955 = vmatpush1.msra.mxu0 0.0
    %956 = vmatprep.subr.mxu0 0.0
    %957 = vmatpush1.msra.mxu0 0.0
    %958 = vmatprep.subr.mxu0 0.0
    %959 = vmatpush1.msra.mxu0 0.0
    %960 = vmatprep.subr.mxu0 0.0
    %961 = vmatpush1.msra.mxu0 0.0
    %962 = vmatprep.subr.mxu0 0.0
    %963 = vmatpush1.msra.mxu0 0.0
    %964 = vmatprep.subr.mxu0 0.0
    %965 = vmatpush1.msra.mxu0 0.0
    %966 = vmatprep.subr.mxu0 0.0
    %967 = vmatpush1.msra.mxu0 0.0
    %968 = vmatprep.mubr.f32.mxu0 0.0
    %969 = vmatmul.mubr.f32.gmra.mrb[0].mxu0 %v880
    %v970 = vpop.f32.mrb[0].mxu0
    %v971 = vadd.f32 %v903, %v970
    %v972 = vpop.f32.mrb[0].mxu0
    %973 = vmatprep.mubr.f32.mxu0 0.0
    %974 = vmatmul.mubr.f32.gmra.mrb[0].mxu0 %v881
    %v975 = vpop.f32.mrb[0].mxu0
    %v976 = vadd.f32 %v903, %v975
    %v977 = vpop.f32.mrb[0].mxu0
    %978 = vdwg.mxu0
    %979 = vmatprep.subr.mxu0 0.0
    %980 = vmatpush1.xpose.msra.mxu0 %v676
    %981 = vmatprep.subr.mxu0 0.0
    %982 = vmatpush1.xpose.msra.mxu0 0.0
    %983 = vmatprep.subr.mxu0 0.0
    %984 = vmatpush1.xpose.msra.mxu0 0.0
    %985 = vmatprep.subr.mxu0 0.0
    %986 = vmatpush1.xpose.msra.mxu0 0.0
    %987 = vmatprep.subr.mxu0 0.0
    %988 = vmatpush1.xpose.msra.mxu0 0.0
    %989 = vmatprep.subr.mxu0 0.0
    %990 = vmatpush1.xpose.msra.mxu0 0.0
    %991 = vmatprep.subr.mxu0 0.0
    %992 = vmatpush1.xpose.msra.mxu0 0.0
    %993 = vmatprep.subr.mxu0 0.0
    %994 = vmatpush1.xpose.msra.mxu0 0.0
    %995 = vmatprep.subr.mxu0 0.0
    %996 = vmatpush1.xpose.msra.mxu0 0.0
    %997 = vmatprep.subr.mxu0 0.0
    %998 = vmatpush1.xpose.msra.mxu0 0.0
    %999 = vmatprep.subr.mxu0 0.0
    %1000 = vmatpush1.xpose.msra.mxu0 0.0
    %1001 = vmatprep.subr.mxu0 0.0
    %1002 = vmatpush1.xpose.msra.mxu0 0.0
    %1003 = vmatprep.subr.mxu0 0.0
    %1004 = vmatpush1.xpose.msra.mxu0 0.0
    %1005 = vmatprep.subr.mxu0 0.0
    %1006 = vmatpush1.xpose.msra.mxu0 0.0
    %1007 = vmatprep.subr.mxu0 0.0
    %1008 = vmatpush1.xpose.msra.mxu0 0.0
    %1009 = vmatprep.subr.mxu0 0.0
    %1010 = vmatpush1.xpose.msra.mxu0 0.0
    %1011 = vmatprep.subr.mxu0 0.0
    %1012 = vmatpush1.xpose.msra.mxu0 0.0
    %1013 = vmatprep.subr.mxu0 0.0
    %1014 = vmatpush1.xpose.msra.mxu0 0.0
    %1015 = vmatprep.subr.mxu0 0.0
    %1016 = vmatpush1.xpose.msra.mxu0 0.0
    %1017 = vmatprep.subr.mxu0 0.0
    %1018 = vmatpush1.xpose.msra.mxu0 0.0
    %1019 = vmatprep.subr.mxu0 0.0
    %1020 = vmatpush1.xpose.msra.mxu0 0.0
    %1021 = vmatprep.subr.mxu0 0.0
    %1022 = vmatpush1.xpose.msra.mxu0 0.0
    %1023 = vmatprep.subr.mxu0 0.0
    %1024 = vmatpush1.xpose.msra.mxu0 0.0
    %1025 = vmatprep.subr.mxu0 0.0
    %1026 = vmatpush1.xpose.msra.mxu0 0.0
    %1027 = vmatprep.subr.mxu0 0.0
    %1028 = vmatpush1.xpose.msra.mxu0 0.0
    %1029 = vmatprep.subr.mxu0 0.0
    %1030 = vmatpush1.xpose.msra.mxu0 0.0
    %1031 = vmatprep.subr.mxu0 0.0
    %1032 = vmatpush1.xpose.msra.mxu0 0.0
    %1033 = vmatprep.subr.mxu0 0.0
    %1034 = vmatpush1.xpose.msra.mxu0 0.0
    %1035 = vmatprep.subr.mxu0 0.0
    %1036 = vmatpush1.xpose.msra.mxu0 0.0
    %1037 = vmatprep.subr.mxu0 0.0
    %1038 = vmatpush1.xpose.msra.mxu0 0.0
    %1039 = vmatprep.subr.mxu0 0.0
    %1040 = vmatpush1.xpose.msra.mxu0 0.0
    %1041 = vmatprep.subr.mxu0 0.0
    %1042 = vmatpush1.xpose.msra.mxu0 0.0
    %1043 = vmatprep.mubr.f32.mxu0 0.0
    %1044 = vmatmul.mubr.f32.gmra.mrb[0].mxu0 %v381
    %v1045 = vpop.f32.mrb[0].mxu0
    %v1046 = vadd.f32 0.0, %v1045
    %v1047 = vpop.f32.mrb[0].mxu0
    %1048 = vdwg.mxu0
    %1049 = vmatprep.subr.mxu0 0.0
    %1050 = vmatpush1.xpose.msra.mxu0 %v681
    %1051 = vmatprep.subr.mxu0 0.0
    %1052 = vmatpush1.xpose.msra.mxu0 0.0
    %1053 = vmatprep.subr.mxu0 0.0
    %1054 = vmatpush1.xpose.msra.mxu0 0.0
    %1055 = vmatprep.subr.mxu0 0.0
    %1056 = vmatpush1.xpose.msra.mxu0 0.0
    %1057 = vmatprep.subr.mxu0 0.0
    %1058 = vmatpush1.xpose.msra.mxu0 0.0
    %1059 = vmatprep.subr.mxu0 0.0
    %1060 = vmatpush1.xpose.msra.mxu0 0.0
    %1061 = vmatprep.subr.mxu0 0.0
    %1062 = vmatpush1.xpose.msra.mxu0 0.0
    %1063 = vmatprep.subr.mxu0 0.0
    %1064 = vmatpush1.xpose.msra.mxu0 0.0
    %1065 = vmatprep.subr.mxu0 0.0
    %1066 = vmatpush1.xpose.msra.mxu0 0.0
    %1067 = vmatprep.subr.mxu0 0.0
    %1068 = vmatpush1.xpose.msra.mxu0 0.0
    %1069 = vmatprep.subr.mxu0 0.0
    %1070 = vmatpush1.xpose.msra.mxu0 0.0
    %1071 = vmatprep.subr.mxu0 0.0
    %1072 = vmatpush1.xpose.msra.mxu0 0.0
    %1073 = vmatprep.subr.mxu0 0.0
    %1074 = vmatpush1.xpose.msra.mxu0 0.0
    %1075 = vmatprep.subr.mxu0 0.0
    %1076 = vmatpush1.xpose.msra.mxu0 0.0
    %1077 = vmatprep.subr.mxu0 0.0
    %1078 = vmatpush1.xpose.msra.mxu0 0.0
    %1079 = vmatprep.subr.mxu0 0.0
    %1080 = vmatpush1.xpose.msra.mxu0 0.0
    %1081 = vmatprep.subr.mxu0 0.0
    %1082 = vmatpush1.xpose.msra.mxu0 0.0
    %1083 = vmatprep.subr.mxu0 0.0
    %1084 = vmatpush1.xpose.msra.mxu0 0.0
    %1085 = vmatprep.subr.mxu0 0.0
    %1086 = vmatpush1.xpose.msra.mxu0 0.0
    %1087 = vmatprep.subr.mxu0 0.0
    %1088 = vmatpush1.xpose.msra.mxu0 0.0
    %1089 = vmatprep.subr.mxu0 0.0
    %1090 = vmatpush1.xpose.msra.mxu0 0.0
    %1091 = vmatprep.subr.mxu0 0.0
    %1092 = vmatpush1.xpose.msra.mxu0 0.0
    %1093 = vmatprep.subr.mxu0 0.0
    %1094 = vmatpush1.xpose.msra.mxu0 0.0
    %1095 = vmatprep.subr.mxu0 0.0
    %1096 = vmatpush1.xpose.msra.mxu0 0.0
    %1097 = vmatprep.subr.mxu0 0.0
    %1098 = vmatpush1.xpose.msra.mxu0 0.0
    %1099 = vmatprep.subr.mxu0 0.0
    %1100 = vmatpush1.xpose.msra.mxu0 0.0
    %1101 = vmatprep.subr.mxu0 0.0
    %1102 = vmatpush1.xpose.msra.mxu0 0.0
    %1103 = vmatprep.subr.mxu0 0.0
    %1104 = vmatpush1.xpose.msra.mxu0 0.0
    %1105 = vmatprep.subr.mxu0 0.0
    %1106 = vmatpush1.xpose.msra.mxu0 0.0
    %1107 = vmatprep.subr.mxu0 0.0
    %1108 = vmatpush1.xpose.msra.mxu0 0.0
    %1109 = vmatprep.subr.mxu0 0.0
    %1110 = vmatpush1.xpose.msra.mxu0 0.0
    %1111 = vmatprep.subr.mxu0 0.0
    %1112 = vmatpush1.xpose.msra.mxu0 0.0
    %1113 = vmatprep.mubr.f32.mxu0 0.0
    %1114 = vmatmul.mubr.f32.gmra.mrb[0].mxu0 %v386
    %v1115 = vpop.f32.mrb[0].mxu0
    %v1116 = vadd.f32 0.0, %v1115
    %v1117 = vpop.f32.mrb[0].mxu0
    %1118 = vdwg.mxu0
    %vm1119 = vcmask 64512
    %v1120 = vsel %vm1119, %v1046, -inf
    %1121 = vmax.xlane.f32.xlu0 %v1120
    %v1122 = vpop.xlane.xlu0 %1121
    %v1123 = vsel %vm1119, %v1116, -inf
    %1124 = vmax.xlane.f32.xlu0 %v1123
    %v1125 = vpop.xlane.xlu0 %1124
    %v1126 = vsub.f32 %v1046, %v1122
    %v1127 = vsub.f32 %v1116, %v1125
    %v1128 = vmul.f32 %v1126, 1.442695
    %v1129 = vpow.pop %v1128
    %v1130 = vmul.f32 %v1127, 1.442695
    %v1131 = vpow.pop %v1130
    %v1132 = vsel %vm1119, %v1129, 0.0
    %1133 = vadd.xlane.f32.xlu0 %v1132
    %v1134 = vpop.xlane.xlu0 %1133
    %v1135 = vsel %vm1119, %v1131, 0.0
    %1136 = vadd.xlane.f32.xlu0 %v1135
    %v1137 = vpop.xlane.xlu0 %1136
    %v1138 = vrcp.pop %v1134
    %v1139 = vrcp.pop %v1137
    %v1140 = vmul.f32 %v1129, %v1138
    %v1141 = vmul.f32 %v1131, %v1139
    %1142 = vxpose.xlu0.b32.start [1/16] %v1140, 128
    %1143 = vxpose.xlu0.b32.cont [2/16] 0.0, 128
    %1144 = vxpose.xlu0.b32.cont [3/16] 0.0, 128
    %1145 = vxpose.xlu0.b32.cont [4/16] 0.0, 128
    %1146 = vxpose.xlu0.b32.cont [5/16] 0.0, 128
    %1147 = vxpose.xlu0.b32.cont [6/16] 0.0, 128
    %1148 = vxpose.xlu0.b32.cont [7/16] 0.0, 128
    %1149 = vxpose.xlu0.b32.cont [8/16] 0.0, 128
    %1150 = vxpose.xlu0.b32.cont [9/16] 0.0, 128
    %1151 = vxpose.xlu0.b32.cont [10/16] 0.0, 128
    %1152 = vxpose.xlu0.b32.cont [11/16] 0.0, 128
    %1153 = vxpose.xlu0.b32.cont [12/16] 0.0, 128
    %1154 = vxpose.xlu0.b32.cont [13/16] 0.0, 128
    %1155 = vxpose.xlu0.b32.cont [14/16] 0.0, 128
    %1156 = vxpose.xlu0.b32.cont [15/16] 0.0, 128
    %1157 = vxpose.xlu0.b32.end [16/16] 0.0, 128
    %v1158 = vpop.trf.xlu0
    %v1159 = vpop.trf.xlu0
    %v1160 = vpop.trf.xlu0
    %v1161 = vpop.trf.xlu0
    %v1162 = vpop.trf.xlu0
    %v1163 = vpop.trf.xlu0
    %v1164 = vpop.trf.xlu0
    %v1165 = vpop.trf.xlu0
    %v1166 = vpop.trf.xlu0
    %v1167 = vpop.trf.xlu0
    %v1168 = vpop.trf.xlu0
    %v1169 = vpop.trf.xlu0
    %v1170 = vpop.trf.xlu0
    %v1171 = vpop.trf.xlu0
    %v1172 = vpop.trf.xlu0
    %v1173 = vpop.trf.xlu0
    %v1175 = vsel %vm1119, %v1158, 0
    %1177 = vmatprep.subr.mxu0 0.0
    %1178 = vmatpush1.msra.mxu0 %v971
    %1179 = vmatprep.subr.mxu0 0.0
    %1180 = vmatpush1.msra.mxu0 0.0
    %1181 = vmatprep.subr.mxu0 0.0
    %1182 = vmatpush1.msra.mxu0 0.0
    %1183 = vmatprep.subr.mxu0 0.0
    %1184 = vmatpush1.msra.mxu0 0.0
    %1185 = vmatprep.subr.mxu0 0.0
    %1186 = vmatpush1.msra.mxu0 0.0
    %1187 = vmatprep.subr.mxu0 0.0
    %1188 = vmatpush1.msra.mxu0 0.0
    %1189 = vmatprep.subr.mxu0 0.0
    %1190 = vmatpush1.msra.mxu0 0.0
    %1191 = vmatprep.subr.mxu0 0.0
    %1192 = vmatpush1.msra.mxu0 0.0
    %1193 = vmatprep.subr.mxu0 0.0
    %1194 = vmatpush1.msra.mxu0 0.0
    %1195 = vmatprep.subr.mxu0 0.0
    %1196 = vmatpush1.msra.mxu0 0.0
    %1197 = vmatprep.subr.mxu0 0.0
    %1198 = vmatpush1.msra.mxu0 0.0
    %1199 = vmatprep.subr.mxu0 0.0
    %1200 = vmatpush1.msra.mxu0 0.0
    %1201 = vmatprep.subr.mxu0 0.0
    %1202 = vmatpush1.msra.mxu0 0.0
    %1203 = vmatprep.subr.mxu0 0.0
    %1204 = vmatpush1.msra.mxu0 0.0
    %1205 = vmatprep.subr.mxu0 0.0
    %1206 = vmatpush1.msra.mxu0 0.0
    %1207 = vmatprep.subr.mxu0 0.0
    %1208 = vmatpush1.msra.mxu0 0.0
    %1209 = vmatprep.subr.mxu0 0.0
    %1210 = vmatpush1.msra.mxu0 0.0
    %1211 = vmatprep.subr.mxu0 0.0
    %1212 = vmatpush1.msra.mxu0 0.0
    %1213 = vmatprep.subr.mxu0 0.0
    %1214 = vmatpush1.msra.mxu0 0.0
    %1215 = vmatprep.subr.mxu0 0.0
    %1216 = vmatpush1.msra.mxu0 0.0
    %1217 = vmatprep.subr.mxu0 0.0
    %1218 = vmatpush1.msra.mxu0 0.0
    %1219 = vmatprep.subr.mxu0 0.0
    %1220 = vmatpush1.msra.mxu0 0.0
    %1221 = vmatprep.subr.mxu0 0.0
    %1222 = vmatpush1.msra.mxu0 0.0
    %1223 = vmatprep.subr.mxu0 0.0
    %1224 = vmatpush1.msra.mxu0 0.0
    %1225 = vmatprep.subr.mxu0 0.0
    %1226 = vmatpush1.msra.mxu0 0.0
    %1227 = vmatprep.subr.mxu0 0.0
    %1228 = vmatpush1.msra.mxu0 0.0
    %1229 = vmatprep.subr.mxu0 0.0
    %1230 = vmatpush1.msra.mxu0 0.0
    %1231 = vmatprep.subr.mxu0 0.0
    %1232 = vmatpush1.msra.mxu0 0.0
    %1233 = vmatprep.subr.mxu0 0.0
    %1234 = vmatpush1.msra.mxu0 0.0
    %1235 = vmatprep.subr.mxu0 0.0
    %1236 = vmatpush1.msra.mxu0 0.0
    %1237 = vmatprep.subr.mxu0 0.0
    %1238 = vmatpush1.msra.mxu0 0.0
    %1239 = vmatprep.subr.mxu0 0.0
    %1240 = vmatpush1.msra.mxu0 0.0
    %1241 = vmatprep.mubr.f32.mxu0 0.0
    %1242 = vmatmul.mubr.f32.gmra.mrb[0].mxu0 %v1175
    %v1243 = vpop.f32.mrb[0].mxu0
    %v1244 = vadd.f32 0.0, %v1243
    %v1245 = vpop.f32.mrb[0].mxu0
    %1246 = vdwg.mxu0
    %1247 = vxpose.xlu0.b32.start [1/16] %v1141, 128
    %1248 = vxpose.xlu0.b32.cont [2/16] 0.0, 128
    %1249 = vxpose.xlu0.b32.cont [3/16] 0.0, 128
    %1250 = vxpose.xlu0.b32.cont [4/16] 0.0, 128
    %1251 = vxpose.xlu0.b32.cont [5/16] 0.0, 128
    %1252 = vxpose.xlu0.b32.cont [6/16] 0.0, 128
    %1253 = vxpose.xlu0.b32.cont [7/16] 0.0, 128
    %1254 = vxpose.xlu0.b32.cont [8/16] 0.0, 128
    %1255 = vxpose.xlu0.b32.cont [9/16] 0.0, 128
    %1256 = vxpose.xlu0.b32.cont [10/16] 0.0, 128
    %1257 = vxpose.xlu0.b32.cont [11/16] 0.0, 128
    %1258 = vxpose.xlu0.b32.cont [12/16] 0.0, 128
    %1259 = vxpose.xlu0.b32.cont [13/16] 0.0, 128
    %1260 = vxpose.xlu0.b32.cont [14/16] 0.0, 128
    %1261 = vxpose.xlu0.b32.cont [15/16] 0.0, 128
    %1262 = vxpose.xlu0.b32.end [16/16] 0.0, 128
    %v1263 = vpop.trf.xlu0
    %v1264 = vpop.trf.xlu0
    %v1265 = vpop.trf.xlu0
    %v1266 = vpop.trf.xlu0
    %v1267 = vpop.trf.xlu0
    %v1268 = vpop.trf.xlu0
    %v1269 = vpop.trf.xlu0
    %v1270 = vpop.trf.xlu0
    %v1271 = vpop.trf.xlu0
    %v1272 = vpop.trf.xlu0
    %v1273 = vpop.trf.xlu0
    %v1274 = vpop.trf.xlu0
    %v1275 = vpop.trf.xlu0
    %v1276 = vpop.trf.xlu0
    %v1277 = vpop.trf.xlu0
    %v1278 = vpop.trf.xlu0
    %v1280 = vsel %vm1119, %v1263, 0
    %1282 = vmatprep.subr.mxu0 0.0
    %1283 = vmatpush1.msra.mxu0 %v976
    %1284 = vmatprep.subr.mxu0 0.0
    %1285 = vmatpush1.msra.mxu0 0.0
    %1286 = vmatprep.subr.mxu0 0.0
    %1287 = vmatpush1.msra.mxu0 0.0
    %1288 = vmatprep.subr.mxu0 0.0
    %1289 = vmatpush1.msra.mxu0 0.0
    %1290 = vmatprep.subr.mxu0 0.0
    %1291 = vmatpush1.msra.mxu0 0.0
    %1292 = vmatprep.subr.mxu0 0.0
    %1293 = vmatpush1.msra.mxu0 0.0
    %1294 = vmatprep.subr.mxu0 0.0
    %1295 = vmatpush1.msra.mxu0 0.0
    %1296 = vmatprep.subr.mxu0 0.0
    %1297 = vmatpush1.msra.mxu0 0.0
    %1298 = vmatprep.subr.mxu0 0.0
    %1299 = vmatpush1.msra.mxu0 0.0
    %1300 = vmatprep.subr.mxu0 0.0
    %1301 = vmatpush1.msra.mxu0 0.0
    %1302 = vmatprep.subr.mxu0 0.0
    %1303 = vmatpush1.msra.mxu0 0.0
    %1304 = vmatprep.subr.mxu0 0.0
    %1305 = vmatpush1.msra.mxu0 0.0
    %1306 = vmatprep.subr.mxu0 0.0
    %1307 = vmatpush1.msra.mxu0 0.0
    %1308 = vmatprep.subr.mxu0 0.0
    %1309 = vmatpush1.msra.mxu0 0.0
    %1310 = vmatprep.subr.mxu0 0.0
    %1311 = vmatpush1.msra.mxu0 0.0
    %1312 = vmatprep.subr.mxu0 0.0
    %1313 = vmatpush1.msra.mxu0 0.0
    %1314 = vmatprep.subr.mxu0 0.0
    %1315 = vmatpush1.msra.mxu0 0.0
    %1316 = vmatprep.subr.mxu0 0.0
    %1317 = vmatpush1.msra.mxu0 0.0
    %1318 = vmatprep.subr.mxu0 0.0
    %1319 = vmatpush1.msra.mxu0 0.0
    %1320 = vmatprep.subr.mxu0 0.0
    %1321 = vmatpush1.msra.mxu0 0.0
    %1322 = vmatprep.subr.mxu0 0.0
    %1323 = vmatpush1.msra.mxu0 0.0
    %1324 = vmatprep.subr.mxu0 0.0
    %1325 = vmatpush1.msra.mxu0 0.0
    %1326 = vmatprep.subr.mxu0 0.0
    %1327 = vmatpush1.msra.mxu0 0.0
    %1328 = vmatprep.subr.mxu0 0.0
    %1329 = vmatpush1.msra.mxu0 0.0
    %1330 = vmatprep.subr.mxu0 0.0
    %1331 = vmatpush1.msra.mxu0 0.0
    %1332 = vmatprep.subr.mxu0 0.0
    %1333 = vmatpush1.msra.mxu0 0.0
    %1334 = vmatprep.subr.mxu0 0.0
    %1335 = vmatpush1.msra.mxu0 0.0
    %1336 = vmatprep.subr.mxu0 0.0
    %1337 = vmatpush1.msra.mxu0 0.0
    %1338 = vmatprep.subr.mxu0 0.0
    %1339 = vmatpush1.msra.mxu0 0.0
    %1340 = vmatprep.subr.mxu0 0.0
    %1341 = vmatpush1.msra.mxu0 0.0
    %1342 = vmatprep.subr.mxu0 0.0
    %1343 = vmatpush1.msra.mxu0 0.0
    %1344 = vmatprep.subr.mxu0 0.0
    %1345 = vmatpush1.msra.mxu0 0.0
    %1346 = vmatprep.mubr.f32.mxu0 0.0
    %1347 = vmatmul.mubr.f32.gmra.mrb[0].mxu0 %v1280
    %v1348 = vpop.f32.mrb[0].mxu0
    %v1349 = vadd.f32 0.0, %v1348
    %v1350 = vpop.f32.mrb[0].mxu0
    %1351 = vdwg.mxu0
    %s1352 = scalar_lea.vmem [#allocation8], 1152
    %v1353 = vld [vmem:[%s1352] sm:$0xff]
    %v1354 = vld [vmem:[%s1352 + $0x8] sm:$0xff]
    %v1355 = vld [vmem:[%s1352 + $0x10] sm:$0xff]
    %v1356 = vld [vmem:[%s1352 + $0x18] sm:$0xff]
    %v1357 = vld [vmem:[%s1352 + $0x20] sm:$0xff]
    %v1358 = vld [vmem:[%s1352 + $0x28] sm:$0xff]
    %v1359 = vld [vmem:[%s1352 + $0x30] sm:$0xff]
    %v1360 = vld [vmem:[%s1352 + $0x38] sm:$0xff]
    %v1361 = vld [vmem:[%s1352 + $0x40] sm:$0xff]
    %v1362 = vld [vmem:[%s1352 + $0x48] sm:$0xff]
    %v1363 = vld [vmem:[%s1352 + $0x50] sm:$0xff]
    %v1364 = vld [vmem:[%s1352 + $0x58] sm:$0xff]
    %v1365 = vld [vmem:[%s1352 + $0x60] sm:$0xff]
    %v1366 = vld [vmem:[%s1352 + $0x68] sm:$0xff]
    %v1367 = vld [vmem:[%s1352 + $0x70] sm:$0xff]
    %v1368 = vld [vmem:[%s1352 + $0x78] sm:$0xff]
    %v1369 = vld [vmem:[#allocation10 + $0x9] sm:$0x1]
    %v1370 = vlaneseq
    %v1371 = vshrl.u32 %v1370, 7
    %v1372 = vsub.s32 0, %v1371
    %v1373 = vrot.slane %v1369, %v1372
    %1374 = vmatprep.subr.mxu0 0.0
    %1375 = vmatpush1.msra.mxu0 %v1353
    %1376 = vmatprep.subr.mxu0 0.0
    %1377 = vmatpush1.msra.mxu0 %v1354
    %1378 = vmatprep.subr.mxu0 0.0
    %1379 = vmatpush1.msra.mxu0 %v1355
    %1380 = vmatprep.subr.mxu0 0.0
    %1381 = vmatpush1.msra.mxu0 %v1356
    %1382 = vmatprep.subr.mxu0 0.0
    %1383 = vmatpush1.msra.mxu0 %v1357
    %1384 = vmatprep.subr.mxu0 0.0
    %1385 = vmatpush1.msra.mxu0 %v1358
    %1386 = vmatprep.subr.mxu0 0.0
    %1387 = vmatpush1.msra.mxu0 %v1359
    %1388 = vmatprep.subr.mxu0 0.0
    %1389 = vmatpush1.msra.mxu0 %v1360
    %1390 = vmatprep.subr.mxu0 0.0
    %1391 = vmatpush1.msra.mxu0 %v1361
    %1392 = vmatprep.subr.mxu0 0.0
    %1393 = vmatpush1.msra.mxu0 %v1362
    %1394 = vmatprep.subr.mxu0 0.0
    %1395 = vmatpush1.msra.mxu0 %v1363
    %1396 = vmatprep.subr.mxu0 0.0
    %1397 = vmatpush1.msra.mxu0 %v1364
    %1398 = vmatprep.subr.mxu0 0.0
    %1399 = vmatpush1.msra.mxu0 %v1365
    %1400 = vmatprep.subr.mxu0 0.0
    %1401 = vmatpush1.msra.mxu0 %v1366
    %1402 = vmatprep.subr.mxu0 0.0
    %1403 = vmatpush1.msra.mxu0 %v1367
    %1404 = vmatprep.subr.mxu0 0.0
    %1405 = vmatpush1.msra.mxu0 %v1368
    %1406 = vmatprep.subr.mxu0 0.0
    %1407 = vmatpush1.msra.mxu0 0.0
    %1408 = vmatprep.subr.mxu0 0.0
    %1409 = vmatpush1.msra.mxu0 0.0
    %1410 = vmatprep.subr.mxu0 0.0
    %1411 = vmatpush1.msra.mxu0 0.0
    %1412 = vmatprep.subr.mxu0 0.0
    %1413 = vmatpush1.msra.mxu0 0.0
    %1414 = vmatprep.subr.mxu0 0.0
    %1415 = vmatpush1.msra.mxu0 0.0
    %1416 = vmatprep.subr.mxu0 0.0
    %1417 = vmatpush1.msra.mxu0 0.0
    %1418 = vmatprep.subr.mxu0 0.0
    %1419 = vmatpush1.msra.mxu0 0.0
    %1420 = vmatprep.subr.mxu0 0.0
    %1421 = vmatpush1.msra.mxu0 0.0
    %1422 = vmatprep.subr.mxu0 0.0
    %1423 = vmatpush1.msra.mxu0 0.0
    %1424 = vmatprep.subr.mxu0 0.0
    %1425 = vmatpush1.msra.mxu0 0.0
    %1426 = vmatprep.subr.mxu0 0.0
    %1427 = vmatpush1.msra.mxu0 0.0
    %1428 = vmatprep.subr.mxu0 0.0
    %1429 = vmatpush1.msra.mxu0 0.0
    %1430 = vmatprep.subr.mxu0 0.0
    %1431 = vmatpush1.msra.mxu0 0.0
    %1432 = vmatprep.subr.mxu0 0.0
    %1433 = vmatpush1.msra.mxu0 0.0
    %1434 = vmatprep.subr.mxu0 0.0
    %1435 = vmatpush1.msra.mxu0 0.0
    %1436 = vmatprep.subr.mxu0 0.0
    %1437 = vmatpush1.msra.mxu0 0.0
    %1438 = vmatprep.mubr.f32.mxu0 0.0
    %1439 = vmatmul.mubr.f32.gmra.mrb[0].mxu0 %v1244
    %v1440 = vpop.f32.mrb[0].mxu0
    %v1441 = vadd.f32 %v1373, %v1440
    %v1442 = vpop.f32.mrb[0].mxu0
    %1443 = vmatprep.mubr.f32.mxu0 0.0
    %1444 = vmatmul.mubr.f32.gmra.mrb[0].mxu0 %v1349
    %v1445 = vpop.f32.mrb[0].mxu0
    %v1446 = vadd.f32 %v1373, %v1445
    %v1447 = vpop.f32.mrb[0].mxu0
    %1448 = vdwg.mxu0
    %1449 = vst [vmem:[#allocation11] sm:$0xff] %v1441
    %1450 = vst [vmem:[#allocation11 + $0x8] sm:$0xff] %v1446
    // Predicated region
    $region42: #{tpu_custom_call.1} parent=1 // pred_check
      _
    $region43: #{tpu_custom_call.1} parent=1 // pred_check_branch
      %1452 = sbr.rel (0) target = $region45
    $region44: #{tpu_custom_call.1} parent=1 // pred_region
      %s1454 = ssub.s32 256, 256
      %1455 = vsyncadd [#allocation4], %s1454
      %s1456 = sshll.u32 [#allocation11], 4
      %s1457 = int_to_ptr.vmem [resolvable:$true] %s1456
      %1462 = dma.vmem_to_hbm [thread:$0]  %s1457, 256, %s5, [#allocation4], 128, 128, 8
    $region45: #{tpu_custom_call.1} parent=1 // pred_fallthru
      _
    // Predicated region
    $region46: #{tpu_custom_call.1} parent=1 // pred_check
      _
    $region47: #{tpu_custom_call.1} parent=1 // pred_check_branch
      %1464 = sbr.rel (0) target = $region49
    $region48: #{tpu_custom_call.1} parent=1 // pred_region
      %1465 = dma.done [#allocation4], 256
    $region49: #{tpu_custom_call.1} parent=1 // pred_fallthru
      _
    %1466 = vsyncpa [#allocation3], 1
    %1467 = vsyncpa [#allocation6], 1
    %1468 = vsyncpa [#allocation9], 1
    %1469 = vsyncpa [#allocation4], 1

</llo_original>
